<compile_context>
chip_gen: v7x
topology: tpu7x:2x2x1
jax: 0.10.0
libtpu: 0.0.40
codegen_flags: <defaults>
</compile_context>

<pallas_src>
import jax
import jax.numpy as jnp
from jax.experimental import pallas as pl
from jax.experimental.pallas import tpu as pltpu

NUM_NEURONS = 100
INPUT_SIZE = 100
HIDDEN_SIZE = 100
OUTPUT_SIZE = 10
PAD = 128          # hardware lane width; all feature dims padded to this
STATE_ROWS = 8     # sublane-tile height; rows 0..3 hold v, n, m, h


def _hh_gating_update(v, n, m, h, dt=0.01):
    """Hodgkin-Huxley gating-variable update (elementwise, f32).

    Note: alpha_n / alpha_m have removable singularities at v == -55 / -40
    exactly, same as the PyTorch reference; v stays in [0, ~1] here.
    """
    alpha_n = 0.01 * (v + 55.0) / (1.0 - jnp.exp(-(v + 55.0) / 10.0))
    beta_n = 0.125 * jnp.exp(-(v + 65.0) / 80.0)
    alpha_m = 0.1 * (v + 40.0) / (1.0 - jnp.exp(-(v + 40.0) / 10.0))
    beta_m = 4.0 * jnp.exp(-(v + 65.0) / 18.0)
    alpha_h = 0.07 * jnp.exp(-(v + 65.0) / 20.0)
    beta_h = 1.0 / (1.0 + jnp.exp(-(v + 35.0) / 10.0))
    n = n + dt * (alpha_n * (1.0 - n) - beta_n * n)
    m = m + dt * (alpha_m * (1.0 - m) - beta_m * m)
    h = h + dt * (alpha_h * (1.0 - h) - beta_h * h)
    return n, m, h


def snn_kernel(x_ref, state_ref, w1_ref, b1_ref, w2_ref, b2_ref, w3_ref,
               b3_ref, out_ref, state_out_ref, a1_ref):
    num_steps = out_ref.shape[0]

    # fc1 only depends on the input sequence -> hoist out of the recurrence as
    # a single (T, 128) @ (128, 128) MXU matmul (bf16 in, f32 accumulate).
    a1_ref[...] = jax.nn.sigmoid(
        jnp.dot(x_ref[...].astype(jnp.bfloat16), w1_ref[...],
                preferred_element_type=jnp.float32) + b1_ref[...])

    # Weights / biases stay resident in vregs/VMEM across all timesteps.
    w2 = w2_ref[...]
    b2 = b2_ref[...]
    w3 = w3_ref[...]
    b3 = b3_ref[...]

    state0 = state_ref[...]
    init = (state0[0:1, :], state0[1:2, :], state0[2:3, :], state0[3:4, :])

    def step(t, carry):
        v, n, m, h = carry
        # 1) HH gating updates use the *previous* membrane potential.
        n, m, h = _hh_gating_update(v, n, m, h)
        # 2) leaky membrane update + spike reset.
        v = 0.5 * v + a1_ref[pl.ds(t, 1), :]
        v = jnp.where(v > 1.0, 0.0, v)
        # 3) fc2 + sigmoid, 4) fc3 + sigmoid (M=1 vector-matrix on the MXU).
        h2 = jax.nn.sigmoid(
            jnp.dot(v.astype(jnp.bfloat16), w2,
                    preferred_element_type=jnp.float32) + b2)
        out_t = jax.nn.sigmoid(
            jnp.dot(h2.astype(jnp.bfloat16), w3,
                    preferred_element_type=jnp.float32) + b3)
        out_ref[pl.ds(t, 1), :] = out_t
        return (v, n, m, h)

    v, n, m, h = jax.lax.fori_loop(0, num_steps, step, init, unroll=True)

    # Single lane-dense (8,128) store of the packed state; keep padded lanes
    # zero so the aliased state buffer stays clean across calls.
    new_state = jnp.concatenate(
        [v, n, m, h, jnp.zeros((STATE_ROWS - 4, PAD), jnp.float32)], axis=0)
    lane = jax.lax.broadcasted_iota(jnp.int32, (STATE_ROWS, PAD), 1)
    state_out_ref[...] = jnp.where(lane < NUM_NEURONS, new_state, 0.0)


@jax.jit
def snn_forward_sequence(x_seq, state_packed, w1, b1, w2, b2, w3, b3):
    """Run T recurrent SNN forward() steps in one kernel launch.

    x_seq:        (T, 128) f32, lanes 100..127 zero
    state_packed: (8, 128) f32, rows 0..3 = v, n, m, h
    w1/w2/w3:     (128, 128) bf16, pre-transposed (x @ W == PyTorch x @ W.T)
    b1/b2/b3:     (1, 128) f32
    Returns (out_seq (T,128) f32, new packed state (8,128) f32).
    """
    num_steps = x_seq.shape[0]
    vmem_spec = pl.BlockSpec(memory_space=pltpu.MemorySpace.VMEM)

    cost = pl.CostEstimate(
        flops=6 * num_steps * PAD * PAD,              # fc1+fc2+fc3 MACs * 2
        transcendentals=9 * num_steps * PAD,          # 6 HH exps + 3 sigmoids
        bytes_accessed=(3 * PAD * PAD * 2             # bf16 weights
                        + 3 * PAD * 4                 # biases
                        + 2 * num_steps * PAD * 4     # x_seq in + out_seq out
                        + 2 * STATE_ROWS * PAD * 4),  # packed state in + out
    )

    return pl.pallas_call(
        snn_kernel,
        out_shape=(
            jax.ShapeDtypeStruct((num_steps, PAD), jnp.float32),
            jax.ShapeDtypeStruct((STATE_ROWS, PAD), jnp.float32),
        ),
        in_specs=[vmem_spec] * 8,
        out_specs=(vmem_spec, vmem_spec),
        scratch_shapes=[pltpu.VMEM((num_steps, PAD), jnp.float32)],
        input_output_aliases={1: 1},   # packed state: updated in place
        cost_estimate=cost,
    )(x_seq, state_packed, w1, b1, w2, b2, w3, b3)


def snn_reference(x_seq, state_packed, w1, b1, w2, b2, w3, b3):
    """Pure-JAX reference (same bf16 weights / f32 accumulation)."""
    v = state_packed[0:1, :]
    n = state_packed[1:2, :]
    m = state_packed[2:3, :]
    h = state_packed[3:4, :]
    outs = []
    for t in range(x_seq.shape[0]):
        n, m, h = _hh_gating_update(v, n, m, h)
        a1 = jax.nn.sigmoid(
            jnp.dot(x_seq[t:t + 1].astype(jnp.bfloat16), w1,
                    preferred_element_type=jnp.float32) + b1)
        v = 0.5 * v + a1
        v = jnp.where(v > 1.0, 0.0, v)
        h2 = jax.nn.sigmoid(
            jnp.dot(v.astype(jnp.bfloat16), w2,
                    preferred_element_type=jnp.float32) + b2)
        outs.append(jax.nn.sigmoid(
            jnp.dot(h2.astype(jnp.bfloat16), w3,
                    preferred_element_type=jnp.float32) + b3))
    return jnp.concatenate(outs, axis=0), v, n, m, h


def _pad2d(a, rows, cols):
    return jnp.pad(a, ((0, rows - a.shape[0]), (0, cols - a.shape[1])))


if __name__ == "__main__":
    key = jax.random.PRNGKey(0)
    ks = jax.random.split(key, 7)
    T = 8   # timesteps processed per kernel launch

    # Deterministic parameter init (PyTorch-Linear-style uniform bounds),
    # pre-transposed to [in_features, out_features].
    b1_bound = 1.0 / float(INPUT_SIZE) ** 0.5
    b2_bound = 1.0 / float(HIDDEN_SIZE) ** 0.5
    w1_f = jax.random.uniform(ks[0], (INPUT_SIZE, HIDDEN_SIZE), jnp.float32,
                              -b1_bound, b1_bound)
    b1_f = jax.random.uniform(ks[1], (1, HIDDEN_SIZE), jnp.float32,
                              -b1_bound, b1_bound)
    w2_f = jax.random.uniform(ks[2], (HIDDEN_SIZE, HIDDEN_SIZE), jnp.float32,
                              -b2_bound, b2_bound)
    b2_f = jax.random.uniform(ks[3], (1, HIDDEN_SIZE), jnp.float32,
                              -b2_bound, b2_bound)
    w3_f = jax.random.uniform(ks[4], (HIDDEN_SIZE, OUTPUT_SIZE), jnp.float32,
                              -b2_bound, b2_bound)
    b3_f = jax.random.uniform(ks[5], (1, OUTPUT_SIZE), jnp.float32,
                              -b2_bound, b2_bound)

    # Pad to 128 lanes (padded rows/cols are zero) and cast weights to bf16.
    w1 = _pad2d(w1_f, PAD, PAD).astype(jnp.bfloat16)
    w2 = _pad2d(w2_f, PAD, PAD).astype(jnp.bfloat16)
    w3 = _pad2d(w3_f, PAD, PAD).astype(jnp.bfloat16)
    b1 = _pad2d(b1_f, 1, PAD)
    b2 = _pad2d(b2_f, 1, PAD)
    b3 = _pad2d(b3_f, 1, PAD)

    # Initial neuron state (zeros, as in __init__), packed into (8, 128).
    state0 = jnp.zeros((STATE_ROWS, PAD), jnp.float32)

    # Input sequence: each step's forward() sees a (1, 100) signal.
    x_seq = jax.random.normal(ks[6], (T, INPUT_SIZE), jnp.float32)
    x_seq_p = _pad2d(x_seq, T, PAD)

    # Pure-JAX reference.
    ref_out, ref_v, ref_n, ref_m, ref_h = snn_reference(
        x_seq_p, state0, w1, b1, w2, b2, w3, b3)

    # Pallas kernel.
    out_seq_p, state_new = snn_forward_sequence(
        x_seq_p, state0, w1, b1, w2, b2, w3, b3)
    jax.block_until_ready(out_seq_p)
    jax.block_until_ready(state_new)

    out_seq = out_seq_p[:, :OUTPUT_SIZE]
    v_new = state_new[0, :NUM_NEURONS]
    n_new = state_new[1, :NUM_NEURONS]
    m_new = state_new[2, :NUM_NEURONS]
    h_new = state_new[3, :NUM_NEURONS]

    assert out_seq.shape == (T, OUTPUT_SIZE)
    assert v_new.shape == (NUM_NEURONS,)
    assert jnp.allclose(out_seq, ref_out[:, :OUTPUT_SIZE], atol=5e-3, rtol=5e-3)
    assert jnp.allclose(v_new, ref_v[0, :NUM_NEURONS], atol=5e-3, rtol=5e-3)
    assert jnp.allclose(n_new, ref_n[0, :NUM_NEURONS], atol=5e-3, rtol=5e-3)
    assert jnp.allclose(m_new, ref_m[0, :NUM_NEURONS], atol=5e-3, rtol=5e-3)
    assert jnp.allclose(h_new, ref_h[0, :NUM_NEURONS], atol=5e-3, rtol=5e-3)
    print("KERNEL_OK")
</pallas_src>

<mosaic_0001>
module attributes {stable_mosaic.version = 11 : i64} {
  func.func @snn_kernel(%arg0: memref<8x128xf32, #tpu.memory_space<vmem>>, %arg1: memref<8x128xf32, #tpu.memory_space<vmem>>, %arg2: memref<128x128xbf16, #tpu.memory_space<vmem>>, %arg3: memref<1x128xf32, #tpu.memory_space<vmem>>, %arg4: memref<128x128xbf16, #tpu.memory_space<vmem>>, %arg5: memref<1x128xf32, #tpu.memory_space<vmem>>, %arg6: memref<128x128xbf16, #tpu.memory_space<vmem>>, %arg7: memref<1x128xf32, #tpu.memory_space<vmem>>, %arg8: memref<8x128xf32, #tpu.memory_space<vmem>>, %arg9: memref<8x128xf32, #tpu.memory_space<vmem>>, %arg10: memref<8x128xf32, #tpu.memory_space<vmem>>) attributes {dimension_semantics = [], scalar_prefetch = 0 : i64, scratch_operands = 1 : i64, tpu.core_type = #tpu.core_type<tc>} {
    %c0 = arith.constant 0 : index
    %c0_0 = arith.constant 0 : index
    %0 = vector.load %arg0[%c0, %c0_0] : memref<8x128xf32, #tpu.memory_space<vmem>>, vector<8x128xf32>
    %1 = arith.truncf %0 : vector<8x128xf32> to vector<8x128xbf16>
    %c0_1 = arith.constant 0 : index
    %c0_2 = arith.constant 0 : index
    %2 = vector.load %arg2[%c0_1, %c0_2] : memref<128x128xbf16, #tpu.memory_space<vmem>>, vector<128x128xbf16>
    %cst = arith.constant dense<0.000000e+00> : vector<8x128xf32>
    %3 = tpu.matmul %1, %2, %cst {dimension_numbers = #tpu.dot_dimension_numbers<[1], [0], [0], [1], [0, 0, 1, 1], [], []>} : vector<8x128xbf16>, vector<128x128xbf16>, vector<8x128xf32> -> vector<8x128xf32>
    %c0_3 = arith.constant 0 : index
    %c0_4 = arith.constant 0 : index
    %4 = vector.load %arg3[%c0_3, %c0_4] : memref<1x128xf32, #tpu.memory_space<vmem>>, vector<1x128xf32>
    %5 = vector.broadcast %4 : vector<1x128xf32> to vector<8x128xf32>
    %6 = arith.addf %3, %5 : vector<8x128xf32>
    %7 = arith.negf %6 : vector<8x128xf32>
    %8 = math.exp %7 : vector<8x128xf32>
    %cst_5 = arith.constant 1.000000e+00 : f32
    %9 = vector.broadcast %cst_5 : f32 to vector<8x128xf32>
    %10 = arith.addf %9, %8 : vector<8x128xf32>
    %11 = arith.divf %9, %10 : vector<8x128xf32>
    %c0_6 = arith.constant 0 : index
    %c0_7 = arith.constant 0 : index
    %12 = vector.load %arg10[%c0_6, %c0_7] : memref<8x128xf32, #tpu.memory_space<vmem>>, vector<8x128xf32>
    tpu.vector_store %arg10[%c0_6, %c0_7], %11 {strides = array<i32>} : memref<8x128xf32, #tpu.memory_space<vmem>>, vector<8x128xf32>,
    %c0_8 = arith.constant 0 : index
    %c0_9 = arith.constant 0 : index
    %13 = vector.load %arg4[%c0_8, %c0_9] : memref<128x128xbf16, #tpu.memory_space<vmem>>, vector<128x128xbf16>
    %c0_10 = arith.constant 0 : index
    %c0_11 = arith.constant 0 : index
    %14 = vector.load %arg5[%c0_10, %c0_11] : memref<1x128xf32, #tpu.memory_space<vmem>>, vector<1x128xf32>
    %c0_12 = arith.constant 0 : index
    %c0_13 = arith.constant 0 : index
    %15 = vector.load %arg6[%c0_12, %c0_13] : memref<128x128xbf16, #tpu.memory_space<vmem>>, vector<128x128xbf16>
    %c0_14 = arith.constant 0 : index
    %c0_15 = arith.constant 0 : index
    %16 = vector.load %arg7[%c0_14, %c0_15] : memref<1x128xf32, #tpu.memory_space<vmem>>, vector<1x128xf32>
    %c0_16 = arith.constant 0 : index
    %c0_17 = arith.constant 0 : index
    %17 = vector.load %arg1[%c0_16, %c0_17] : memref<8x128xf32, #tpu.memory_space<vmem>>, vector<8x128xf32>
    %18 = vector.extract_strided_slice %17 {offsets = [0, 0], sizes = [1, 128], strides = [1, 1]} : vector<8x128xf32> to vector<1x128xf32>
    %19 = vector.extract_strided_slice %17 {offsets = [1, 0], sizes = [1, 128], strides = [1, 1]} : vector<8x128xf32> to vector<1x128xf32>
    %20 = vector.extract_strided_slice %17 {offsets = [2, 0], sizes = [1, 128], strides = [1, 1]} : vector<8x128xf32> to vector<1x128xf32>
    %21 = vector.extract_strided_slice %17 {offsets = [3, 0], sizes = [1, 128], strides = [1, 1]} : vector<8x128xf32> to vector<1x128xf32>
    %c0_i32 = arith.constant 0 : i32
    %cst_18 = arith.constant 5.500000e+01 : f32
    %22 = vector.broadcast %cst_18 : f32 to vector<1x128xf32>
    %23 = arith.addf %18, %22 : vector<1x128xf32>
    %cst_19 = arith.constant 0.00999999977 : f32
    %24 = vector.broadcast %cst_19 : f32 to vector<1x128xf32>
    %25 = arith.mulf %24, %23 : vector<1x128xf32>
    %cst_20 = arith.constant 5.500000e+01 : f32
    %26 = vector.broadcast %cst_20 : f32 to vector<1x128xf32>
    %27 = arith.addf %18, %26 : vector<1x128xf32>
    %cst_21 = arith.constant 0.000000e+00 : f32
    %28 = vector.broadcast %cst_21 : f32 to vector<1x128xf32>
    %29 = arith.subf %28, %27 : vector<1x128xf32>
    %cst_22 = arith.constant 1.000000e+01 : f32
    %30 = vector.broadcast %cst_22 : f32 to vector<1x128xf32>
    %31 = arith.divf %29, %30 : vector<1x128xf32>
    %32 = math.exp %31 : vector<1x128xf32>
    %cst_23 = arith.constant 1.000000e+00 : f32
    %33 = vector.broadcast %cst_23 : f32 to vector<1x128xf32>
    %34 = arith.subf %33, %32 : vector<1x128xf32>
    %35 = arith.divf %25, %34 : vector<1x128xf32>
    %cst_24 = arith.constant 6.500000e+01 : f32
    %36 = vector.broadcast %cst_24 : f32 to vector<1x128xf32>
    %37 = arith.addf %18, %36 : vector<1x128xf32>
    %cst_25 = arith.constant 0.000000e+00 : f32
    %38 = vector.broadcast %cst_25 : f32 to vector<1x128xf32>
    %39 = arith.subf %38, %37 : vector<1x128xf32>
    %cst_26 = arith.constant 8.000000e+01 : f32
    %40 = vector.broadcast %cst_26 : f32 to vector<1x128xf32>
    %41 = arith.divf %39, %40 : vector<1x128xf32>
    %42 = math.exp %41 : vector<1x128xf32>
    %cst_27 = arith.constant 1.250000e-01 : f32
    %43 = vector.broadcast %cst_27 : f32 to vector<1x128xf32>
    %44 = arith.mulf %43, %42 : vector<1x128xf32>
    %cst_28 = arith.constant 4.000000e+01 : f32
    %45 = vector.broadcast %cst_28 : f32 to vector<1x128xf32>
    %46 = arith.addf %18, %45 : vector<1x128xf32>
    %cst_29 = arith.constant 1.000000e-01 : f32
    %47 = vector.broadcast %cst_29 : f32 to vector<1x128xf32>
    %48 = arith.mulf %47, %46 : vector<1x128xf32>
    %cst_30 = arith.constant 4.000000e+01 : f32
    %49 = vector.broadcast %cst_30 : f32 to vector<1x128xf32>
    %50 = arith.addf %18, %49 : vector<1x128xf32>
    %cst_31 = arith.constant 0.000000e+00 : f32
    %51 = vector.broadcast %cst_31 : f32 to vector<1x128xf32>
    %52 = arith.subf %51, %50 : vector<1x128xf32>
    %cst_32 = arith.constant 1.000000e+01 : f32
    %53 = vector.broadcast %cst_32 : f32 to vector<1x128xf32>
    %54 = arith.divf %52, %53 : vector<1x128xf32>
    %55 = math.exp %54 : vector<1x128xf32>
    %cst_33 = arith.constant 1.000000e+00 : f32
    %56 = vector.broadcast %cst_33 : f32 to vector<1x128xf32>
    %57 = arith.subf %56, %55 : vector<1x128xf32>
    %58 = arith.divf %48, %57 : vector<1x128xf32>
    %cst_34 = arith.constant 6.500000e+01 : f32
    %59 = vector.broadcast %cst_34 : f32 to vector<1x128xf32>
    %60 = arith.addf %18, %59 : vector<1x128xf32>
    %cst_35 = arith.constant 0.000000e+00 : f32
    %61 = vector.broadcast %cst_35 : f32 to vector<1x128xf32>
    %62 = arith.subf %61, %60 : vector<1x128xf32>
    %cst_36 = arith.constant 1.800000e+01 : f32
    %63 = vector.broadcast %cst_36 : f32 to vector<1x128xf32>
    %64 = arith.divf %62, %63 : vector<1x128xf32>
    %65 = math.exp %64 : vector<1x128xf32>
    %cst_37 = arith.constant 4.000000e+00 : f32
    %66 = vector.broadcast %cst_37 : f32 to vector<1x128xf32>
    %67 = arith.mulf %66, %65 : vector<1x128xf32>
    %cst_38 = arith.constant 6.500000e+01 : f32
    %68 = vector.broadcast %cst_38 : f32 to vector<1x128xf32>
    %69 = arith.addf %18, %68 : vector<1x128xf32>
    %cst_39 = arith.constant 0.000000e+00 : f32
    %70 = vector.broadcast %cst_39 : f32 to vector<1x128xf32>
    %71 = arith.subf %70, %69 : vector<1x128xf32>
    %cst_40 = arith.constant 2.000000e+01 : f32
    %72 = vector.broadcast %cst_40 : f32 to vector<1x128xf32>
    %73 = arith.divf %71, %72 : vector<1x128xf32>
    %74 = math.exp %73 : vector<1x128xf32>
    %cst_41 = arith.constant 7.000000e-02 : f32
    %75 = vector.broadcast %cst_41 : f32 to vector<1x128xf32>
    %76 = arith.mulf %75, %74 : vector<1x128xf32>
    %cst_42 = arith.constant 3.500000e+01 : f32
    %77 = vector.broadcast %cst_42 : f32 to vector<1x128xf32>
    %78 = arith.addf %18, %77 : vector<1x128xf32>
    %cst_43 = arith.constant 0.000000e+00 : f32
    %79 = vector.broadcast %cst_43 : f32 to vector<1x128xf32>
    %80 = arith.subf %79, %78 : vector<1x128xf32>
    %cst_44 = arith.constant 1.000000e+01 : f32
    %81 = vector.broadcast %cst_44 : f32 to vector<1x128xf32>
    %82 = arith.divf %80, %81 : vector<1x128xf32>
    %83 = math.exp %82 : vector<1x128xf32>
    %cst_45 = arith.constant 1.000000e+00 : f32
    %84 = vector.broadcast %cst_45 : f32 to vector<1x128xf32>
    %85 = arith.addf %84, %83 : vector<1x128xf32>
    %cst_46 = arith.constant 1.000000e+00 : f32
    %86 = vector.broadcast %cst_46 : f32 to vector<1x128xf32>
    %87 = arith.divf %86, %85 : vector<1x128xf32>
    %cst_47 = arith.constant 1.000000e+00 : f32
    %88 = vector.broadcast %cst_47 : f32 to vector<1x128xf32>
    %89 = arith.subf %88, %19 : vector<1x128xf32>
    %90 = arith.mulf %35, %89 : vector<1x128xf32>
    %91 = arith.mulf %44, %19 : vector<1x128xf32>
    %92 = arith.subf %90, %91 : vector<1x128xf32>
    %cst_48 = arith.constant 0.00999999977 : f32
    %93 = vector.broadcast %cst_48 : f32 to vector<1x128xf32>
    %94 = arith.mulf %93, %92 : vector<1x128xf32>
    %95 = arith.addf %19, %94 : vector<1x128xf32>
    %cst_49 = arith.constant 1.000000e+00 : f32
    %96 = vector.broadcast %cst_49 : f32 to vector<1x128xf32>
    %97 = arith.subf %96, %20 : vector<1x128xf32>
    %98 = arith.mulf %58, %97 : vector<1x128xf32>
    %99 = arith.mulf %67, %20 : vector<1x128xf32>
    %100 = arith.subf %98, %99 : vector<1x128xf32>
    %cst_50 = arith.constant 0.00999999977 : f32
    %101 = vector.broadcast %cst_50 : f32 to vector<1x128xf32>
    %102 = arith.mulf %101, %100 : vector<1x128xf32>
    %103 = arith.addf %20, %102 : vector<1x128xf32>
    %cst_51 = arith.constant 1.000000e+00 : f32
    %104 = vector.broadcast %cst_51 : f32 to vector<1x128xf32>
    %105 = arith.subf %104, %21 : vector<1x128xf32>
    %106 = arith.mulf %76, %105 : vector<1x128xf32>
    %107 = arith.mulf %87, %21 : vector<1x128xf32>
    %108 = arith.subf %106, %107 : vector<1x128xf32>
    %cst_52 = arith.constant 0.00999999977 : f32
    %109 = vector.broadcast %cst_52 : f32 to vector<1x128xf32>
    %110 = arith.mulf %109, %108 : vector<1x128xf32>
    %111 = arith.addf %21, %110 : vector<1x128xf32>
    %cst_53 = arith.constant 5.000000e-01 : f32
    %112 = vector.broadcast %cst_53 : f32 to vector<1x128xf32>
    %113 = arith.mulf %112, %18 : vector<1x128xf32>
    %114 = arith.index_cast %c0_i32 : i32 to index
    %c0_54 = arith.constant 0 : index
    %115 = vector.load %arg10[%114, %c0_54] : memref<8x128xf32, #tpu.memory_space<vmem>>, vector<1x128xf32>
    %116 = arith.addf %113, %115 : vector<1x128xf32>
    %cst_55 = arith.constant 1.000000e+00 : f32
    %117 = vector.broadcast %cst_55 : f32 to vector<1x128xf32>
    %118 = arith.cmpf ogt, %116, %117 : vector<1x128xf32>
    %cst_56 = arith.constant 0.000000e+00 : f32
    %119 = vector.broadcast %cst_56 : f32 to vector<1x128xf32>
    %120 = arith.select %118, %119, %116 : vector<1x128xi1>, vector<1x128xf32>
    %121 = arith.truncf %120 : vector<1x128xf32> to vector<1x128xbf16>
    %cst_57 = arith.constant dense<0.000000e+00> : vector<1x128xf32>
    %122 = tpu.matmul %121, %13, %cst_57 {dimension_numbers = #tpu.dot_dimension_numbers<[1], [0], [0], [1], [0, 0, 1, 1], [], []>} : vector<1x128xbf16>, vector<128x128xbf16>, vector<1x128xf32> -> vector<1x128xf32>
    %123 = arith.addf %122, %14 : vector<1x128xf32>
    %124 = arith.negf %123 : vector<1x128xf32>
    %125 = math.exp %124 : vector<1x128xf32>
    %cst_58 = arith.constant 1.000000e+00 : f32
    %126 = vector.broadcast %cst_58 : f32 to vector<1x128xf32>
    %127 = arith.addf %126, %125 : vector<1x128xf32>
    %128 = arith.divf %126, %127 : vector<1x128xf32>
    %129 = arith.truncf %128 : vector<1x128xf32> to vector<1x128xbf16>
    %cst_59 = arith.constant dense<0.000000e+00> : vector<1x128xf32>
    %130 = tpu.matmul %129, %15, %cst_59 {dimension_numbers = #tpu.dot_dimension_numbers<[1], [0], [0], [1], [0, 0, 1, 1], [], []>} : vector<1x128xbf16>, vector<128x128xbf16>, vector<1x128xf32> -> vector<1x128xf32>
    %131 = arith.addf %130, %16 : vector<1x128xf32>
    %132 = arith.negf %131 : vector<1x128xf32>
    %133 = math.exp %132 : vector<1x128xf32>
    %cst_60 = arith.constant 1.000000e+00 : f32
    %134 = vector.broadcast %cst_60 : f32 to vector<1x128xf32>
    %135 = arith.addf %134, %133 : vector<1x128xf32>
    %136 = arith.divf %134, %135 : vector<1x128xf32>
    %137 = arith.index_cast %c0_i32 : i32 to index
    %c0_61 = arith.constant 0 : index
    %138 = vector.load %arg8[%137, %c0_61] : memref<8x128xf32, #tpu.memory_space<vmem>>, vector<1x128xf32>
    tpu.vector_store %arg8[%137, %c0_61], %136 {strides = array<i32>} : memref<8x128xf32, #tpu.memory_space<vmem>>, vector<1x128xf32>,
    %c1_i32 = arith.constant 1 : i32
    %cst_62 = arith.constant 5.500000e+01 : f32
    %139 = vector.broadcast %cst_62 : f32 to vector<1x128xf32>
    %140 = arith.addf %120, %139 : vector<1x128xf32>
    %cst_63 = arith.constant 0.00999999977 : f32
    %141 = vector.broadcast %cst_63 : f32 to vector<1x128xf32>
    %142 = arith.mulf %141, %140 : vector<1x128xf32>
    %cst_64 = arith.constant 5.500000e+01 : f32
    %143 = vector.broadcast %cst_64 : f32 to vector<1x128xf32>
    %144 = arith.addf %120, %143 : vector<1x128xf32>
    %cst_65 = arith.constant 0.000000e+00 : f32
    %145 = vector.broadcast %cst_65 : f32 to vector<1x128xf32>
    %146 = arith.subf %145, %144 : vector<1x128xf32>
    %cst_66 = arith.constant 1.000000e+01 : f32
    %147 = vector.broadcast %cst_66 : f32 to vector<1x128xf32>
    %148 = arith.divf %146, %147 : vector<1x128xf32>
    %149 = math.exp %148 : vector<1x128xf32>
    %cst_67 = arith.constant 1.000000e+00 : f32
    %150 = vector.broadcast %cst_67 : f32 to vector<1x128xf32>
    %151 = arith.subf %150, %149 : vector<1x128xf32>
    %152 = arith.divf %142, %151 : vector<1x128xf32>
    %cst_68 = arith.constant 6.500000e+01 : f32
    %153 = vector.broadcast %cst_68 : f32 to vector<1x128xf32>
    %154 = arith.addf %120, %153 : vector<1x128xf32>
    %cst_69 = arith.constant 0.000000e+00 : f32
    %155 = vector.broadcast %cst_69 : f32 to vector<1x128xf32>
    %156 = arith.subf %155, %154 : vector<1x128xf32>
    %cst_70 = arith.constant 8.000000e+01 : f32
    %157 = vector.broadcast %cst_70 : f32 to vector<1x128xf32>
    %158 = arith.divf %156, %157 : vector<1x128xf32>
    %159 = math.exp %158 : vector<1x128xf32>
    %cst_71 = arith.constant 1.250000e-01 : f32
    %160 = vector.broadcast %cst_71 : f32 to vector<1x128xf32>
    %161 = arith.mulf %160, %159 : vector<1x128xf32>
    %cst_72 = arith.constant 4.000000e+01 : f32
    %162 = vector.broadcast %cst_72 : f32 to vector<1x128xf32>
    %163 = arith.addf %120, %162 : vector<1x128xf32>
    %cst_73 = arith.constant 1.000000e-01 : f32
    %164 = vector.broadcast %cst_73 : f32 to vector<1x128xf32>
    %165 = arith.mulf %164, %163 : vector<1x128xf32>
    %cst_74 = arith.constant 4.000000e+01 : f32
    %166 = vector.broadcast %cst_74 : f32 to vector<1x128xf32>
    %167 = arith.addf %120, %166 : vector<1x128xf32>
    %cst_75 = arith.constant 0.000000e+00 : f32
    %168 = vector.broadcast %cst_75 : f32 to vector<1x128xf32>
    %169 = arith.subf %168, %167 : vector<1x128xf32>
    %cst_76 = arith.constant 1.000000e+01 : f32
    %170 = vector.broadcast %cst_76 : f32 to vector<1x128xf32>
    %171 = arith.divf %169, %170 : vector<1x128xf32>
    %172 = math.exp %171 : vector<1x128xf32>
    %cst_77 = arith.constant 1.000000e+00 : f32
    %173 = vector.broadcast %cst_77 : f32 to vector<1x128xf32>
    %174 = arith.subf %173, %172 : vector<1x128xf32>
    %175 = arith.divf %165, %174 : vector<1x128xf32>
    %cst_78 = arith.constant 6.500000e+01 : f32
    %176 = vector.broadcast %cst_78 : f32 to vector<1x128xf32>
    %177 = arith.addf %120, %176 : vector<1x128xf32>
    %cst_79 = arith.constant 0.000000e+00 : f32
    %178 = vector.broadcast %cst_79 : f32 to vector<1x128xf32>
    %179 = arith.subf %178, %177 : vector<1x128xf32>
    %cst_80 = arith.constant 1.800000e+01 : f32
    %180 = vector.broadcast %cst_80 : f32 to vector<1x128xf32>
    %181 = arith.divf %179, %180 : vector<1x128xf32>
    %182 = math.exp %181 : vector<1x128xf32>
    %cst_81 = arith.constant 4.000000e+00 : f32
    %183 = vector.broadcast %cst_81 : f32 to vector<1x128xf32>
    %184 = arith.mulf %183, %182 : vector<1x128xf32>
    %cst_82 = arith.constant 6.500000e+01 : f32
    %185 = vector.broadcast %cst_82 : f32 to vector<1x128xf32>
    %186 = arith.addf %120, %185 : vector<1x128xf32>
    %cst_83 = arith.constant 0.000000e+00 : f32
    %187 = vector.broadcast %cst_83 : f32 to vector<1x128xf32>
    %188 = arith.subf %187, %186 : vector<1x128xf32>
    %cst_84 = arith.constant 2.000000e+01 : f32
    %189 = vector.broadcast %cst_84 : f32 to vector<1x128xf32>
    %190 = arith.divf %188, %189 : vector<1x128xf32>
    %191 = math.exp %190 : vector<1x128xf32>
    %cst_85 = arith.constant 7.000000e-02 : f32
    %192 = vector.broadcast %cst_85 : f32 to vector<1x128xf32>
    %193 = arith.mulf %192, %191 : vector<1x128xf32>
    %cst_86 = arith.constant 3.500000e+01 : f32
    %194 = vector.broadcast %cst_86 : f32 to vector<1x128xf32>
    %195 = arith.addf %120, %194 : vector<1x128xf32>
    %cst_87 = arith.constant 0.000000e+00 : f32
    %196 = vector.broadcast %cst_87 : f32 to vector<1x128xf32>
    %197 = arith.subf %196, %195 : vector<1x128xf32>
    %cst_88 = arith.constant 1.000000e+01 : f32
    %198 = vector.broadcast %cst_88 : f32 to vector<1x128xf32>
    %199 = arith.divf %197, %198 : vector<1x128xf32>
    %200 = math.exp %199 : vector<1x128xf32>
    %cst_89 = arith.constant 1.000000e+00 : f32
    %201 = vector.broadcast %cst_89 : f32 to vector<1x128xf32>
    %202 = arith.addf %201, %200 : vector<1x128xf32>
    %cst_90 = arith.constant 1.000000e+00 : f32
    %203 = vector.broadcast %cst_90 : f32 to vector<1x128xf32>
    %204 = arith.divf %203, %202 : vector<1x128xf32>
    %cst_91 = arith.constant 1.000000e+00 : f32
    %205 = vector.broadcast %cst_91 : f32 to vector<1x128xf32>
    %206 = arith.subf %205, %95 : vector<1x128xf32>
    %207 = arith.mulf %152, %206 : vector<1x128xf32>
    %208 = arith.mulf %161, %95 : vector<1x128xf32>
    %209 = arith.subf %207, %208 : vector<1x128xf32>
    %cst_92 = arith.constant 0.00999999977 : f32
    %210 = vector.broadcast %cst_92 : f32 to vector<1x128xf32>
    %211 = arith.mulf %210, %209 : vector<1x128xf32>
    %212 = arith.addf %95, %211 : vector<1x128xf32>
    %cst_93 = arith.constant 1.000000e+00 : f32
    %213 = vector.broadcast %cst_93 : f32 to vector<1x128xf32>
    %214 = arith.subf %213, %103 : vector<1x128xf32>
    %215 = arith.mulf %175, %214 : vector<1x128xf32>
    %216 = arith.mulf %184, %103 : vector<1x128xf32>
    %217 = arith.subf %215, %216 : vector<1x128xf32>
    %cst_94 = arith.constant 0.00999999977 : f32
    %218 = vector.broadcast %cst_94 : f32 to vector<1x128xf32>
    %219 = arith.mulf %218, %217 : vector<1x128xf32>
    %220 = arith.addf %103, %219 : vector<1x128xf32>
    %cst_95 = arith.constant 1.000000e+00 : f32
    %221 = vector.broadcast %cst_95 : f32 to vector<1x128xf32>
    %222 = arith.subf %221, %111 : vector<1x128xf32>
    %223 = arith.mulf %193, %222 : vector<1x128xf32>
    %224 = arith.mulf %204, %111 : vector<1x128xf32>
    %225 = arith.subf %223, %224 : vector<1x128xf32>
    %cst_96 = arith.constant 0.00999999977 : f32
    %226 = vector.broadcast %cst_96 : f32 to vector<1x128xf32>
    %227 = arith.mulf %226, %225 : vector<1x128xf32>
    %228 = arith.addf %111, %227 : vector<1x128xf32>
    %cst_97 = arith.constant 5.000000e-01 : f32
    %229 = vector.broadcast %cst_97 : f32 to vector<1x128xf32>
    %230 = arith.mulf %229, %120 : vector<1x128xf32>
    %231 = arith.index_cast %c1_i32 : i32 to index
    %c0_98 = arith.constant 0 : index
    %232 = vector.load %arg10[%231, %c0_98] : memref<8x128xf32, #tpu.memory_space<vmem>>, vector<1x128xf32>
    %233 = arith.addf %230, %232 : vector<1x128xf32>
    %cst_99 = arith.constant 1.000000e+00 : f32
    %234 = vector.broadcast %cst_99 : f32 to vector<1x128xf32>
    %235 = arith.cmpf ogt, %233, %234 : vector<1x128xf32>
    %cst_100 = arith.constant 0.000000e+00 : f32
    %236 = vector.broadcast %cst_100 : f32 to vector<1x128xf32>
    %237 = arith.select %235, %236, %233 : vector<1x128xi1>, vector<1x128xf32>
    %238 = arith.truncf %237 : vector<1x128xf32> to vector<1x128xbf16>
    %cst_101 = arith.constant dense<0.000000e+00> : vector<1x128xf32>
    %239 = tpu.matmul %238, %13, %cst_101 {dimension_numbers = #tpu.dot_dimension_numbers<[1], [0], [0], [1], [0, 0, 1, 1], [], []>} : vector<1x128xbf16>, vector<128x128xbf16>, vector<1x128xf32> -> vector<1x128xf32>
    %240 = arith.addf %239, %14 : vector<1x128xf32>
    %241 = arith.negf %240 : vector<1x128xf32>
    %242 = math.exp %241 : vector<1x128xf32>
    %cst_102 = arith.constant 1.000000e+00 : f32
    %243 = vector.broadcast %cst_102 : f32 to vector<1x128xf32>
    %244 = arith.addf %243, %242 : vector<1x128xf32>
    %245 = arith.divf %243, %244 : vector<1x128xf32>
    %246 = arith.truncf %245 : vector<1x128xf32> to vector<1x128xbf16>
    %cst_103 = arith.constant dense<0.000000e+00> : vector<1x128xf32>
    %247 = tpu.matmul %246, %15, %cst_103 {dimension_numbers = #tpu.dot_dimension_numbers<[1], [0], [0], [1], [0, 0, 1, 1], [], []>} : vector<1x128xbf16>, vector<128x128xbf16>, vector<1x128xf32> -> vector<1x128xf32>
    %248 = arith.addf %247, %16 : vector<1x128xf32>
    %249 = arith.negf %248 : vector<1x128xf32>
    %250 = math.exp %249 : vector<1x128xf32>
    %cst_104 = arith.constant 1.000000e+00 : f32
    %251 = vector.broadcast %cst_104 : f32 to vector<1x128xf32>
    %252 = arith.addf %251, %250 : vector<1x128xf32>
    %253 = arith.divf %251, %252 : vector<1x128xf32>
    %254 = arith.index_cast %c1_i32 : i32 to index
    %c0_105 = arith.constant 0 : index
    %255 = vector.load %arg8[%254, %c0_105] : memref<8x128xf32, #tpu.memory_space<vmem>>, vector<1x128xf32>
    tpu.vector_store %arg8[%254, %c0_105], %253 {strides = array<i32>} : memref<8x128xf32, #tpu.memory_space<vmem>>, vector<1x128xf32>,
    %c2_i32 = arith.constant 2 : i32
    %cst_106 = arith.constant 5.500000e+01 : f32
    %256 = vector.broadcast %cst_106 : f32 to vector<1x128xf32>
    %257 = arith.addf %237, %256 : vector<1x128xf32>
    %cst_107 = arith.constant 0.00999999977 : f32
    %258 = vector.broadcast %cst_107 : f32 to vector<1x128xf32>
    %259 = arith.mulf %258, %257 : vector<1x128xf32>
    %cst_108 = arith.constant 5.500000e+01 : f32
    %260 = vector.broadcast %cst_108 : f32 to vector<1x128xf32>
    %261 = arith.addf %237, %260 : vector<1x128xf32>
    %cst_109 = arith.constant 0.000000e+00 : f32
    %262 = vector.broadcast %cst_109 : f32 to vector<1x128xf32>
    %263 = arith.subf %262, %261 : vector<1x128xf32>
    %cst_110 = arith.constant 1.000000e+01 : f32
    %264 = vector.broadcast %cst_110 : f32 to vector<1x128xf32>
    %265 = arith.divf %263, %264 : vector<1x128xf32>
    %266 = math.exp %265 : vector<1x128xf32>
    %cst_111 = arith.constant 1.000000e+00 : f32
    %267 = vector.broadcast %cst_111 : f32 to vector<1x128xf32>
    %268 = arith.subf %267, %266 : vector<1x128xf32>
    %269 = arith.divf %259, %268 : vector<1x128xf32>
    %cst_112 = arith.constant 6.500000e+01 : f32
    %270 = vector.broadcast %cst_112 : f32 to vector<1x128xf32>
    %271 = arith.addf %237, %270 : vector<1x128xf32>
    %cst_113 = arith.constant 0.000000e+00 : f32
    %272 = vector.broadcast %cst_113 : f32 to vector<1x128xf32>
    %273 = arith.subf %272, %271 : vector<1x128xf32>
    %cst_114 = arith.constant 8.000000e+01 : f32
    %274 = vector.broadcast %cst_114 : f32 to vector<1x128xf32>
    %275 = arith.divf %273, %274 : vector<1x128xf32>
    %276 = math.exp %275 : vector<1x128xf32>
    %cst_115 = arith.constant 1.250000e-01 : f32
    %277 = vector.broadcast %cst_115 : f32 to vector<1x128xf32>
    %278 = arith.mulf %277, %276 : vector<1x128xf32>
    %cst_116 = arith.constant 4.000000e+01 : f32
    %279 = vector.broadcast %cst_116 : f32 to vector<1x128xf32>
    %280 = arith.addf %237, %279 : vector<1x128xf32>
    %cst_117 = arith.constant 1.000000e-01 : f32
    %281 = vector.broadcast %cst_117 : f32 to vector<1x128xf32>
    %282 = arith.mulf %281, %280 : vector<1x128xf32>
    %cst_118 = arith.constant 4.000000e+01 : f32
    %283 = vector.broadcast %cst_118 : f32 to vector<1x128xf32>
    %284 = arith.addf %237, %283 : vector<1x128xf32>
    %cst_119 = arith.constant 0.000000e+00 : f32
    %285 = vector.broadcast %cst_119 : f32 to vector<1x128xf32>
    %286 = arith.subf %285, %284 : vector<1x128xf32>
    %cst_120 = arith.constant 1.000000e+01 : f32
    %287 = vector.broadcast %cst_120 : f32 to vector<1x128xf32>
    %288 = arith.divf %286, %287 : vector<1x128xf32>
    %289 = math.exp %288 : vector<1x128xf32>
    %cst_121 = arith.constant 1.000000e+00 : f32
    %290 = vector.broadcast %cst_121 : f32 to vector<1x128xf32>
    %291 = arith.subf %290, %289 : vector<1x128xf32>
    %292 = arith.divf %282, %291 : vector<1x128xf32>
    %cst_122 = arith.constant 6.500000e+01 : f32
    %293 = vector.broadcast %cst_122 : f32 to vector<1x128xf32>
    %294 = arith.addf %237, %293 : vector<1x128xf32>
    %cst_123 = arith.constant 0.000000e+00 : f32
    %295 = vector.broadcast %cst_123 : f32 to vector<1x128xf32>
    %296 = arith.subf %295, %294 : vector<1x128xf32>
    %cst_124 = arith.constant 1.800000e+01 : f32
    %297 = vector.broadcast %cst_124 : f32 to vector<1x128xf32>
    %298 = arith.divf %296, %297 : vector<1x128xf32>
    %299 = math.exp %298 : vector<1x128xf32>
    %cst_125 = arith.constant 4.000000e+00 : f32
    %300 = vector.broadcast %cst_125 : f32 to vector<1x128xf32>
    %301 = arith.mulf %300, %299 : vector<1x128xf32>
    %cst_126 = arith.constant 6.500000e+01 : f32
    %302 = vector.broadcast %cst_126 : f32 to vector<1x128xf32>
    %303 = arith.addf %237, %302 : vector<1x128xf32>
    %cst_127 = arith.constant 0.000000e+00 : f32
    %304 = vector.broadcast %cst_127 : f32 to vector<1x128xf32>
    %305 = arith.subf %304, %303 : vector<1x128xf32>
    %cst_128 = arith.constant 2.000000e+01 : f32
    %306 = vector.broadcast %cst_128 : f32 to vector<1x128xf32>
    %307 = arith.divf %305, %306 : vector<1x128xf32>
    %308 = math.exp %307 : vector<1x128xf32>
    %cst_129 = arith.constant 7.000000e-02 : f32
    %309 = vector.broadcast %cst_129 : f32 to vector<1x128xf32>
    %310 = arith.mulf %309, %308 : vector<1x128xf32>
    %cst_130 = arith.constant 3.500000e+01 : f32
    %311 = vector.broadcast %cst_130 : f32 to vector<1x128xf32>
    %312 = arith.addf %237, %311 : vector<1x128xf32>
    %cst_131 = arith.constant 0.000000e+00 : f32
    %313 = vector.broadcast %cst_131 : f32 to vector<1x128xf32>
    %314 = arith.subf %313, %312 : vector<1x128xf32>
    %cst_132 = arith.constant 1.000000e+01 : f32
    %315 = vector.broadcast %cst_132 : f32 to vector<1x128xf32>
    %316 = arith.divf %314, %315 : vector<1x128xf32>
    %317 = math.exp %316 : vector<1x128xf32>
    %cst_133 = arith.constant 1.000000e+00 : f32
    %318 = vector.broadcast %cst_133 : f32 to vector<1x128xf32>
    %319 = arith.addf %318, %317 : vector<1x128xf32>
    %cst_134 = arith.constant 1.000000e+00 : f32
    %320 = vector.broadcast %cst_134 : f32 to vector<1x128xf32>
    %321 = arith.divf %320, %319 : vector<1x128xf32>
    %cst_135 = arith.constant 1.000000e+00 : f32
    %322 = vector.broadcast %cst_135 : f32 to vector<1x128xf32>
    %323 = arith.subf %322, %212 : vector<1x128xf32>
    %324 = arith.mulf %269, %323 : vector<1x128xf32>
    %325 = arith.mulf %278, %212 : vector<1x128xf32>
    %326 = arith.subf %324, %325 : vector<1x128xf32>
    %cst_136 = arith.constant 0.00999999977 : f32
    %327 = vector.broadcast %cst_136 : f32 to vector<1x128xf32>
    %328 = arith.mulf %327, %326 : vector<1x128xf32>
    %329 = arith.addf %212, %328 : vector<1x128xf32>
    %cst_137 = arith.constant 1.000000e+00 : f32
    %330 = vector.broadcast %cst_137 : f32 to vector<1x128xf32>
    %331 = arith.subf %330, %220 : vector<1x128xf32>
    %332 = arith.mulf %292, %331 : vector<1x128xf32>
    %333 = arith.mulf %301, %220 : vector<1x128xf32>
    %334 = arith.subf %332, %333 : vector<1x128xf32>
    %cst_138 = arith.constant 0.00999999977 : f32
    %335 = vector.broadcast %cst_138 : f32 to vector<1x128xf32>
    %336 = arith.mulf %335, %334 : vector<1x128xf32>
    %337 = arith.addf %220, %336 : vector<1x128xf32>
    %cst_139 = arith.constant 1.000000e+00 : f32
    %338 = vector.broadcast %cst_139 : f32 to vector<1x128xf32>
    %339 = arith.subf %338, %228 : vector<1x128xf32>
    %340 = arith.mulf %310, %339 : vector<1x128xf32>
    %341 = arith.mulf %321, %228 : vector<1x128xf32>
    %342 = arith.subf %340, %341 : vector<1x128xf32>
    %cst_140 = arith.constant 0.00999999977 : f32
    %343 = vector.broadcast %cst_140 : f32 to vector<1x128xf32>
    %344 = arith.mulf %343, %342 : vector<1x128xf32>
    %345 = arith.addf %228, %344 : vector<1x128xf32>
    %cst_141 = arith.constant 5.000000e-01 : f32
    %346 = vector.broadcast %cst_141 : f32 to vector<1x128xf32>
    %347 = arith.mulf %346, %237 : vector<1x128xf32>
    %348 = arith.index_cast %c2_i32 : i32 to index
    %c0_142 = arith.constant 0 : index
    %349 = vector.load %arg10[%348, %c0_142] : memref<8x128xf32, #tpu.memory_space<vmem>>, vector<1x128xf32>
    %350 = arith.addf %347, %349 : vector<1x128xf32>
    %cst_143 = arith.constant 1.000000e+00 : f32
    %351 = vector.broadcast %cst_143 : f32 to vector<1x128xf32>
    %352 = arith.cmpf ogt, %350, %351 : vector<1x128xf32>
    %cst_144 = arith.constant 0.000000e+00 : f32
    %353 = vector.broadcast %cst_144 : f32 to vector<1x128xf32>
    %354 = arith.select %352, %353, %350 : vector<1x128xi1>, vector<1x128xf32>
    %355 = arith.truncf %354 : vector<1x128xf32> to vector<1x128xbf16>
    %cst_145 = arith.constant dense<0.000000e+00> : vector<1x128xf32>
    %356 = tpu.matmul %355, %13, %cst_145 {dimension_numbers = #tpu.dot_dimension_numbers<[1], [0], [0], [1], [0, 0, 1, 1], [], []>} : vector<1x128xbf16>, vector<128x128xbf16>, vector<1x128xf32> -> vector<1x128xf32>
    %357 = arith.addf %356, %14 : vector<1x128xf32>
    %358 = arith.negf %357 : vector<1x128xf32>
    %359 = math.exp %358 : vector<1x128xf32>
    %cst_146 = arith.constant 1.000000e+00 : f32
    %360 = vector.broadcast %cst_146 : f32 to vector<1x128xf32>
    %361 = arith.addf %360, %359 : vector<1x128xf32>
    %362 = arith.divf %360, %361 : vector<1x128xf32>
    %363 = arith.truncf %362 : vector<1x128xf32> to vector<1x128xbf16>
    %cst_147 = arith.constant dense<0.000000e+00> : vector<1x128xf32>
    %364 = tpu.matmul %363, %15, %cst_147 {dimension_numbers = #tpu.dot_dimension_numbers<[1], [0], [0], [1], [0, 0, 1, 1], [], []>} : vector<1x128xbf16>, vector<128x128xbf16>, vector<1x128xf32> -> vector<1x128xf32>
    %365 = arith.addf %364, %16 : vector<1x128xf32>
    %366 = arith.negf %365 : vector<1x128xf32>
    %367 = math.exp %366 : vector<1x128xf32>
    %cst_148 = arith.constant 1.000000e+00 : f32
    %368 = vector.broadcast %cst_148 : f32 to vector<1x128xf32>
    %369 = arith.addf %368, %367 : vector<1x128xf32>
    %370 = arith.divf %368, %369 : vector<1x128xf32>
    %371 = arith.index_cast %c2_i32 : i32 to index
    %c0_149 = arith.constant 0 : index
    %372 = vector.load %arg8[%371, %c0_149] : memref<8x128xf32, #tpu.memory_space<vmem>>, vector<1x128xf32>
    tpu.vector_store %arg8[%371, %c0_149], %370 {strides = array<i32>} : memref<8x128xf32, #tpu.memory_space<vmem>>, vector<1x128xf32>,
    %c3_i32 = arith.constant 3 : i32
    %cst_150 = arith.constant 5.500000e+01 : f32
    %373 = vector.broadcast %cst_150 : f32 to vector<1x128xf32>
    %374 = arith.addf %354, %373 : vector<1x128xf32>
    %cst_151 = arith.constant 0.00999999977 : f32
    %375 = vector.broadcast %cst_151 : f32 to vector<1x128xf32>
    %376 = arith.mulf %375, %374 : vector<1x128xf32>
    %cst_152 = arith.constant 5.500000e+01 : f32
    %377 = vector.broadcast %cst_152 : f32 to vector<1x128xf32>
    %378 = arith.addf %354, %377 : vector<1x128xf32>
    %cst_153 = arith.constant 0.000000e+00 : f32
    %379 = vector.broadcast %cst_153 : f32 to vector<1x128xf32>
    %380 = arith.subf %379, %378 : vector<1x128xf32>
    %cst_154 = arith.constant 1.000000e+01 : f32
    %381 = vector.broadcast %cst_154 : f32 to vector<1x128xf32>
    %382 = arith.divf %380, %381 : vector<1x128xf32>
    %383 = math.exp %382 : vector<1x128xf32>
    %cst_155 = arith.constant 1.000000e+00 : f32
    %384 = vector.broadcast %cst_155 : f32 to vector<1x128xf32>
    %385 = arith.subf %384, %383 : vector<1x128xf32>
    %386 = arith.divf %376, %385 : vector<1x128xf32>
    %cst_156 = arith.constant 6.500000e+01 : f32
    %387 = vector.broadcast %cst_156 : f32 to vector<1x128xf32>
    %388 = arith.addf %354, %387 : vector<1x128xf32>
    %cst_157 = arith.constant 0.000000e+00 : f32
    %389 = vector.broadcast %cst_157 : f32 to vector<1x128xf32>
    %390 = arith.subf %389, %388 : vector<1x128xf32>
    %cst_158 = arith.constant 8.000000e+01 : f32
    %391 = vector.broadcast %cst_158 : f32 to vector<1x128xf32>
    %392 = arith.divf %390, %391 : vector<1x128xf32>
    %393 = math.exp %392 : vector<1x128xf32>
    %cst_159 = arith.constant 1.250000e-01 : f32
    %394 = vector.broadcast %cst_159 : f32 to vector<1x128xf32>
    %395 = arith.mulf %394, %393 : vector<1x128xf32>
    %cst_160 = arith.constant 4.000000e+01 : f32
    %396 = vector.broadcast %cst_160 : f32 to vector<1x128xf32>
    %397 = arith.addf %354, %396 : vector<1x128xf32>
    %cst_161 = arith.constant 1.000000e-01 : f32
    %398 = vector.broadcast %cst_161 : f32 to vector<1x128xf32>
    %399 = arith.mulf %398, %397 : vector<1x128xf32>
    %cst_162 = arith.constant 4.000000e+01 : f32
    %400 = vector.broadcast %cst_162 : f32 to vector<1x128xf32>
    %401 = arith.addf %354, %400 : vector<1x128xf32>
    %cst_163 = arith.constant 0.000000e+00 : f32
    %402 = vector.broadcast %cst_163 : f32 to vector<1x128xf32>
    %403 = arith.subf %402, %401 : vector<1x128xf32>
    %cst_164 = arith.constant 1.000000e+01 : f32
    %404 = vector.broadcast %cst_164 : f32 to vector<1x128xf32>
    %405 = arith.divf %403, %404 : vector<1x128xf32>
    %406 = math.exp %405 : vector<1x128xf32>
    %cst_165 = arith.constant 1.000000e+00 : f32
    %407 = vector.broadcast %cst_165 : f32 to vector<1x128xf32>
    %408 = arith.subf %407, %406 : vector<1x128xf32>
    %409 = arith.divf %399, %408 : vector<1x128xf32>
    %cst_166 = arith.constant 6.500000e+01 : f32
    %410 = vector.broadcast %cst_166 : f32 to vector<1x128xf32>
    %411 = arith.addf %354, %410 : vector<1x128xf32>
    %cst_167 = arith.constant 0.000000e+00 : f32
    %412 = vector.broadcast %cst_167 : f32 to vector<1x128xf32>
    %413 = arith.subf %412, %411 : vector<1x128xf32>
    %cst_168 = arith.constant 1.800000e+01 : f32
    %414 = vector.broadcast %cst_168 : f32 to vector<1x128xf32>
    %415 = arith.divf %413, %414 : vector<1x128xf32>
    %416 = math.exp %415 : vector<1x128xf32>
    %cst_169 = arith.constant 4.000000e+00 : f32
    %417 = vector.broadcast %cst_169 : f32 to vector<1x128xf32>
    %418 = arith.mulf %417, %416 : vector<1x128xf32>
    %cst_170 = arith.constant 6.500000e+01 : f32
    %419 = vector.broadcast %cst_170 : f32 to vector<1x128xf32>
    %420 = arith.addf %354, %419 : vector<1x128xf32>
    %cst_171 = arith.constant 0.000000e+00 : f32
    %421 = vector.broadcast %cst_171 : f32 to vector<1x128xf32>
    %422 = arith.subf %421, %420 : vector<1x128xf32>
    %cst_172 = arith.constant 2.000000e+01 : f32
    %423 = vector.broadcast %cst_172 : f32 to vector<1x128xf32>
    %424 = arith.divf %422, %423 : vector<1x128xf32>
    %425 = math.exp %424 : vector<1x128xf32>
    %cst_173 = arith.constant 7.000000e-02 : f32
    %426 = vector.broadcast %cst_173 : f32 to vector<1x128xf32>
    %427 = arith.mulf %426, %425 : vector<1x128xf32>
    %cst_174 = arith.constant 3.500000e+01 : f32
    %428 = vector.broadcast %cst_174 : f32 to vector<1x128xf32>
    %429 = arith.addf %354, %428 : vector<1x128xf32>
    %cst_175 = arith.constant 0.000000e+00 : f32
    %430 = vector.broadcast %cst_175 : f32 to vector<1x128xf32>
    %431 = arith.subf %430, %429 : vector<1x128xf32>
    %cst_176 = arith.constant 1.000000e+01 : f32
    %432 = vector.broadcast %cst_176 : f32 to vector<1x128xf32>
    %433 = arith.divf %431, %432 : vector<1x128xf32>
    %434 = math.exp %433 : vector<1x128xf32>
    %cst_177 = arith.constant 1.000000e+00 : f32
    %435 = vector.broadcast %cst_177 : f32 to vector<1x128xf32>
    %436 = arith.addf %435, %434 : vector<1x128xf32>
    %cst_178 = arith.constant 1.000000e+00 : f32
    %437 = vector.broadcast %cst_178 : f32 to vector<1x128xf32>
    %438 = arith.divf %437, %436 : vector<1x128xf32>
    %cst_179 = arith.constant 1.000000e+00 : f32
    %439 = vector.broadcast %cst_179 : f32 to vector<1x128xf32>
    %440 = arith.subf %439, %329 : vector<1x128xf32>
    %441 = arith.mulf %386, %440 : vector<1x128xf32>
    %442 = arith.mulf %395, %329 : vector<1x128xf32>
    %443 = arith.subf %441, %442 : vector<1x128xf32>
    %cst_180 = arith.constant 0.00999999977 : f32
    %444 = vector.broadcast %cst_180 : f32 to vector<1x128xf32>
    %445 = arith.mulf %444, %443 : vector<1x128xf32>
    %446 = arith.addf %329, %445 : vector<1x128xf32>
    %cst_181 = arith.constant 1.000000e+00 : f32
    %447 = vector.broadcast %cst_181 : f32 to vector<1x128xf32>
    %448 = arith.subf %447, %337 : vector<1x128xf32>
    %449 = arith.mulf %409, %448 : vector<1x128xf32>
    %450 = arith.mulf %418, %337 : vector<1x128xf32>
    %451 = arith.subf %449, %450 : vector<1x128xf32>
    %cst_182 = arith.constant 0.00999999977 : f32
    %452 = vector.broadcast %cst_182 : f32 to vector<1x128xf32>
    %453 = arith.mulf %452, %451 : vector<1x128xf32>
    %454 = arith.addf %337, %453 : vector<1x128xf32>
    %cst_183 = arith.constant 1.000000e+00 : f32
    %455 = vector.broadcast %cst_183 : f32 to vector<1x128xf32>
    %456 = arith.subf %455, %345 : vector<1x128xf32>
    %457 = arith.mulf %427, %456 : vector<1x128xf32>
    %458 = arith.mulf %438, %345 : vector<1x128xf32>
    %459 = arith.subf %457, %458 : vector<1x128xf32>
    %cst_184 = arith.constant 0.00999999977 : f32
    %460 = vector.broadcast %cst_184 : f32 to vector<1x128xf32>
    %461 = arith.mulf %460, %459 : vector<1x128xf32>
    %462 = arith.addf %345, %461 : vector<1x128xf32>
    %cst_185 = arith.constant 5.000000e-01 : f32
    %463 = vector.broadcast %cst_185 : f32 to vector<1x128xf32>
    %464 = arith.mulf %463, %354 : vector<1x128xf32>
    %465 = arith.index_cast %c3_i32 : i32 to index
    %c0_186 = arith.constant 0 : index
    %466 = vector.load %arg10[%465, %c0_186] : memref<8x128xf32, #tpu.memory_space<vmem>>, vector<1x128xf32>
    %467 = arith.addf %464, %466 : vector<1x128xf32>
    %cst_187 = arith.constant 1.000000e+00 : f32
    %468 = vector.broadcast %cst_187 : f32 to vector<1x128xf32>
    %469 = arith.cmpf ogt, %467, %468 : vector<1x128xf32>
    %cst_188 = arith.constant 0.000000e+00 : f32
    %470 = vector.broadcast %cst_188 : f32 to vector<1x128xf32>
    %471 = arith.select %469, %470, %467 : vector<1x128xi1>, vector<1x128xf32>
    %472 = arith.truncf %471 : vector<1x128xf32> to vector<1x128xbf16>
    %cst_189 = arith.constant dense<0.000000e+00> : vector<1x128xf32>
    %473 = tpu.matmul %472, %13, %cst_189 {dimension_numbers = #tpu.dot_dimension_numbers<[1], [0], [0], [1], [0, 0, 1, 1], [], []>} : vector<1x128xbf16>, vector<128x128xbf16>, vector<1x128xf32> -> vector<1x128xf32>
    %474 = arith.addf %473, %14 : vector<1x128xf32>
    %475 = arith.negf %474 : vector<1x128xf32>
    %476 = math.exp %475 : vector<1x128xf32>
    %cst_190 = arith.constant 1.000000e+00 : f32
    %477 = vector.broadcast %cst_190 : f32 to vector<1x128xf32>
    %478 = arith.addf %477, %476 : vector<1x128xf32>
    %479 = arith.divf %477, %478 : vector<1x128xf32>
    %480 = arith.truncf %479 : vector<1x128xf32> to vector<1x128xbf16>
    %cst_191 = arith.constant dense<0.000000e+00> : vector<1x128xf32>
    %481 = tpu.matmul %480, %15, %cst_191 {dimension_numbers = #tpu.dot_dimension_numbers<[1], [0], [0], [1], [0, 0, 1, 1], [], []>} : vector<1x128xbf16>, vector<128x128xbf16>, vector<1x128xf32> -> vector<1x128xf32>
    %482 = arith.addf %481, %16 : vector<1x128xf32>
    %483 = arith.negf %482 : vector<1x128xf32>
    %484 = math.exp %483 : vector<1x128xf32>
    %cst_192 = arith.constant 1.000000e+00 : f32
    %485 = vector.broadcast %cst_192 : f32 to vector<1x128xf32>
    %486 = arith.addf %485, %484 : vector<1x128xf32>
    %487 = arith.divf %485, %486 : vector<1x128xf32>
    %488 = arith.index_cast %c3_i32 : i32 to index
    %c0_193 = arith.constant 0 : index
    %489 = vector.load %arg8[%488, %c0_193] : memref<8x128xf32, #tpu.memory_space<vmem>>, vector<1x128xf32>
    tpu.vector_store %arg8[%488, %c0_193], %487 {strides = array<i32>} : memref<8x128xf32, #tpu.memory_space<vmem>>, vector<1x128xf32>,
    %c4_i32 = arith.constant 4 : i32
    %cst_194 = arith.constant 5.500000e+01 : f32
    %490 = vector.broadcast %cst_194 : f32 to vector<1x128xf32>
    %491 = arith.addf %471, %490 : vector<1x128xf32>
    %cst_195 = arith.constant 0.00999999977 : f32
    %492 = vector.broadcast %cst_195 : f32 to vector<1x128xf32>
    %493 = arith.mulf %492, %491 : vector<1x128xf32>
    %cst_196 = arith.constant 5.500000e+01 : f32
    %494 = vector.broadcast %cst_196 : f32 to vector<1x128xf32>
    %495 = arith.addf %471, %494 : vector<1x128xf32>
    %cst_197 = arith.constant 0.000000e+00 : f32
    %496 = vector.broadcast %cst_197 : f32 to vector<1x128xf32>
    %497 = arith.subf %496, %495 : vector<1x128xf32>
    %cst_198 = arith.constant 1.000000e+01 : f32
    %498 = vector.broadcast %cst_198 : f32 to vector<1x128xf32>
    %499 = arith.divf %497, %498 : vector<1x128xf32>
    %500 = math.exp %499 : vector<1x128xf32>
    %cst_199 = arith.constant 1.000000e+00 : f32
    %501 = vector.broadcast %cst_199 : f32 to vector<1x128xf32>
    %502 = arith.subf %501, %500 : vector<1x128xf32>
    %503 = arith.divf %493, %502 : vector<1x128xf32>
    %cst_200 = arith.constant 6.500000e+01 : f32
    %504 = vector.broadcast %cst_200 : f32 to vector<1x128xf32>
    %505 = arith.addf %471, %504 : vector<1x128xf32>
    %cst_201 = arith.constant 0.000000e+00 : f32
    %506 = vector.broadcast %cst_201 : f32 to vector<1x128xf32>
    %507 = arith.subf %506, %505 : vector<1x128xf32>
    %cst_202 = arith.constant 8.000000e+01 : f32
    %508 = vector.broadcast %cst_202 : f32 to vector<1x128xf32>
    %509 = arith.divf %507, %508 : vector<1x128xf32>
    %510 = math.exp %509 : vector<1x128xf32>
    %cst_203 = arith.constant 1.250000e-01 : f32
    %511 = vector.broadcast %cst_203 : f32 to vector<1x128xf32>
    %512 = arith.mulf %511, %510 : vector<1x128xf32>
    %cst_204 = arith.constant 4.000000e+01 : f32
    %513 = vector.broadcast %cst_204 : f32 to vector<1x128xf32>
    %514 = arith.addf %471, %513 : vector<1x128xf32>
    %cst_205 = arith.constant 1.000000e-01 : f32
    %515 = vector.broadcast %cst_205 : f32 to vector<1x128xf32>
    %516 = arith.mulf %515, %514 : vector<1x128xf32>
    %cst_206 = arith.constant 4.000000e+01 : f32
    %517 = vector.broadcast %cst_206 : f32 to vector<1x128xf32>
    %518 = arith.addf %471, %517 : vector<1x128xf32>
    %cst_207 = arith.constant 0.000000e+00 : f32
    %519 = vector.broadcast %cst_207 : f32 to vector<1x128xf32>
    %520 = arith.subf %519, %518 : vector<1x128xf32>
    %cst_208 = arith.constant 1.000000e+01 : f32
    %521 = vector.broadcast %cst_208 : f32 to vector<1x128xf32>
    %522 = arith.divf %520, %521 : vector<1x128xf32>
    %523 = math.exp %522 : vector<1x128xf32>
    %cst_209 = arith.constant 1.000000e+00 : f32
    %524 = vector.broadcast %cst_209 : f32 to vector<1x128xf32>
    %525 = arith.subf %524, %523 : vector<1x128xf32>
    %526 = arith.divf %516, %525 : vector<1x128xf32>
    %cst_210 = arith.constant 6.500000e+01 : f32
    %527 = vector.broadcast %cst_210 : f32 to vector<1x128xf32>
    %528 = arith.addf %471, %527 : vector<1x128xf32>
    %cst_211 = arith.constant 0.000000e+00 : f32
    %529 = vector.broadcast %cst_211 : f32 to vector<1x128xf32>
    %530 = arith.subf %529, %528 : vector<1x128xf32>
    %cst_212 = arith.constant 1.800000e+01 : f32
    %531 = vector.broadcast %cst_212 : f32 to vector<1x128xf32>
    %532 = arith.divf %530, %531 : vector<1x128xf32>
    %533 = math.exp %532 : vector<1x128xf32>
    %cst_213 = arith.constant 4.000000e+00 : f32
    %534 = vector.broadcast %cst_213 : f32 to vector<1x128xf32>
    %535 = arith.mulf %534, %533 : vector<1x128xf32>
    %cst_214 = arith.constant 6.500000e+01 : f32
    %536 = vector.broadcast %cst_214 : f32 to vector<1x128xf32>
    %537 = arith.addf %471, %536 : vector<1x128xf32>
    %cst_215 = arith.constant 0.000000e+00 : f32
    %538 = vector.broadcast %cst_215 : f32 to vector<1x128xf32>
    %539 = arith.subf %538, %537 : vector<1x128xf32>
    %cst_216 = arith.constant 2.000000e+01 : f32
    %540 = vector.broadcast %cst_216 : f32 to vector<1x128xf32>
    %541 = arith.divf %539, %540 : vector<1x128xf32>
    %542 = math.exp %541 : vector<1x128xf32>
    %cst_217 = arith.constant 7.000000e-02 : f32
    %543 = vector.broadcast %cst_217 : f32 to vector<1x128xf32>
    %544 = arith.mulf %543, %542 : vector<1x128xf32>
    %cst_218 = arith.constant 3.500000e+01 : f32
    %545 = vector.broadcast %cst_218 : f32 to vector<1x128xf32>
    %546 = arith.addf %471, %545 : vector<1x128xf32>
    %cst_219 = arith.constant 0.000000e+00 : f32
    %547 = vector.broadcast %cst_219 : f32 to vector<1x128xf32>
    %548 = arith.subf %547, %546 : vector<1x128xf32>
    %cst_220 = arith.constant 1.000000e+01 : f32
    %549 = vector.broadcast %cst_220 : f32 to vector<1x128xf32>
    %550 = arith.divf %548, %549 : vector<1x128xf32>
    %551 = math.exp %550 : vector<1x128xf32>
    %cst_221 = arith.constant 1.000000e+00 : f32
    %552 = vector.broadcast %cst_221 : f32 to vector<1x128xf32>
    %553 = arith.addf %552, %551 : vector<1x128xf32>
    %cst_222 = arith.constant 1.000000e+00 : f32
    %554 = vector.broadcast %cst_222 : f32 to vector<1x128xf32>
    %555 = arith.divf %554, %553 : vector<1x128xf32>
    %cst_223 = arith.constant 1.000000e+00 : f32
    %556 = vector.broadcast %cst_223 : f32 to vector<1x128xf32>
    %557 = arith.subf %556, %446 : vector<1x128xf32>
    %558 = arith.mulf %503, %557 : vector<1x128xf32>
    %559 = arith.mulf %512, %446 : vector<1x128xf32>
    %560 = arith.subf %558, %559 : vector<1x128xf32>
    %cst_224 = arith.constant 0.00999999977 : f32
    %561 = vector.broadcast %cst_224 : f32 to vector<1x128xf32>
    %562 = arith.mulf %561, %560 : vector<1x128xf32>
    %563 = arith.addf %446, %562 : vector<1x128xf32>
    %cst_225 = arith.constant 1.000000e+00 : f32
    %564 = vector.broadcast %cst_225 : f32 to vector<1x128xf32>
    %565 = arith.subf %564, %454 : vector<1x128xf32>
    %566 = arith.mulf %526, %565 : vector<1x128xf32>
    %567 = arith.mulf %535, %454 : vector<1x128xf32>
    %568 = arith.subf %566, %567 : vector<1x128xf32>
    %cst_226 = arith.constant 0.00999999977 : f32
    %569 = vector.broadcast %cst_226 : f32 to vector<1x128xf32>
    %570 = arith.mulf %569, %568 : vector<1x128xf32>
    %571 = arith.addf %454, %570 : vector<1x128xf32>
    %cst_227 = arith.constant 1.000000e+00 : f32
    %572 = vector.broadcast %cst_227 : f32 to vector<1x128xf32>
    %573 = arith.subf %572, %462 : vector<1x128xf32>
    %574 = arith.mulf %544, %573 : vector<1x128xf32>
    %575 = arith.mulf %555, %462 : vector<1x128xf32>
    %576 = arith.subf %574, %575 : vector<1x128xf32>
    %cst_228 = arith.constant 0.00999999977 : f32
    %577 = vector.broadcast %cst_228 : f32 to vector<1x128xf32>
    %578 = arith.mulf %577, %576 : vector<1x128xf32>
    %579 = arith.addf %462, %578 : vector<1x128xf32>
    %cst_229 = arith.constant 5.000000e-01 : f32
    %580 = vector.broadcast %cst_229 : f32 to vector<1x128xf32>
    %581 = arith.mulf %580, %471 : vector<1x128xf32>
    %582 = arith.index_cast %c4_i32 : i32 to index
    %c0_230 = arith.constant 0 : index
    %583 = vector.load %arg10[%582, %c0_230] : memref<8x128xf32, #tpu.memory_space<vmem>>, vector<1x128xf32>
    %584 = arith.addf %581, %583 : vector<1x128xf32>
    %cst_231 = arith.constant 1.000000e+00 : f32
    %585 = vector.broadcast %cst_231 : f32 to vector<1x128xf32>
    %586 = arith.cmpf ogt, %584, %585 : vector<1x128xf32>
    %cst_232 = arith.constant 0.000000e+00 : f32
    %587 = vector.broadcast %cst_232 : f32 to vector<1x128xf32>
    %588 = arith.select %586, %587, %584 : vector<1x128xi1>, vector<1x128xf32>
    %589 = arith.truncf %588 : vector<1x128xf32> to vector<1x128xbf16>
    %cst_233 = arith.constant dense<0.000000e+00> : vector<1x128xf32>
    %590 = tpu.matmul %589, %13, %cst_233 {dimension_numbers = #tpu.dot_dimension_numbers<[1], [0], [0], [1], [0, 0, 1, 1], [], []>} : vector<1x128xbf16>, vector<128x128xbf16>, vector<1x128xf32> -> vector<1x128xf32>
    %591 = arith.addf %590, %14 : vector<1x128xf32>
    %592 = arith.negf %591 : vector<1x128xf32>
    %593 = math.exp %592 : vector<1x128xf32>
    %cst_234 = arith.constant 1.000000e+00 : f32
    %594 = vector.broadcast %cst_234 : f32 to vector<1x128xf32>
    %595 = arith.addf %594, %593 : vector<1x128xf32>
    %596 = arith.divf %594, %595 : vector<1x128xf32>
    %597 = arith.truncf %596 : vector<1x128xf32> to vector<1x128xbf16>
    %cst_235 = arith.constant dense<0.000000e+00> : vector<1x128xf32>
    %598 = tpu.matmul %597, %15, %cst_235 {dimension_numbers = #tpu.dot_dimension_numbers<[1], [0], [0], [1], [0, 0, 1, 1], [], []>} : vector<1x128xbf16>, vector<128x128xbf16>, vector<1x128xf32> -> vector<1x128xf32>
    %599 = arith.addf %598, %16 : vector<1x128xf32>
    %600 = arith.negf %599 : vector<1x128xf32>
    %601 = math.exp %600 : vector<1x128xf32>
    %cst_236 = arith.constant 1.000000e+00 : f32
    %602 = vector.broadcast %cst_236 : f32 to vector<1x128xf32>
    %603 = arith.addf %602, %601 : vector<1x128xf32>
    %604 = arith.divf %602, %603 : vector<1x128xf32>
    %605 = arith.index_cast %c4_i32 : i32 to index
    %c0_237 = arith.constant 0 : index
    %606 = vector.load %arg8[%605, %c0_237] : memref<8x128xf32, #tpu.memory_space<vmem>>, vector<1x128xf32>
    tpu.vector_store %arg8[%605, %c0_237], %604 {strides = array<i32>} : memref<8x128xf32, #tpu.memory_space<vmem>>, vector<1x128xf32>,
    %c5_i32 = arith.constant 5 : i32
    %cst_238 = arith.constant 5.500000e+01 : f32
    %607 = vector.broadcast %cst_238 : f32 to vector<1x128xf32>
    %608 = arith.addf %588, %607 : vector<1x128xf32>
    %cst_239 = arith.constant 0.00999999977 : f32
    %609 = vector.broadcast %cst_239 : f32 to vector<1x128xf32>
    %610 = arith.mulf %609, %608 : vector<1x128xf32>
    %cst_240 = arith.constant 5.500000e+01 : f32
    %611 = vector.broadcast %cst_240 : f32 to vector<1x128xf32>
    %612 = arith.addf %588, %611 : vector<1x128xf32>
    %cst_241 = arith.constant 0.000000e+00 : f32
    %613 = vector.broadcast %cst_241 : f32 to vector<1x128xf32>
    %614 = arith.subf %613, %612 : vector<1x128xf32>
    %cst_242 = arith.constant 1.000000e+01 : f32
    %615 = vector.broadcast %cst_242 : f32 to vector<1x128xf32>
    %616 = arith.divf %614, %615 : vector<1x128xf32>
    %617 = math.exp %616 : vector<1x128xf32>
    %cst_243 = arith.constant 1.000000e+00 : f32
    %618 = vector.broadcast %cst_243 : f32 to vector<1x128xf32>
    %619 = arith.subf %618, %617 : vector<1x128xf32>
    %620 = arith.divf %610, %619 : vector<1x128xf32>
    %cst_244 = arith.constant 6.500000e+01 : f32
    %621 = vector.broadcast %cst_244 : f32 to vector<1x128xf32>
    %622 = arith.addf %588, %621 : vector<1x128xf32>
    %cst_245 = arith.constant 0.000000e+00 : f32
    %623 = vector.broadcast %cst_245 : f32 to vector<1x128xf32>
    %624 = arith.subf %623, %622 : vector<1x128xf32>
    %cst_246 = arith.constant 8.000000e+01 : f32
    %625 = vector.broadcast %cst_246 : f32 to vector<1x128xf32>
    %626 = arith.divf %624, %625 : vector<1x128xf32>
    %627 = math.exp %626 : vector<1x128xf32>
    %cst_247 = arith.constant 1.250000e-01 : f32
    %628 = vector.broadcast %cst_247 : f32 to vector<1x128xf32>
    %629 = arith.mulf %628, %627 : vector<1x128xf32>
    %cst_248 = arith.constant 4.000000e+01 : f32
    %630 = vector.broadcast %cst_248 : f32 to vector<1x128xf32>
    %631 = arith.addf %588, %630 : vector<1x128xf32>
    %cst_249 = arith.constant 1.000000e-01 : f32
    %632 = vector.broadcast %cst_249 : f32 to vector<1x128xf32>
    %633 = arith.mulf %632, %631 : vector<1x128xf32>
    %cst_250 = arith.constant 4.000000e+01 : f32
    %634 = vector.broadcast %cst_250 : f32 to vector<1x128xf32>
    %635 = arith.addf %588, %634 : vector<1x128xf32>
    %cst_251 = arith.constant 0.000000e+00 : f32
    %636 = vector.broadcast %cst_251 : f32 to vector<1x128xf32>
    %637 = arith.subf %636, %635 : vector<1x128xf32>
    %cst_252 = arith.constant 1.000000e+01 : f32
    %638 = vector.broadcast %cst_252 : f32 to vector<1x128xf32>
    %639 = arith.divf %637, %638 : vector<1x128xf32>
    %640 = math.exp %639 : vector<1x128xf32>
    %cst_253 = arith.constant 1.000000e+00 : f32
    %641 = vector.broadcast %cst_253 : f32 to vector<1x128xf32>
    %642 = arith.subf %641, %640 : vector<1x128xf32>
    %643 = arith.divf %633, %642 : vector<1x128xf32>
    %cst_254 = arith.constant 6.500000e+01 : f32
    %644 = vector.broadcast %cst_254 : f32 to vector<1x128xf32>
    %645 = arith.addf %588, %644 : vector<1x128xf32>
    %cst_255 = arith.constant 0.000000e+00 : f32
    %646 = vector.broadcast %cst_255 : f32 to vector<1x128xf32>
    %647 = arith.subf %646, %645 : vector<1x128xf32>
    %cst_256 = arith.constant 1.800000e+01 : f32
    %648 = vector.broadcast %cst_256 : f32 to vector<1x128xf32>
    %649 = arith.divf %647, %648 : vector<1x128xf32>
    %650 = math.exp %649 : vector<1x128xf32>
    %cst_257 = arith.constant 4.000000e+00 : f32
    %651 = vector.broadcast %cst_257 : f32 to vector<1x128xf32>
    %652 = arith.mulf %651, %650 : vector<1x128xf32>
    %cst_258 = arith.constant 6.500000e+01 : f32
    %653 = vector.broadcast %cst_258 : f32 to vector<1x128xf32>
    %654 = arith.addf %588, %653 : vector<1x128xf32>
    %cst_259 = arith.constant 0.000000e+00 : f32
    %655 = vector.broadcast %cst_259 : f32 to vector<1x128xf32>
    %656 = arith.subf %655, %654 : vector<1x128xf32>
    %cst_260 = arith.constant 2.000000e+01 : f32
    %657 = vector.broadcast %cst_260 : f32 to vector<1x128xf32>
    %658 = arith.divf %656, %657 : vector<1x128xf32>
    %659 = math.exp %658 : vector<1x128xf32>
    %cst_261 = arith.constant 7.000000e-02 : f32
    %660 = vector.broadcast %cst_261 : f32 to vector<1x128xf32>
    %661 = arith.mulf %660, %659 : vector<1x128xf32>
    %cst_262 = arith.constant 3.500000e+01 : f32
    %662 = vector.broadcast %cst_262 : f32 to vector<1x128xf32>
    %663 = arith.addf %588, %662 : vector<1x128xf32>
    %cst_263 = arith.constant 0.000000e+00 : f32
    %664 = vector.broadcast %cst_263 : f32 to vector<1x128xf32>
    %665 = arith.subf %664, %663 : vector<1x128xf32>
    %cst_264 = arith.constant 1.000000e+01 : f32
    %666 = vector.broadcast %cst_264 : f32 to vector<1x128xf32>
    %667 = arith.divf %665, %666 : vector<1x128xf32>
    %668 = math.exp %667 : vector<1x128xf32>
    %cst_265 = arith.constant 1.000000e+00 : f32
    %669 = vector.broadcast %cst_265 : f32 to vector<1x128xf32>
    %670 = arith.addf %669, %668 : vector<1x128xf32>
    %cst_266 = arith.constant 1.000000e+00 : f32
    %671 = vector.broadcast %cst_266 : f32 to vector<1x128xf32>
    %672 = arith.divf %671, %670 : vector<1x128xf32>
    %cst_267 = arith.constant 1.000000e+00 : f32
    %673 = vector.broadcast %cst_267 : f32 to vector<1x128xf32>
    %674 = arith.subf %673, %563 : vector<1x128xf32>
    %675 = arith.mulf %620, %674 : vector<1x128xf32>
    %676 = arith.mulf %629, %563 : vector<1x128xf32>
    %677 = arith.subf %675, %676 : vector<1x128xf32>
    %cst_268 = arith.constant 0.00999999977 : f32
    %678 = vector.broadcast %cst_268 : f32 to vector<1x128xf32>
    %679 = arith.mulf %678, %677 : vector<1x128xf32>
    %680 = arith.addf %563, %679 : vector<1x128xf32>
    %cst_269 = arith.constant 1.000000e+00 : f32
    %681 = vector.broadcast %cst_269 : f32 to vector<1x128xf32>
    %682 = arith.subf %681, %571 : vector<1x128xf32>
    %683 = arith.mulf %643, %682 : vector<1x128xf32>
    %684 = arith.mulf %652, %571 : vector<1x128xf32>
    %685 = arith.subf %683, %684 : vector<1x128xf32>
    %cst_270 = arith.constant 0.00999999977 : f32
    %686 = vector.broadcast %cst_270 : f32 to vector<1x128xf32>
    %687 = arith.mulf %686, %685 : vector<1x128xf32>
    %688 = arith.addf %571, %687 : vector<1x128xf32>
    %cst_271 = arith.constant 1.000000e+00 : f32
    %689 = vector.broadcast %cst_271 : f32 to vector<1x128xf32>
    %690 = arith.subf %689, %579 : vector<1x128xf32>
    %691 = arith.mulf %661, %690 : vector<1x128xf32>
    %692 = arith.mulf %672, %579 : vector<1x128xf32>
    %693 = arith.subf %691, %692 : vector<1x128xf32>
    %cst_272 = arith.constant 0.00999999977 : f32
    %694 = vector.broadcast %cst_272 : f32 to vector<1x128xf32>
    %695 = arith.mulf %694, %693 : vector<1x128xf32>
    %696 = arith.addf %579, %695 : vector<1x128xf32>
    %cst_273 = arith.constant 5.000000e-01 : f32
    %697 = vector.broadcast %cst_273 : f32 to vector<1x128xf32>
    %698 = arith.mulf %697, %588 : vector<1x128xf32>
    %699 = arith.index_cast %c5_i32 : i32 to index
    %c0_274 = arith.constant 0 : index
    %700 = vector.load %arg10[%699, %c0_274] : memref<8x128xf32, #tpu.memory_space<vmem>>, vector<1x128xf32>
    %701 = arith.addf %698, %700 : vector<1x128xf32>
    %cst_275 = arith.constant 1.000000e+00 : f32
    %702 = vector.broadcast %cst_275 : f32 to vector<1x128xf32>
    %703 = arith.cmpf ogt, %701, %702 : vector<1x128xf32>
    %cst_276 = arith.constant 0.000000e+00 : f32
    %704 = vector.broadcast %cst_276 : f32 to vector<1x128xf32>
    %705 = arith.select %703, %704, %701 : vector<1x128xi1>, vector<1x128xf32>
    %706 = arith.truncf %705 : vector<1x128xf32> to vector<1x128xbf16>
    %cst_277 = arith.constant dense<0.000000e+00> : vector<1x128xf32>
    %707 = tpu.matmul %706, %13, %cst_277 {dimension_numbers = #tpu.dot_dimension_numbers<[1], [0], [0], [1], [0, 0, 1, 1], [], []>} : vector<1x128xbf16>, vector<128x128xbf16>, vector<1x128xf32> -> vector<1x128xf32>
    %708 = arith.addf %707, %14 : vector<1x128xf32>
    %709 = arith.negf %708 : vector<1x128xf32>
    %710 = math.exp %709 : vector<1x128xf32>
    %cst_278 = arith.constant 1.000000e+00 : f32
    %711 = vector.broadcast %cst_278 : f32 to vector<1x128xf32>
    %712 = arith.addf %711, %710 : vector<1x128xf32>
    %713 = arith.divf %711, %712 : vector<1x128xf32>
    %714 = arith.truncf %713 : vector<1x128xf32> to vector<1x128xbf16>
    %cst_279 = arith.constant dense<0.000000e+00> : vector<1x128xf32>
    %715 = tpu.matmul %714, %15, %cst_279 {dimension_numbers = #tpu.dot_dimension_numbers<[1], [0], [0], [1], [0, 0, 1, 1], [], []>} : vector<1x128xbf16>, vector<128x128xbf16>, vector<1x128xf32> -> vector<1x128xf32>
    %716 = arith.addf %715, %16 : vector<1x128xf32>
    %717 = arith.negf %716 : vector<1x128xf32>
    %718 = math.exp %717 : vector<1x128xf32>
    %cst_280 = arith.constant 1.000000e+00 : f32
    %719 = vector.broadcast %cst_280 : f32 to vector<1x128xf32>
    %720 = arith.addf %719, %718 : vector<1x128xf32>
    %721 = arith.divf %719, %720 : vector<1x128xf32>
    %722 = arith.index_cast %c5_i32 : i32 to index
    %c0_281 = arith.constant 0 : index
    %723 = vector.load %arg8[%722, %c0_281] : memref<8x128xf32, #tpu.memory_space<vmem>>, vector<1x128xf32>
    tpu.vector_store %arg8[%722, %c0_281], %721 {strides = array<i32>} : memref<8x128xf32, #tpu.memory_space<vmem>>, vector<1x128xf32>,
    %c6_i32 = arith.constant 6 : i32
    %cst_282 = arith.constant 5.500000e+01 : f32
    %724 = vector.broadcast %cst_282 : f32 to vector<1x128xf32>
    %725 = arith.addf %705, %724 : vector<1x128xf32>
    %cst_283 = arith.constant 0.00999999977 : f32
    %726 = vector.broadcast %cst_283 : f32 to vector<1x128xf32>
    %727 = arith.mulf %726, %725 : vector<1x128xf32>
    %cst_284 = arith.constant 5.500000e+01 : f32
    %728 = vector.broadcast %cst_284 : f32 to vector<1x128xf32>
    %729 = arith.addf %705, %728 : vector<1x128xf32>
    %cst_285 = arith.constant 0.000000e+00 : f32
    %730 = vector.broadcast %cst_285 : f32 to vector<1x128xf32>
    %731 = arith.subf %730, %729 : vector<1x128xf32>
    %cst_286 = arith.constant 1.000000e+01 : f32
    %732 = vector.broadcast %cst_286 : f32 to vector<1x128xf32>
    %733 = arith.divf %731, %732 : vector<1x128xf32>
    %734 = math.exp %733 : vector<1x128xf32>
    %cst_287 = arith.constant 1.000000e+00 : f32
    %735 = vector.broadcast %cst_287 : f32 to vector<1x128xf32>
    %736 = arith.subf %735, %734 : vector<1x128xf32>
    %737 = arith.divf %727, %736 : vector<1x128xf32>
    %cst_288 = arith.constant 6.500000e+01 : f32
    %738 = vector.broadcast %cst_288 : f32 to vector<1x128xf32>
    %739 = arith.addf %705, %738 : vector<1x128xf32>
    %cst_289 = arith.constant 0.000000e+00 : f32
    %740 = vector.broadcast %cst_289 : f32 to vector<1x128xf32>
    %741 = arith.subf %740, %739 : vector<1x128xf32>
    %cst_290 = arith.constant 8.000000e+01 : f32
    %742 = vector.broadcast %cst_290 : f32 to vector<1x128xf32>
    %743 = arith.divf %741, %742 : vector<1x128xf32>
    %744 = math.exp %743 : vector<1x128xf32>
    %cst_291 = arith.constant 1.250000e-01 : f32
    %745 = vector.broadcast %cst_291 : f32 to vector<1x128xf32>
    %746 = arith.mulf %745, %744 : vector<1x128xf32>
    %cst_292 = arith.constant 4.000000e+01 : f32
    %747 = vector.broadcast %cst_292 : f32 to vector<1x128xf32>
    %748 = arith.addf %705, %747 : vector<1x128xf32>
    %cst_293 = arith.constant 1.000000e-01 : f32
    %749 = vector.broadcast %cst_293 : f32 to vector<1x128xf32>
    %750 = arith.mulf %749, %748 : vector<1x128xf32>
    %cst_294 = arith.constant 4.000000e+01 : f32
    %751 = vector.broadcast %cst_294 : f32 to vector<1x128xf32>
    %752 = arith.addf %705, %751 : vector<1x128xf32>
    %cst_295 = arith.constant 0.000000e+00 : f32
    %753 = vector.broadcast %cst_295 : f32 to vector<1x128xf32>
    %754 = arith.subf %753, %752 : vector<1x128xf32>
    %cst_296 = arith.constant 1.000000e+01 : f32
    %755 = vector.broadcast %cst_296 : f32 to vector<1x128xf32>
    %756 = arith.divf %754, %755 : vector<1x128xf32>
    %757 = math.exp %756 : vector<1x128xf32>
    %cst_297 = arith.constant 1.000000e+00 : f32
    %758 = vector.broadcast %cst_297 : f32 to vector<1x128xf32>
    %759 = arith.subf %758, %757 : vector<1x128xf32>
    %760 = arith.divf %750, %759 : vector<1x128xf32>
    %cst_298 = arith.constant 6.500000e+01 : f32
    %761 = vector.broadcast %cst_298 : f32 to vector<1x128xf32>
    %762 = arith.addf %705, %761 : vector<1x128xf32>
    %cst_299 = arith.constant 0.000000e+00 : f32
    %763 = vector.broadcast %cst_299 : f32 to vector<1x128xf32>
    %764 = arith.subf %763, %762 : vector<1x128xf32>
    %cst_300 = arith.constant 1.800000e+01 : f32
    %765 = vector.broadcast %cst_300 : f32 to vector<1x128xf32>
    %766 = arith.divf %764, %765 : vector<1x128xf32>
    %767 = math.exp %766 : vector<1x128xf32>
    %cst_301 = arith.constant 4.000000e+00 : f32
    %768 = vector.broadcast %cst_301 : f32 to vector<1x128xf32>
    %769 = arith.mulf %768, %767 : vector<1x128xf32>
    %cst_302 = arith.constant 6.500000e+01 : f32
    %770 = vector.broadcast %cst_302 : f32 to vector<1x128xf32>
    %771 = arith.addf %705, %770 : vector<1x128xf32>
    %cst_303 = arith.constant 0.000000e+00 : f32
    %772 = vector.broadcast %cst_303 : f32 to vector<1x128xf32>
    %773 = arith.subf %772, %771 : vector<1x128xf32>
    %cst_304 = arith.constant 2.000000e+01 : f32
    %774 = vector.broadcast %cst_304 : f32 to vector<1x128xf32>
    %775 = arith.divf %773, %774 : vector<1x128xf32>
    %776 = math.exp %775 : vector<1x128xf32>
    %cst_305 = arith.constant 7.000000e-02 : f32
    %777 = vector.broadcast %cst_305 : f32 to vector<1x128xf32>
    %778 = arith.mulf %777, %776 : vector<1x128xf32>
    %cst_306 = arith.constant 3.500000e+01 : f32
    %779 = vector.broadcast %cst_306 : f32 to vector<1x128xf32>
    %780 = arith.addf %705, %779 : vector<1x128xf32>
    %cst_307 = arith.constant 0.000000e+00 : f32
    %781 = vector.broadcast %cst_307 : f32 to vector<1x128xf32>
    %782 = arith.subf %781, %780 : vector<1x128xf32>
    %cst_308 = arith.constant 1.000000e+01 : f32
    %783 = vector.broadcast %cst_308 : f32 to vector<1x128xf32>
    %784 = arith.divf %782, %783 : vector<1x128xf32>
    %785 = math.exp %784 : vector<1x128xf32>
    %cst_309 = arith.constant 1.000000e+00 : f32
    %786 = vector.broadcast %cst_309 : f32 to vector<1x128xf32>
    %787 = arith.addf %786, %785 : vector<1x128xf32>
    %cst_310 = arith.constant 1.000000e+00 : f32
    %788 = vector.broadcast %cst_310 : f32 to vector<1x128xf32>
    %789 = arith.divf %788, %787 : vector<1x128xf32>
    %cst_311 = arith.constant 1.000000e+00 : f32
    %790 = vector.broadcast %cst_311 : f32 to vector<1x128xf32>
    %791 = arith.subf %790, %680 : vector<1x128xf32>
    %792 = arith.mulf %737, %791 : vector<1x128xf32>
    %793 = arith.mulf %746, %680 : vector<1x128xf32>
    %794 = arith.subf %792, %793 : vector<1x128xf32>
    %cst_312 = arith.constant 0.00999999977 : f32
    %795 = vector.broadcast %cst_312 : f32 to vector<1x128xf32>
    %796 = arith.mulf %795, %794 : vector<1x128xf32>
    %797 = arith.addf %680, %796 : vector<1x128xf32>
    %cst_313 = arith.constant 1.000000e+00 : f32
    %798 = vector.broadcast %cst_313 : f32 to vector<1x128xf32>
    %799 = arith.subf %798, %688 : vector<1x128xf32>
    %800 = arith.mulf %760, %799 : vector<1x128xf32>
    %801 = arith.mulf %769, %688 : vector<1x128xf32>
    %802 = arith.subf %800, %801 : vector<1x128xf32>
    %cst_314 = arith.constant 0.00999999977 : f32
    %803 = vector.broadcast %cst_314 : f32 to vector<1x128xf32>
    %804 = arith.mulf %803, %802 : vector<1x128xf32>
    %805 = arith.addf %688, %804 : vector<1x128xf32>
    %cst_315 = arith.constant 1.000000e+00 : f32
    %806 = vector.broadcast %cst_315 : f32 to vector<1x128xf32>
    %807 = arith.subf %806, %696 : vector<1x128xf32>
    %808 = arith.mulf %778, %807 : vector<1x128xf32>
    %809 = arith.mulf %789, %696 : vector<1x128xf32>
    %810 = arith.subf %808, %809 : vector<1x128xf32>
    %cst_316 = arith.constant 0.00999999977 : f32
    %811 = vector.broadcast %cst_316 : f32 to vector<1x128xf32>
    %812 = arith.mulf %811, %810 : vector<1x128xf32>
    %813 = arith.addf %696, %812 : vector<1x128xf32>
    %cst_317 = arith.constant 5.000000e-01 : f32
    %814 = vector.broadcast %cst_317 : f32 to vector<1x128xf32>
    %815 = arith.mulf %814, %705 : vector<1x128xf32>
    %816 = arith.index_cast %c6_i32 : i32 to index
    %c0_318 = arith.constant 0 : index
    %817 = vector.load %arg10[%816, %c0_318] : memref<8x128xf32, #tpu.memory_space<vmem>>, vector<1x128xf32>
    %818 = arith.addf %815, %817 : vector<1x128xf32>
    %cst_319 = arith.constant 1.000000e+00 : f32
    %819 = vector.broadcast %cst_319 : f32 to vector<1x128xf32>
    %820 = arith.cmpf ogt, %818, %819 : vector<1x128xf32>
    %cst_320 = arith.constant 0.000000e+00 : f32
    %821 = vector.broadcast %cst_320 : f32 to vector<1x128xf32>
    %822 = arith.select %820, %821, %818 : vector<1x128xi1>, vector<1x128xf32>
    %823 = arith.truncf %822 : vector<1x128xf32> to vector<1x128xbf16>
    %cst_321 = arith.constant dense<0.000000e+00> : vector<1x128xf32>
    %824 = tpu.matmul %823, %13, %cst_321 {dimension_numbers = #tpu.dot_dimension_numbers<[1], [0], [0], [1], [0, 0, 1, 1], [], []>} : vector<1x128xbf16>, vector<128x128xbf16>, vector<1x128xf32> -> vector<1x128xf32>
    %825 = arith.addf %824, %14 : vector<1x128xf32>
    %826 = arith.negf %825 : vector<1x128xf32>
    %827 = math.exp %826 : vector<1x128xf32>
    %cst_322 = arith.constant 1.000000e+00 : f32
    %828 = vector.broadcast %cst_322 : f32 to vector<1x128xf32>
    %829 = arith.addf %828, %827 : vector<1x128xf32>
    %830 = arith.divf %828, %829 : vector<1x128xf32>
    %831 = arith.truncf %830 : vector<1x128xf32> to vector<1x128xbf16>
    %cst_323 = arith.constant dense<0.000000e+00> : vector<1x128xf32>
    %832 = tpu.matmul %831, %15, %cst_323 {dimension_numbers = #tpu.dot_dimension_numbers<[1], [0], [0], [1], [0, 0, 1, 1], [], []>} : vector<1x128xbf16>, vector<128x128xbf16>, vector<1x128xf32> -> vector<1x128xf32>
    %833 = arith.addf %832, %16 : vector<1x128xf32>
    %834 = arith.negf %833 : vector<1x128xf32>
    %835 = math.exp %834 : vector<1x128xf32>
    %cst_324 = arith.constant 1.000000e+00 : f32
    %836 = vector.broadcast %cst_324 : f32 to vector<1x128xf32>
    %837 = arith.addf %836, %835 : vector<1x128xf32>
    %838 = arith.divf %836, %837 : vector<1x128xf32>
    %839 = arith.index_cast %c6_i32 : i32 to index
    %c0_325 = arith.constant 0 : index
    %840 = vector.load %arg8[%839, %c0_325] : memref<8x128xf32, #tpu.memory_space<vmem>>, vector<1x128xf32>
    tpu.vector_store %arg8[%839, %c0_325], %838 {strides = array<i32>} : memref<8x128xf32, #tpu.memory_space<vmem>>, vector<1x128xf32>,
    %c7_i32 = arith.constant 7 : i32
    %cst_326 = arith.constant 5.500000e+01 : f32
    %841 = vector.broadcast %cst_326 : f32 to vector<1x128xf32>
    %842 = arith.addf %822, %841 : vector<1x128xf32>
    %cst_327 = arith.constant 0.00999999977 : f32
    %843 = vector.broadcast %cst_327 : f32 to vector<1x128xf32>
    %844 = arith.mulf %843, %842 : vector<1x128xf32>
    %cst_328 = arith.constant 5.500000e+01 : f32
    %845 = vector.broadcast %cst_328 : f32 to vector<1x128xf32>
    %846 = arith.addf %822, %845 : vector<1x128xf32>
    %cst_329 = arith.constant 0.000000e+00 : f32
    %847 = vector.broadcast %cst_329 : f32 to vector<1x128xf32>
    %848 = arith.subf %847, %846 : vector<1x128xf32>
    %cst_330 = arith.constant 1.000000e+01 : f32
    %849 = vector.broadcast %cst_330 : f32 to vector<1x128xf32>
    %850 = arith.divf %848, %849 : vector<1x128xf32>
    %851 = math.exp %850 : vector<1x128xf32>
    %cst_331 = arith.constant 1.000000e+00 : f32
    %852 = vector.broadcast %cst_331 : f32 to vector<1x128xf32>
    %853 = arith.subf %852, %851 : vector<1x128xf32>
    %854 = arith.divf %844, %853 : vector<1x128xf32>
    %cst_332 = arith.constant 6.500000e+01 : f32
    %855 = vector.broadcast %cst_332 : f32 to vector<1x128xf32>
    %856 = arith.addf %822, %855 : vector<1x128xf32>
    %cst_333 = arith.constant 0.000000e+00 : f32
    %857 = vector.broadcast %cst_333 : f32 to vector<1x128xf32>
    %858 = arith.subf %857, %856 : vector<1x128xf32>
    %cst_334 = arith.constant 8.000000e+01 : f32
    %859 = vector.broadcast %cst_334 : f32 to vector<1x128xf32>
    %860 = arith.divf %858, %859 : vector<1x128xf32>
    %861 = math.exp %860 : vector<1x128xf32>
    %cst_335 = arith.constant 1.250000e-01 : f32
    %862 = vector.broadcast %cst_335 : f32 to vector<1x128xf32>
    %863 = arith.mulf %862, %861 : vector<1x128xf32>
    %cst_336 = arith.constant 4.000000e+01 : f32
    %864 = vector.broadcast %cst_336 : f32 to vector<1x128xf32>
    %865 = arith.addf %822, %864 : vector<1x128xf32>
    %cst_337 = arith.constant 1.000000e-01 : f32
    %866 = vector.broadcast %cst_337 : f32 to vector<1x128xf32>
    %867 = arith.mulf %866, %865 : vector<1x128xf32>
    %cst_338 = arith.constant 4.000000e+01 : f32
    %868 = vector.broadcast %cst_338 : f32 to vector<1x128xf32>
    %869 = arith.addf %822, %868 : vector<1x128xf32>
    %cst_339 = arith.constant 0.000000e+00 : f32
    %870 = vector.broadcast %cst_339 : f32 to vector<1x128xf32>
    %871 = arith.subf %870, %869 : vector<1x128xf32>
    %cst_340 = arith.constant 1.000000e+01 : f32
    %872 = vector.broadcast %cst_340 : f32 to vector<1x128xf32>
    %873 = arith.divf %871, %872 : vector<1x128xf32>
    %874 = math.exp %873 : vector<1x128xf32>
    %cst_341 = arith.constant 1.000000e+00 : f32
    %875 = vector.broadcast %cst_341 : f32 to vector<1x128xf32>
    %876 = arith.subf %875, %874 : vector<1x128xf32>
    %877 = arith.divf %867, %876 : vector<1x128xf32>
    %cst_342 = arith.constant 6.500000e+01 : f32
    %878 = vector.broadcast %cst_342 : f32 to vector<1x128xf32>
    %879 = arith.addf %822, %878 : vector<1x128xf32>
    %cst_343 = arith.constant 0.000000e+00 : f32
    %880 = vector.broadcast %cst_343 : f32 to vector<1x128xf32>
    %881 = arith.subf %880, %879 : vector<1x128xf32>
    %cst_344 = arith.constant 1.800000e+01 : f32
    %882 = vector.broadcast %cst_344 : f32 to vector<1x128xf32>
    %883 = arith.divf %881, %882 : vector<1x128xf32>
    %884 = math.exp %883 : vector<1x128xf32>
    %cst_345 = arith.constant 4.000000e+00 : f32
    %885 = vector.broadcast %cst_345 : f32 to vector<1x128xf32>
    %886 = arith.mulf %885, %884 : vector<1x128xf32>
    %cst_346 = arith.constant 6.500000e+01 : f32
    %887 = vector.broadcast %cst_346 : f32 to vector<1x128xf32>
    %888 = arith.addf %822, %887 : vector<1x128xf32>
    %cst_347 = arith.constant 0.000000e+00 : f32
    %889 = vector.broadcast %cst_347 : f32 to vector<1x128xf32>
    %890 = arith.subf %889, %888 : vector<1x128xf32>
    %cst_348 = arith.constant 2.000000e+01 : f32
    %891 = vector.broadcast %cst_348 : f32 to vector<1x128xf32>
    %892 = arith.divf %890, %891 : vector<1x128xf32>
    %893 = math.exp %892 : vector<1x128xf32>
    %cst_349 = arith.constant 7.000000e-02 : f32
    %894 = vector.broadcast %cst_349 : f32 to vector<1x128xf32>
    %895 = arith.mulf %894, %893 : vector<1x128xf32>
    %cst_350 = arith.constant 3.500000e+01 : f32
    %896 = vector.broadcast %cst_350 : f32 to vector<1x128xf32>
    %897 = arith.addf %822, %896 : vector<1x128xf32>
    %cst_351 = arith.constant 0.000000e+00 : f32
    %898 = vector.broadcast %cst_351 : f32 to vector<1x128xf32>
    %899 = arith.subf %898, %897 : vector<1x128xf32>
    %cst_352 = arith.constant 1.000000e+01 : f32
    %900 = vector.broadcast %cst_352 : f32 to vector<1x128xf32>
    %901 = arith.divf %899, %900 : vector<1x128xf32>
    %902 = math.exp %901 : vector<1x128xf32>
    %cst_353 = arith.constant 1.000000e+00 : f32
    %903 = vector.broadcast %cst_353 : f32 to vector<1x128xf32>
    %904 = arith.addf %903, %902 : vector<1x128xf32>
    %cst_354 = arith.constant 1.000000e+00 : f32
    %905 = vector.broadcast %cst_354 : f32 to vector<1x128xf32>
    %906 = arith.divf %905, %904 : vector<1x128xf32>
    %cst_355 = arith.constant 1.000000e+00 : f32
    %907 = vector.broadcast %cst_355 : f32 to vector<1x128xf32>
    %908 = arith.subf %907, %797 : vector<1x128xf32>
    %909 = arith.mulf %854, %908 : vector<1x128xf32>
    %910 = arith.mulf %863, %797 : vector<1x128xf32>
    %911 = arith.subf %909, %910 : vector<1x128xf32>
    %cst_356 = arith.constant 0.00999999977 : f32
    %912 = vector.broadcast %cst_356 : f32 to vector<1x128xf32>
    %913 = arith.mulf %912, %911 : vector<1x128xf32>
    %914 = arith.addf %797, %913 : vector<1x128xf32>
    %cst_357 = arith.constant 1.000000e+00 : f32
    %915 = vector.broadcast %cst_357 : f32 to vector<1x128xf32>
    %916 = arith.subf %915, %805 : vector<1x128xf32>
    %917 = arith.mulf %877, %916 : vector<1x128xf32>
    %918 = arith.mulf %886, %805 : vector<1x128xf32>
    %919 = arith.subf %917, %918 : vector<1x128xf32>
    %cst_358 = arith.constant 0.00999999977 : f32
    %920 = vector.broadcast %cst_358 : f32 to vector<1x128xf32>
    %921 = arith.mulf %920, %919 : vector<1x128xf32>
    %922 = arith.addf %805, %921 : vector<1x128xf32>
    %cst_359 = arith.constant 1.000000e+00 : f32
    %923 = vector.broadcast %cst_359 : f32 to vector<1x128xf32>
    %924 = arith.subf %923, %813 : vector<1x128xf32>
    %925 = arith.mulf %895, %924 : vector<1x128xf32>
    %926 = arith.mulf %906, %813 : vector<1x128xf32>
    %927 = arith.subf %925, %926 : vector<1x128xf32>
    %cst_360 = arith.constant 0.00999999977 : f32
    %928 = vector.broadcast %cst_360 : f32 to vector<1x128xf32>
    %929 = arith.mulf %928, %927 : vector<1x128xf32>
    %930 = arith.addf %813, %929 : vector<1x128xf32>
    %cst_361 = arith.constant 5.000000e-01 : f32
    %931 = vector.broadcast %cst_361 : f32 to vector<1x128xf32>
    %932 = arith.mulf %931, %822 : vector<1x128xf32>
    %933 = arith.index_cast %c7_i32 : i32 to index
    %c0_362 = arith.constant 0 : index
    %934 = vector.load %arg10[%933, %c0_362] : memref<8x128xf32, #tpu.memory_space<vmem>>, vector<1x128xf32>
    %935 = arith.addf %932, %934 : vector<1x128xf32>
    %cst_363 = arith.constant 1.000000e+00 : f32
    %936 = vector.broadcast %cst_363 : f32 to vector<1x128xf32>
    %937 = arith.cmpf ogt, %935, %936 : vector<1x128xf32>
    %cst_364 = arith.constant 0.000000e+00 : f32
    %938 = vector.broadcast %cst_364 : f32 to vector<1x128xf32>
    %939 = arith.select %937, %938, %935 : vector<1x128xi1>, vector<1x128xf32>
    %940 = arith.truncf %939 : vector<1x128xf32> to vector<1x128xbf16>
    %cst_365 = arith.constant dense<0.000000e+00> : vector<1x128xf32>
    %941 = tpu.matmul %940, %13, %cst_365 {dimension_numbers = #tpu.dot_dimension_numbers<[1], [0], [0], [1], [0, 0, 1, 1], [], []>} : vector<1x128xbf16>, vector<128x128xbf16>, vector<1x128xf32> -> vector<1x128xf32>
    %942 = arith.addf %941, %14 : vector<1x128xf32>
    %943 = arith.negf %942 : vector<1x128xf32>
    %944 = math.exp %943 : vector<1x128xf32>
    %cst_366 = arith.constant 1.000000e+00 : f32
    %945 = vector.broadcast %cst_366 : f32 to vector<1x128xf32>
    %946 = arith.addf %945, %944 : vector<1x128xf32>
    %947 = arith.divf %945, %946 : vector<1x128xf32>
    %948 = arith.truncf %947 : vector<1x128xf32> to vector<1x128xbf16>
    %cst_367 = arith.constant dense<0.000000e+00> : vector<1x128xf32>
    %949 = tpu.matmul %948, %15, %cst_367 {dimension_numbers = #tpu.dot_dimension_numbers<[1], [0], [0], [1], [0, 0, 1, 1], [], []>} : vector<1x128xbf16>, vector<128x128xbf16>, vector<1x128xf32> -> vector<1x128xf32>
    %950 = arith.addf %949, %16 : vector<1x128xf32>
    %951 = arith.negf %950 : vector<1x128xf32>
    %952 = math.exp %951 : vector<1x128xf32>
    %cst_368 = arith.constant 1.000000e+00 : f32
    %953 = vector.broadcast %cst_368 : f32 to vector<1x128xf32>
    %954 = arith.addf %953, %952 : vector<1x128xf32>
    %955 = arith.divf %953, %954 : vector<1x128xf32>
    %956 = arith.index_cast %c7_i32 : i32 to index
    %c0_369 = arith.constant 0 : index
    %957 = vector.load %arg8[%956, %c0_369] : memref<8x128xf32, #tpu.memory_space<vmem>>, vector<1x128xf32>
    tpu.vector_store %arg8[%956, %c0_369], %955 {strides = array<i32>} : memref<8x128xf32, #tpu.memory_space<vmem>>, vector<1x128xf32>,
    %c8_i32 = arith.constant 8 : i32
    %cst_370 = arith.constant 0.000000e+00 : f32
    %958 = vector.broadcast %cst_370 : f32 to vector<4x128xf32>
    %959 = tpu.concatenate %939, %914, %922, %930, %958 in 0 : vector<1x128xf32>, vector<1x128xf32>, vector<1x128xf32>, vector<1x128xf32>, vector<4x128xf32> -> vector<8x128xf32>
    %960 = tpu.iota {dimensions = array<i32: 1>} : vector<8x128xi32>
    %c100_i32 = arith.constant 100 : i32
    %961 = vector.broadcast %c100_i32 : i32 to vector<8x128xi32>
    %962 = arith.cmpi slt, %960, %961 : vector<8x128xi32>
    %cst_371 = arith.constant 0.000000e+00 : f32
    %963 = vector.broadcast %cst_371 : f32 to vector<8x128xf32>
    %964 = arith.select %962, %959, %963 : vector<8x128xi1>, vector<8x128xf32>
    %c0_372 = arith.constant 0 : index
    %c0_373 = arith.constant 0 : index
    %965 = vector.load %arg9[%c0_372, %c0_373] : memref<8x128xf32, #tpu.memory_space<vmem>>, vector<8x128xf32>
    tpu.vector_store %arg9[%c0_372, %c0_373], %964 {strides = array<i32>} : memref<8x128xf32, #tpu.memory_space<vmem>>, vector<8x128xf32>,
    return
  }
}

</mosaic_0001>

<llo_original>
// kernel: snn_forward_sequence.1
$region0: #{snn_forward_sequence.1}
  #allocation0 [shape = 'u32[]', space=smem, size = 0x4, offset = 0x4, fixed_abs, tag = 'smem constant byte address 0x4 - core index']
  #allocation1 [shape = 'u32[144,128]{1,0:T(1,128)}', space=vmem, size = 0x12000, scoped, tag = 'internal scratch']
  #allocation2 [shape = 'f32[8,128]{1,0:T(8,128)}', space=vmem, size = 0x1000, scoped, tag = 'scratch operand']
  %s0 = inlined_call_operand.vmem [shape: f32[8,128], index: 0, kind: input, shape index: {}]
  %s1 = inlined_call_operand.hbm [shape: f32[8,128], index: 1, kind: input, shape index: {}, may-alias: {1,9}]
  %s2 = inlined_call_operand.hbm [shape: bf16[128,128], index: 2, kind: input, shape index: {}]
  %s3 = inlined_call_operand.vmem [shape: f32[1,128], index: 3, kind: input, shape index: {}]
  %s4 = inlined_call_operand.hbm [shape: bf16[128,128], index: 4, kind: input, shape index: {}]
  %s5 = inlined_call_operand.vmem [shape: f32[1,128], index: 5, kind: input, shape index: {}]
  %s6 = inlined_call_operand.hbm [shape: bf16[128,128], index: 6, kind: input, shape index: {}]
  %s7 = inlined_call_operand.vmem [shape: f32[1,128], index: 7, kind: input, shape index: {}]
  %s8 = inlined_call_operand.hbm [shape: f32[8,128], index: 8, kind: output, shape index: {0}]
  %s9 = inlined_call_operand.hbm [shape: f32[8,128], index: 9, kind: output, shape index: {1}, may-alias: {1,9}]
  %10 = xla_tuple %s8, %s9
  %s11 = sld [smem:[#allocation0]]
  $region66: #{snn_forward_sequence.1} parent=0
    _
  %s13 = ssub.s32 1, %s11
  %s14 = scalar_select 0, %s13, %s11
  $region1: #{snn_forward_sequence.1} parent=0
    #allocation3 [shape = 'u8[4096]{0}', space=vmem, size = 0x1000, scoped, tag = 'input window, operand 1, single buffered']
    #allocation4 [shape = 's32[1]{0}', space=sflag, size = 0x4, scoped, tag = 'scoped memory for snn_forward_sequence.1']
    #allocation5 [shape = 's32[1]{0}', space=sflag, size = 0x4, scoped, tag = 'scoped memory for snn_forward_sequence.1']
    #allocation6 [shape = 'u8[32768]{0}', space=vmem, size = 0x8000, scoped, tag = 'input window, operand 2, single buffered']
    #allocation7 [shape = 's32[1]{0}', space=sflag, size = 0x4, scoped, tag = 'scoped memory for snn_forward_sequence.1']
    #allocation8 [shape = 'u8[32768]{0}', space=vmem, size = 0x8000, scoped, tag = 'input window, operand 4, single buffered']
    #allocation9 [shape = 'u8[32768]{0}', space=vmem, size = 0x8000, scoped, tag = 'input window, operand 6, single buffered']
    #allocation10 [shape = 's32[1]{0}', space=sflag, size = 0x4, scoped, tag = 'scoped memory for snn_forward_sequence.1']
    #allocation11 [shape = 'u8[4096]{0}', space=vmem, size = 0x1000, scoped, tag = 'output window, operand 0, single buffered']
    #allocation12 [shape = 'u8[4096]{0}', space=vmem, size = 0x1000, scoped, tag = 'output window, operand 1, single buffered']
    #allocation13 [shape = 's32[1]{0}', space=sflag, size = 0x4, scoped, tag = 'scoped memory for snn_forward_sequence.1']
    %15 = vsyncpa [#allocation4], 0
    %16 = vsyncpa [#allocation7], 0
    %17 = vsyncpa [#allocation10], 0
    %18 = vsyncpa [#allocation5], 0
    %19 = vsyncpa [#allocation13], 0
    // Predicated region
    $region2: #{snn_forward_sequence.1} parent=1 // pred_check
      _
    $region3: #{snn_forward_sequence.1} parent=1 // pred_check_branch
      %21 = sbr.rel (0) target = $region5
    $region4: #{snn_forward_sequence.1} parent=1 // pred_region
      _
    $region5: #{snn_forward_sequence.1} parent=1 // pred_fallthru
      _
    // Predicated region
    $region6: #{snn_forward_sequence.1} parent=1 // pred_check
      _
    $region7: #{snn_forward_sequence.1} parent=1 // pred_check_branch
      %23 = sbr.rel (0) target = $region9
    $region8: #{snn_forward_sequence.1} parent=1 // pred_region
      %s25 = ssub.s32 128, 128
      %26 = vsyncadd [#allocation4], %s25
      %s28 = sshll.u32 [#allocation3], 4
      %s29 = int_to_ptr.vmem [resolvable:$true] %s28
      %31 = dma.hbm_to_vmem [thread:$0]  %s1, 128, %s29, [#allocation4]
    $region9: #{snn_forward_sequence.1} parent=1 // pred_fallthru
      _
    // Predicated region
    $region10: #{snn_forward_sequence.1} parent=1 // pred_check
      _
    $region11: #{snn_forward_sequence.1} parent=1 // pred_check_branch
      %33 = sbr.rel (0) target = $region13
    $region12: #{snn_forward_sequence.1} parent=1 // pred_region
      %s35 = ssub.s32 1024, 1024
      %36 = vsyncadd [#allocation7], %s35
      %s37 = sshll.u32 [#allocation6], 4
      %s38 = int_to_ptr.vmem [resolvable:$true] %s37
      %43 = dma.hbm_to_vmem [thread:$0]  %s2, 1024, %s38, [#allocation7], 64, 64, 4
    $region13: #{snn_forward_sequence.1} parent=1 // pred_fallthru
      _
    // Predicated region
    $region14: #{snn_forward_sequence.1} parent=1 // pred_check
      _
    $region15: #{snn_forward_sequence.1} parent=1 // pred_check_branch
      %45 = sbr.rel (0) target = $region17
    $region16: #{snn_forward_sequence.1} parent=1 // pred_region
      _
    $region17: #{snn_forward_sequence.1} parent=1 // pred_fallthru
      _
    // Predicated region
    $region18: #{snn_forward_sequence.1} parent=1 // pred_check
      _
    $region19: #{snn_forward_sequence.1} parent=1 // pred_check_branch
      %47 = sbr.rel (0) target = $region21
    $region20: #{snn_forward_sequence.1} parent=1 // pred_region
      %s49 = ssub.s32 1024, 1024
      %50 = vsyncadd [#allocation7], %s49
      %s51 = sshll.u32 [#allocation8], 4
      %s52 = int_to_ptr.vmem [resolvable:$true] %s51
      %57 = dma.hbm_to_vmem [thread:$0]  %s4, 1024, %s52, [#allocation7], 64, 64, 4
    $region21: #{snn_forward_sequence.1} parent=1 // pred_fallthru
      _
    // Predicated region
    $region22: #{snn_forward_sequence.1} parent=1 // pred_check
      _
    $region23: #{snn_forward_sequence.1} parent=1 // pred_check_branch
      %59 = sbr.rel (0) target = $region25
    $region24: #{snn_forward_sequence.1} parent=1 // pred_region
      _
    $region25: #{snn_forward_sequence.1} parent=1 // pred_fallthru
      _
    // Predicated region
    $region26: #{snn_forward_sequence.1} parent=1 // pred_check
      _
    $region27: #{snn_forward_sequence.1} parent=1 // pred_check_branch
      %61 = sbr.rel (0) target = $region29
    $region28: #{snn_forward_sequence.1} parent=1 // pred_region
      %s63 = ssub.s32 1024, 1024
      %64 = vsyncadd [#allocation10], %s63
      %s65 = sshll.u32 [#allocation9], 4
      %s66 = int_to_ptr.vmem [resolvable:$true] %s65
      %71 = dma.hbm_to_vmem [thread:$0]  %s6, 1024, %s66, [#allocation10], 64, 64, 4
    $region29: #{snn_forward_sequence.1} parent=1 // pred_fallthru
      _
    // Predicated region
    $region30: #{snn_forward_sequence.1} parent=1 // pred_check
      _
    $region31: #{snn_forward_sequence.1} parent=1 // pred_check_branch
      %73 = sbr.rel (0) target = $region33
    $region32: #{snn_forward_sequence.1} parent=1 // pred_region
      _
    $region33: #{snn_forward_sequence.1} parent=1 // pred_fallthru
      _
    // Predicated region
    $region34: #{snn_forward_sequence.1} parent=1 // pred_check
      _
    $region35: #{snn_forward_sequence.1} parent=1 // pred_check_branch
      %75 = sbr.rel (0) target = $region37
    $region36: #{snn_forward_sequence.1} parent=1 // pred_region
      %76 = dma.done [#allocation4], 128
    $region37: #{snn_forward_sequence.1} parent=1 // pred_fallthru
      _
    // Predicated region
    $region38: #{snn_forward_sequence.1} parent=1 // pred_check
      _
    $region39: #{snn_forward_sequence.1} parent=1 // pred_check_branch
      %78 = sbr.rel (0) target = $region41
    $region40: #{snn_forward_sequence.1} parent=1 // pred_region
      %79 = dma.done [#allocation7], 1024
    $region41: #{snn_forward_sequence.1} parent=1 // pred_fallthru
      _
    // Predicated region
    $region42: #{snn_forward_sequence.1} parent=1 // pred_check
      _
    $region43: #{snn_forward_sequence.1} parent=1 // pred_check_branch
      %81 = sbr.rel (0) target = $region45
    $region44: #{snn_forward_sequence.1} parent=1 // pred_region
      %82 = dma.done [#allocation7], 1024
    $region45: #{snn_forward_sequence.1} parent=1 // pred_fallthru
      _
    // Predicated region
    $region46: #{snn_forward_sequence.1} parent=1 // pred_check
      _
    $region47: #{snn_forward_sequence.1} parent=1 // pred_check_branch
      %84 = sbr.rel (0) target = $region49
    $region48: #{snn_forward_sequence.1} parent=1 // pred_region
      %85 = dma.done [#allocation10], 1024
    $region49: #{snn_forward_sequence.1} parent=1 // pred_fallthru
      _
    %v87 = vld [vmem:[%s0] sm:$0xff]
    %v88 = vpack.c.bf16 %v87, %v87
    %v89 = vld [vmem:[#allocation6] sm:$0xf]
    %v90 = vld [vmem:[#allocation6 + $0x4] sm:$0xf]
    %v91 = vld [vmem:[#allocation6 + $0x8] sm:$0xf]
    %v92 = vld [vmem:[#allocation6 + $0xc] sm:$0xf]
    %v93 = vld [vmem:[#allocation6 + $0x10] sm:$0xf]
    %v94 = vld [vmem:[#allocation6 + $0x14] sm:$0xf]
    %v95 = vld [vmem:[#allocation6 + $0x18] sm:$0xf]
    %v96 = vld [vmem:[#allocation6 + $0x1c] sm:$0xf]
    %v97 = vld [vmem:[#allocation6 + $0x20] sm:$0xf]
    %v98 = vld [vmem:[#allocation6 + $0x24] sm:$0xf]
    %v99 = vld [vmem:[#allocation6 + $0x28] sm:$0xf]
    %v100 = vld [vmem:[#allocation6 + $0x2c] sm:$0xf]
    %v101 = vld [vmem:[#allocation6 + $0x30] sm:$0xf]
    %v102 = vld [vmem:[#allocation6 + $0x34] sm:$0xf]
    %v103 = vld [vmem:[#allocation6 + $0x38] sm:$0xf]
    %v104 = vld [vmem:[#allocation6 + $0x3c] sm:$0xf]
    %v105 = vld [vmem:[%s3] sm:$0x1]
    %v107 = vlaneseq
    %v108 = vshrl.u32 %v107, 7
    %v109 = vsub.s32 0, %v108
    %v110 = vrot.slane %v105, %v109
    %v128 = vunpack.c.l.b16 %v89
    %v129 = vunpack.c.l.b16 %v90
    %v130 = vunpack.c.l.b16 %v91
    %v131 = vunpack.c.l.b16 %v92
    %v132 = vunpack.c.l.b16 %v93
    %v133 = vunpack.c.l.b16 %v94
    %v134 = vunpack.c.l.b16 %v95
    %v135 = vunpack.c.l.b16 %v96
    %v136 = vunpack.c.l.b16 %v97
    %v137 = vunpack.c.l.b16 %v98
    %v138 = vunpack.c.l.b16 %v99
    %v139 = vunpack.c.l.b16 %v100
    %v140 = vunpack.c.l.b16 %v101
    %v141 = vunpack.c.l.b16 %v102
    %v142 = vunpack.c.l.b16 %v103
    %v143 = vunpack.c.l.b16 %v104
    %v144 = vpack.c.b16 %v129, %v128
    %v145 = vpack.c.b16 %v131, %v130
    %v146 = vpack.c.b16 %v133, %v132
    %v147 = vpack.c.b16 %v135, %v134
    %v148 = vpack.c.b16 %v137, %v136
    %v149 = vpack.c.b16 %v139, %v138
    %v150 = vpack.c.b16 %v141, %v140
    %v151 = vpack.c.b16 %v143, %v142
    %160 = vmatprep.subr.bf16.mxu0 0
    %161 = vmatpush1.bf16.msra.mxu0 %v144
    %162 = vmatprep.subr.bf16.mxu0 0
    %163 = vmatpush1.bf16.msra.mxu0 %v145
    %164 = vmatprep.subr.bf16.mxu0 0
    %165 = vmatpush1.bf16.msra.mxu0 %v146
    %166 = vmatprep.subr.bf16.mxu0 0
    %167 = vmatpush1.bf16.msra.mxu0 %v147
    %168 = vmatprep.subr.bf16.mxu0 0
    %169 = vmatpush1.bf16.msra.mxu0 %v148
    %170 = vmatprep.subr.bf16.mxu0 0
    %171 = vmatpush1.bf16.msra.mxu0 %v149
    %172 = vmatprep.subr.bf16.mxu0 0
    %173 = vmatpush1.bf16.msra.mxu0 %v150
    %174 = vmatprep.subr.bf16.mxu0 0
    %175 = vmatpush1.bf16.msra.mxu0 %v151
    %176 = vmatprep.subr.bf16.mxu0 0
    %177 = vmatpush1.bf16.msra.mxu0 0
    %178 = vmatprep.subr.bf16.mxu0 0
    %179 = vmatpush1.bf16.msra.mxu0 0
    %180 = vmatprep.subr.bf16.mxu0 0
    %181 = vmatpush1.bf16.msra.mxu0 0
    %182 = vmatprep.subr.bf16.mxu0 0
    %183 = vmatpush1.bf16.msra.mxu0 0
    %184 = vmatprep.subr.bf16.mxu0 0
    %185 = vmatpush1.bf16.msra.mxu0 0
    %186 = vmatprep.subr.bf16.mxu0 0
    %187 = vmatpush1.bf16.msra.mxu0 0
    %188 = vmatprep.subr.bf16.mxu0 0
    %189 = vmatpush1.bf16.msra.mxu0 0
    %190 = vmatprep.subr.bf16.mxu0 0
    %191 = vmatpush1.bf16.msra.mxu0 0
    %192 = vmatprep.mubr.bf16.mxu0 0
    %193 = vmatmul.mubr.bf16.gmra.mrb[0].mxu0 %v88
    %v194 = vpop.f32.mrb[0].mxu0
    %v195 = vadd.f32 %v110, %v194
    %v196 = vpop.f32.mrb[0].mxu0
    %v197 = vpop.f32.mrb[0].mxu0
    %v198 = vpop.f32.mrb[0].mxu0
    %199 = vdwg.mxu0
    %v200 = vxor.u32 %v195, 2147483648
    %v201 = vmul.f32 %v200, 1.442695
    %v202 = vpow.pop %v201
    %v203 = vadd.f32 %v202, 1.0
    %v204 = vrcp.pop %v203
    %v205 = vmul.f32 1.0, %v204
    %206 = vst [vmem:[#allocation2] sm:$0xff] %v205
    %v207 = vld [vmem:[#allocation8] sm:$0xf]
    %v208 = vld [vmem:[#allocation8 + $0x4] sm:$0xf]
    %v209 = vld [vmem:[#allocation8 + $0x8] sm:$0xf]
    %v210 = vld [vmem:[#allocation8 + $0xc] sm:$0xf]
    %v211 = vld [vmem:[#allocation8 + $0x10] sm:$0xf]
    %v212 = vld [vmem:[#allocation8 + $0x14] sm:$0xf]
    %v213 = vld [vmem:[#allocation8 + $0x18] sm:$0xf]
    %v214 = vld [vmem:[#allocation8 + $0x1c] sm:$0xf]
    %v215 = vld [vmem:[#allocation8 + $0x20] sm:$0xf]
    %v216 = vld [vmem:[#allocation8 + $0x24] sm:$0xf]
    %v217 = vld [vmem:[#allocation8 + $0x28] sm:$0xf]
    %v218 = vld [vmem:[#allocation8 + $0x2c] sm:$0xf]
    %v219 = vld [vmem:[#allocation8 + $0x30] sm:$0xf]
    %v220 = vld [vmem:[#allocation8 + $0x34] sm:$0xf]
    %v221 = vld [vmem:[#allocation8 + $0x38] sm:$0xf]
    %v222 = vld [vmem:[#allocation8 + $0x3c] sm:$0xf]
    %v223 = vld [vmem:[%s5] sm:$0x1]
    %v224 = vld [vmem:[#allocation9] sm:$0xf]
    %v225 = vld [vmem:[#allocation9 + $0x4] sm:$0xf]
    %v226 = vld [vmem:[#allocation9 + $0x8] sm:$0xf]
    %v227 = vld [vmem:[#allocation9 + $0xc] sm:$0xf]
    %v228 = vld [vmem:[#allocation9 + $0x10] sm:$0xf]
    %v229 = vld [vmem:[#allocation9 + $0x14] sm:$0xf]
    %v230 = vld [vmem:[#allocation9 + $0x18] sm:$0xf]
    %v231 = vld [vmem:[#allocation9 + $0x1c] sm:$0xf]
    %v232 = vld [vmem:[#allocation9 + $0x20] sm:$0xf]
    %v233 = vld [vmem:[#allocation9 + $0x24] sm:$0xf]
    %v234 = vld [vmem:[#allocation9 + $0x28] sm:$0xf]
    %v235 = vld [vmem:[#allocation9 + $0x2c] sm:$0xf]
    %v236 = vld [vmem:[#allocation9 + $0x30] sm:$0xf]
    %v237 = vld [vmem:[#allocation9 + $0x34] sm:$0xf]
    %v238 = vld [vmem:[#allocation9 + $0x38] sm:$0xf]
    %v239 = vld [vmem:[#allocation9 + $0x3c] sm:$0xf]
    %v240 = vld [vmem:[%s7] sm:$0x1]
    %v241 = vld [vmem:[#allocation3] sm:$0xff]
    %v242 = vadd.f32 %v241, 55.0
    %v243 = vmul.f32 %v242, 0.01
    %v244 = vsub.f32 0.0, %v242
    %v245 = vrcp.pop 10.0
    %v246 = vmul.f32 %v244, %v245
    %v247 = vmul.f32 %v246, 1.442695
    %v248 = vpow.pop %v247
    %v249 = vsub.f32 1.0, %v248
    %v250 = vrcp.pop %v249
    %v251 = vmul.f32 %v243, %v250
    %v252 = vadd.f32 %v241, 65.0
    %v253 = vsub.f32 0.0, %v252
    %v254 = vrcp.pop 80.0
    %v255 = vmul.f32 %v253, %v254
    %v256 = vmul.f32 %v255, 1.442695
    %v257 = vpow.pop %v256
    %v258 = vmul.f32 %v257, 0.125
    %v259 = vadd.f32 %v241, 40.0
    %v260 = vmul.f32 %v259, 0.1
    %v261 = vsub.f32 0.0, %v259
    %v262 = vmul.f32 %v261, %v245
    %v263 = vmul.f32 %v262, 1.442695
    %v264 = vpow.pop %v263
    %v265 = vsub.f32 1.0, %v264
    %v266 = vrcp.pop %v265
    %v267 = vmul.f32 %v260, %v266
    %v268 = vrcp.pop 18.0
    %v269 = vmul.f32 %v253, %v268
    %v270 = vmul.f32 %v269, 1.442695
    %v271 = vpow.pop %v270
    %v272 = vmul.f32 %v271, 4.0
    %v273 = vrcp.pop 20.0
    %v274 = vmul.f32 %v253, %v273
    %v275 = vmul.f32 %v274, 1.442695
    %v276 = vpow.pop %v275
    %v277 = vmul.f32 %v276, 0.07
    %v278 = vadd.f32 %v241, 35.0
    %v279 = vsub.f32 0.0, %v278
    %v280 = vmul.f32 %v279, %v245
    %v281 = vmul.f32 %v280, 1.442695
    %v282 = vpow.pop %v281
    %v283 = vadd.f32 %v282, 1.0
    %v284 = vrcp.pop %v283
    %v285 = vmul.f32 1.0, %v284
    %v286 = vsub.f32 1.0, %v241
    %v288 = vrot.slane %v286, 1
    %v290 = vmul.f32 %v251, %v288
    %v292 = vrot.slane %v241, 1
    %v294 = vmul.f32 %v258, %v292
    %v295 = vsub.f32 %v290, %v294
    %v296 = vmul.f32 %v295, 0.01
    %v298 = vrot.slane %v296, 7
    %v300 = vadd.f32 %v241, %v298
    %v301 = vrot.slane %v286, 2
    %v303 = vmul.f32 %v267, %v301
    %v304 = vrot.slane %v241, 2
    %v306 = vmul.f32 %v272, %v304
    %v307 = vsub.f32 %v303, %v306
    %v308 = vmul.f32 %v307, 0.01
    %v310 = vrot.slane %v308, 6
    %v312 = vadd.f32 %v241, %v310
    %v313 = vrot.slane %v286, 3
    %v315 = vmul.f32 %v277, %v313
    %v316 = vrot.slane %v241, 3
    %v318 = vmul.f32 %v285, %v316
    %v319 = vsub.f32 %v315, %v318
    %v320 = vmul.f32 %v319, 0.01
    %v322 = vrot.slane %v320, 5
    %v324 = vadd.f32 %v241, %v322
    %v325 = vmul.f32 %v241, 0.5
    %v326 = vld [vmem:[#allocation2] sm:$0x1]
    %v327 = vadd.f32 %v325, %v326
    %vm328 = vcmp.gt.f32.partialorder %v327, 1.0
    %v329 = vsel %vm328, 0.0, %v327
    %v330 = vpack.c.bf16 %v329, %v329
    %v347 = vunpack.c.l.b16 %v207
    %v348 = vunpack.c.l.b16 %v208
    %v349 = vunpack.c.l.b16 %v209
    %v350 = vunpack.c.l.b16 %v210
    %v351 = vunpack.c.l.b16 %v211
    %v352 = vunpack.c.l.b16 %v212
    %v353 = vunpack.c.l.b16 %v213
    %v354 = vunpack.c.l.b16 %v214
    %v355 = vunpack.c.l.b16 %v215
    %v356 = vunpack.c.l.b16 %v216
    %v357 = vunpack.c.l.b16 %v217
    %v358 = vunpack.c.l.b16 %v218
    %v359 = vunpack.c.l.b16 %v219
    %v360 = vunpack.c.l.b16 %v220
    %v361 = vunpack.c.l.b16 %v221
    %v362 = vunpack.c.l.b16 %v222
    %v363 = vpack.c.b16 %v348, %v347
    %v364 = vpack.c.b16 %v350, %v349
    %v365 = vpack.c.b16 %v352, %v351
    %v366 = vpack.c.b16 %v354, %v353
    %v367 = vpack.c.b16 %v356, %v355
    %v368 = vpack.c.b16 %v358, %v357
    %v369 = vpack.c.b16 %v360, %v359
    %v370 = vpack.c.b16 %v362, %v361
    %379 = vmatprep.subr.bf16.mxu0 0
    %380 = vmatpush1.bf16.msra.mxu0 %v363
    %381 = vmatprep.subr.bf16.mxu0 0
    %382 = vmatpush1.bf16.msra.mxu0 %v364
    %383 = vmatprep.subr.bf16.mxu0 0
    %384 = vmatpush1.bf16.msra.mxu0 %v365
    %385 = vmatprep.subr.bf16.mxu0 0
    %386 = vmatpush1.bf16.msra.mxu0 %v366
    %387 = vmatprep.subr.bf16.mxu0 0
    %388 = vmatpush1.bf16.msra.mxu0 %v367
    %389 = vmatprep.subr.bf16.mxu0 0
    %390 = vmatpush1.bf16.msra.mxu0 %v368
    %391 = vmatprep.subr.bf16.mxu0 0
    %392 = vmatpush1.bf16.msra.mxu0 %v369
    %393 = vmatprep.subr.bf16.mxu0 0
    %394 = vmatpush1.bf16.msra.mxu0 %v370
    %395 = vmatprep.subr.bf16.mxu0 0
    %396 = vmatpush1.bf16.msra.mxu0 0
    %397 = vmatprep.subr.bf16.mxu0 0
    %398 = vmatpush1.bf16.msra.mxu0 0
    %399 = vmatprep.subr.bf16.mxu0 0
    %400 = vmatpush1.bf16.msra.mxu0 0
    %401 = vmatprep.subr.bf16.mxu0 0
    %402 = vmatpush1.bf16.msra.mxu0 0
    %403 = vmatprep.subr.bf16.mxu0 0
    %404 = vmatpush1.bf16.msra.mxu0 0
    %405 = vmatprep.subr.bf16.mxu0 0
    %406 = vmatpush1.bf16.msra.mxu0 0
    %407 = vmatprep.subr.bf16.mxu0 0
    %408 = vmatpush1.bf16.msra.mxu0 0
    %409 = vmatprep.subr.bf16.mxu0 0
    %410 = vmatpush1.bf16.msra.mxu0 0
    %411 = vmatprep.mubr.bf16.mxu0 0
    %412 = vmatmul.mubr.bf16.gmra.mrb[0].mxu0 %v330
    %v413 = vpop.f32.mrb[0].mxu0
    %v414 = vadd.f32 %v223, %v413
    %v415 = vpop.f32.mrb[0].mxu0
    %v416 = vpop.f32.mrb[0].mxu0
    %v417 = vpop.f32.mrb[0].mxu0
    %418 = vdwg.mxu0
    %v419 = vxor.u32 %v414, 2147483648
    %v420 = vmul.f32 %v419, 1.442695
    %v421 = vpow.pop %v420
    %v422 = vadd.f32 %v421, 1.0
    %v423 = vrcp.pop %v422
    %v424 = vmul.f32 1.0, %v423
    %v425 = vpack.c.bf16 %v424, %v424
    %v442 = vunpack.c.l.b16 %v224
    %v443 = vunpack.c.l.b16 %v225
    %v444 = vunpack.c.l.b16 %v226
    %v445 = vunpack.c.l.b16 %v227
    %v446 = vunpack.c.l.b16 %v228
    %v447 = vunpack.c.l.b16 %v229
    %v448 = vunpack.c.l.b16 %v230
    %v449 = vunpack.c.l.b16 %v231
    %v450 = vunpack.c.l.b16 %v232
    %v451 = vunpack.c.l.b16 %v233
    %v452 = vunpack.c.l.b16 %v234
    %v453 = vunpack.c.l.b16 %v235
    %v454 = vunpack.c.l.b16 %v236
    %v455 = vunpack.c.l.b16 %v237
    %v456 = vunpack.c.l.b16 %v238
    %v457 = vunpack.c.l.b16 %v239
    %v458 = vpack.c.b16 %v443, %v442
    %v459 = vpack.c.b16 %v445, %v444
    %v460 = vpack.c.b16 %v447, %v446
    %v461 = vpack.c.b16 %v449, %v448
    %v462 = vpack.c.b16 %v451, %v450
    %v463 = vpack.c.b16 %v453, %v452
    %v464 = vpack.c.b16 %v455, %v454
    %v465 = vpack.c.b16 %v457, %v456
    %474 = vmatprep.subr.bf16.mxu0 0
    %475 = vmatpush1.bf16.msra.mxu0 %v458
    %476 = vmatprep.subr.bf16.mxu0 0
    %477 = vmatpush1.bf16.msra.mxu0 %v459
    %478 = vmatprep.subr.bf16.mxu0 0
    %479 = vmatpush1.bf16.msra.mxu0 %v460
    %480 = vmatprep.subr.bf16.mxu0 0
    %481 = vmatpush1.bf16.msra.mxu0 %v461
    %482 = vmatprep.subr.bf16.mxu0 0
    %483 = vmatpush1.bf16.msra.mxu0 %v462
    %484 = vmatprep.subr.bf16.mxu0 0
    %485 = vmatpush1.bf16.msra.mxu0 %v463
    %486 = vmatprep.subr.bf16.mxu0 0
    %487 = vmatpush1.bf16.msra.mxu0 %v464
    %488 = vmatprep.subr.bf16.mxu0 0
    %489 = vmatpush1.bf16.msra.mxu0 %v465
    %490 = vmatprep.subr.bf16.mxu0 0
    %491 = vmatpush1.bf16.msra.mxu0 0
    %492 = vmatprep.subr.bf16.mxu0 0
    %493 = vmatpush1.bf16.msra.mxu0 0
    %494 = vmatprep.subr.bf16.mxu0 0
    %495 = vmatpush1.bf16.msra.mxu0 0
    %496 = vmatprep.subr.bf16.mxu0 0
    %497 = vmatpush1.bf16.msra.mxu0 0
    %498 = vmatprep.subr.bf16.mxu0 0
    %499 = vmatpush1.bf16.msra.mxu0 0
    %500 = vmatprep.subr.bf16.mxu0 0
    %501 = vmatpush1.bf16.msra.mxu0 0
    %502 = vmatprep.subr.bf16.mxu0 0
    %503 = vmatpush1.bf16.msra.mxu0 0
    %504 = vmatprep.subr.bf16.mxu0 0
    %505 = vmatpush1.bf16.msra.mxu0 0
    %506 = vmatprep.mubr.bf16.mxu0 0
    %507 = vmatmul.mubr.bf16.gmra.mrb[0].mxu0 %v425
    %v508 = vpop.f32.mrb[0].mxu0
    %v509 = vadd.f32 %v240, %v508
    %v510 = vpop.f32.mrb[0].mxu0
    %v511 = vpop.f32.mrb[0].mxu0
    %v512 = vpop.f32.mrb[0].mxu0
    %513 = vdwg.mxu0
    %v514 = vxor.u32 %v509, 2147483648
    %v515 = vmul.f32 %v514, 1.442695
    %v516 = vpow.pop %v515
    %v517 = vadd.f32 %v516, 1.0
    %v518 = vrcp.pop %v517
    %v519 = vmul.f32 1.0, %v518
    %520 = vst [vmem:[#allocation11] sm:$0x1] %v519
    %v521 = vadd.f32 %v329, 55.0
    %v522 = vmul.f32 %v521, 0.01
    %v523 = vsub.f32 0.0, %v521
    %v524 = vmul.f32 %v523, %v245
    %v525 = vmul.f32 %v524, 1.442695
    %v526 = vpow.pop %v525
    %v527 = vsub.f32 1.0, %v526
    %v528 = vrcp.pop %v527
    %v529 = vmul.f32 %v522, %v528
    %v530 = vadd.f32 %v329, 65.0
    %v531 = vsub.f32 0.0, %v530
    %v532 = vmul.f32 %v531, %v254
    %v533 = vmul.f32 %v532, 1.442695
    %v534 = vpow.pop %v533
    %v535 = vmul.f32 %v534, 0.125
    %v536 = vadd.f32 %v329, 40.0
    %v537 = vmul.f32 %v536, 0.1
    %v538 = vsub.f32 0.0, %v536
    %v539 = vmul.f32 %v538, %v245
    %v540 = vmul.f32 %v539, 1.442695
    %v541 = vpow.pop %v540
    %v542 = vsub.f32 1.0, %v541
    %v543 = vrcp.pop %v542
    %v544 = vmul.f32 %v537, %v543
    %v545 = vmul.f32 %v531, %v268
    %v546 = vmul.f32 %v545, 1.442695
    %v547 = vpow.pop %v546
    %v548 = vmul.f32 %v547, 4.0
    %v549 = vmul.f32 %v531, %v273
    %v550 = vmul.f32 %v549, 1.442695
    %v551 = vpow.pop %v550
    %v552 = vmul.f32 %v551, 0.07
    %v553 = vadd.f32 %v329, 35.0
    %v554 = vsub.f32 0.0, %v553
    %v555 = vmul.f32 %v554, %v245
    %v556 = vmul.f32 %v555, 1.442695
    %v557 = vpow.pop %v556
    %v558 = vadd.f32 %v557, 1.0
    %v559 = vrcp.pop %v558
    %v560 = vmul.f32 1.0, %v559
    %v561 = vsub.f32 1.0, %v300
    %v563 = vrot.slane %v561, 1
    %v565 = vmul.f32 %v529, %v563
    %v567 = vrot.slane %v300, 1
    %v569 = vmul.f32 %v535, %v567
    %v570 = vsub.f32 %v565, %v569
    %v571 = vmul.f32 %v570, 0.01
    %v573 = vrot.slane %v571, 7
    %v575 = vadd.f32 %v300, %v573
    %v576 = vsub.f32 1.0, %v312
    %v578 = vrot.slane %v576, 2
    %v580 = vmul.f32 %v544, %v578
    %v582 = vrot.slane %v312, 2
    %v584 = vmul.f32 %v548, %v582
    %v585 = vsub.f32 %v580, %v584
    %v586 = vmul.f32 %v585, 0.01
    %v588 = vrot.slane %v586, 6
    %v590 = vadd.f32 %v312, %v588
    %v591 = vsub.f32 1.0, %v324
    %v593 = vrot.slane %v591, 3
    %v595 = vmul.f32 %v552, %v593
    %v597 = vrot.slane %v324, 3
    %v599 = vmul.f32 %v560, %v597
    %v600 = vsub.f32 %v595, %v599
    %v601 = vmul.f32 %v600, 0.01
    %v603 = vrot.slane %v601, 5
    %v605 = vadd.f32 %v324, %v603
    %v606 = vmul.f32 %v329, 0.5
    %v607 = vld [vmem:[#allocation2 + $0x1] sm:$0x1]
    %v608 = vadd.f32 %v606, %v607
    %vm609 = vcmp.gt.f32.partialorder %v608, 1.0
    %v610 = vsel %vm609, 0.0, %v608
    %v611 = vpack.c.bf16 %v610, %v610
    %612 = vmatprep.subr.bf16.mxu0 0
    %613 = vmatpush1.bf16.msra.mxu0 %v363
    %614 = vmatprep.subr.bf16.mxu0 0
    %615 = vmatpush1.bf16.msra.mxu0 %v364
    %616 = vmatprep.subr.bf16.mxu0 0
    %617 = vmatpush1.bf16.msra.mxu0 %v365
    %618 = vmatprep.subr.bf16.mxu0 0
    %619 = vmatpush1.bf16.msra.mxu0 %v366
    %620 = vmatprep.subr.bf16.mxu0 0
    %621 = vmatpush1.bf16.msra.mxu0 %v367
    %622 = vmatprep.subr.bf16.mxu0 0
    %623 = vmatpush1.bf16.msra.mxu0 %v368
    %624 = vmatprep.subr.bf16.mxu0 0
    %625 = vmatpush1.bf16.msra.mxu0 %v369
    %626 = vmatprep.subr.bf16.mxu0 0
    %627 = vmatpush1.bf16.msra.mxu0 %v370
    %628 = vmatprep.subr.bf16.mxu0 0
    %629 = vmatpush1.bf16.msra.mxu0 0
    %630 = vmatprep.subr.bf16.mxu0 0
    %631 = vmatpush1.bf16.msra.mxu0 0
    %632 = vmatprep.subr.bf16.mxu0 0
    %633 = vmatpush1.bf16.msra.mxu0 0
    %634 = vmatprep.subr.bf16.mxu0 0
    %635 = vmatpush1.bf16.msra.mxu0 0
    %636 = vmatprep.subr.bf16.mxu0 0
    %637 = vmatpush1.bf16.msra.mxu0 0
    %638 = vmatprep.subr.bf16.mxu0 0
    %639 = vmatpush1.bf16.msra.mxu0 0
    %640 = vmatprep.subr.bf16.mxu0 0
    %641 = vmatpush1.bf16.msra.mxu0 0
    %642 = vmatprep.subr.bf16.mxu0 0
    %643 = vmatpush1.bf16.msra.mxu0 0
    %644 = vmatprep.mubr.bf16.mxu0 0
    %645 = vmatmul.mubr.bf16.gmra.mrb[0].mxu0 %v611
    %v646 = vpop.f32.mrb[0].mxu0
    %v647 = vadd.f32 %v223, %v646
    %v648 = vpop.f32.mrb[0].mxu0
    %v649 = vpop.f32.mrb[0].mxu0
    %v650 = vpop.f32.mrb[0].mxu0
    %651 = vdwg.mxu0
    %v652 = vxor.u32 %v647, 2147483648
    %v653 = vmul.f32 %v652, 1.442695
    %v654 = vpow.pop %v653
    %v655 = vadd.f32 %v654, 1.0
    %v656 = vrcp.pop %v655
    %v657 = vmul.f32 1.0, %v656
    %v658 = vpack.c.bf16 %v657, %v657
    %659 = vmatprep.subr.bf16.mxu0 0
    %660 = vmatpush1.bf16.msra.mxu0 %v458
    %661 = vmatprep.subr.bf16.mxu0 0
    %662 = vmatpush1.bf16.msra.mxu0 %v459
    %663 = vmatprep.subr.bf16.mxu0 0
    %664 = vmatpush1.bf16.msra.mxu0 %v460
    %665 = vmatprep.subr.bf16.mxu0 0
    %666 = vmatpush1.bf16.msra.mxu0 %v461
    %667 = vmatprep.subr.bf16.mxu0 0
    %668 = vmatpush1.bf16.msra.mxu0 %v462
    %669 = vmatprep.subr.bf16.mxu0 0
    %670 = vmatpush1.bf16.msra.mxu0 %v463
    %671 = vmatprep.subr.bf16.mxu0 0
    %672 = vmatpush1.bf16.msra.mxu0 %v464
    %673 = vmatprep.subr.bf16.mxu0 0
    %674 = vmatpush1.bf16.msra.mxu0 %v465
    %675 = vmatprep.subr.bf16.mxu0 0
    %676 = vmatpush1.bf16.msra.mxu0 0
    %677 = vmatprep.subr.bf16.mxu0 0
    %678 = vmatpush1.bf16.msra.mxu0 0
    %679 = vmatprep.subr.bf16.mxu0 0
    %680 = vmatpush1.bf16.msra.mxu0 0
    %681 = vmatprep.subr.bf16.mxu0 0
    %682 = vmatpush1.bf16.msra.mxu0 0
    %683 = vmatprep.subr.bf16.mxu0 0
    %684 = vmatpush1.bf16.msra.mxu0 0
    %685 = vmatprep.subr.bf16.mxu0 0
    %686 = vmatpush1.bf16.msra.mxu0 0
    %687 = vmatprep.subr.bf16.mxu0 0
    %688 = vmatpush1.bf16.msra.mxu0 0
    %689 = vmatprep.subr.bf16.mxu0 0
    %690 = vmatpush1.bf16.msra.mxu0 0
    %691 = vmatprep.mubr.bf16.mxu0 0
    %692 = vmatmul.mubr.bf16.gmra.mrb[0].mxu0 %v658
    %v693 = vpop.f32.mrb[0].mxu0
    %v694 = vadd.f32 %v240, %v693
    %v695 = vpop.f32.mrb[0].mxu0
    %v696 = vpop.f32.mrb[0].mxu0
    %v697 = vpop.f32.mrb[0].mxu0
    %698 = vdwg.mxu0
    %v699 = vxor.u32 %v694, 2147483648
    %v700 = vmul.f32 %v699, 1.442695
    %v701 = vpow.pop %v700
    %v702 = vadd.f32 %v701, 1.0
    %v703 = vrcp.pop %v702
    %v704 = vmul.f32 1.0, %v703
    %705 = vst [vmem:[#allocation11 + $0x1] sm:$0x1] %v704
    %v706 = vadd.f32 %v610, 55.0
    %v707 = vmul.f32 %v706, 0.01
    %v708 = vsub.f32 0.0, %v706
    %v709 = vmul.f32 %v708, %v245
    %v710 = vmul.f32 %v709, 1.442695
    %v711 = vpow.pop %v710
    %v712 = vsub.f32 1.0, %v711
    %v713 = vrcp.pop %v712
    %v714 = vmul.f32 %v707, %v713
    %v715 = vadd.f32 %v610, 65.0
    %v716 = vsub.f32 0.0, %v715
    %v717 = vmul.f32 %v716, %v254
    %v718 = vmul.f32 %v717, 1.442695
    %v719 = vpow.pop %v718
    %v720 = vmul.f32 %v719, 0.125
    %v721 = vadd.f32 %v610, 40.0
    %v722 = vmul.f32 %v721, 0.1
    %v723 = vsub.f32 0.0, %v721
    %v724 = vmul.f32 %v723, %v245
    %v725 = vmul.f32 %v724, 1.442695
    %v726 = vpow.pop %v725
    %v727 = vsub.f32 1.0, %v726
    %v728 = vrcp.pop %v727
    %v729 = vmul.f32 %v722, %v728
    %v730 = vmul.f32 %v716, %v268
    %v731 = vmul.f32 %v730, 1.442695
    %v732 = vpow.pop %v731
    %v733 = vmul.f32 %v732, 4.0
    %v734 = vmul.f32 %v716, %v273
    %v735 = vmul.f32 %v734, 1.442695
    %v736 = vpow.pop %v735
    %v737 = vmul.f32 %v736, 0.07
    %v738 = vadd.f32 %v610, 35.0
    %v739 = vsub.f32 0.0, %v738
    %v740 = vmul.f32 %v739, %v245
    %v741 = vmul.f32 %v740, 1.442695
    %v742 = vpow.pop %v741
    %v743 = vadd.f32 %v742, 1.0
    %v744 = vrcp.pop %v743
    %v745 = vmul.f32 1.0, %v744
    %v746 = vsub.f32 1.0, %v575
    %v748 = vrot.slane %v746, 1
    %v750 = vmul.f32 %v714, %v748
    %v752 = vrot.slane %v575, 1
    %v754 = vmul.f32 %v720, %v752
    %v755 = vsub.f32 %v750, %v754
    %v756 = vmul.f32 %v755, 0.01
    %v758 = vrot.slane %v756, 7
    %v760 = vadd.f32 %v575, %v758
    %v761 = vsub.f32 1.0, %v590
    %v763 = vrot.slane %v761, 2
    %v765 = vmul.f32 %v729, %v763
    %v767 = vrot.slane %v590, 2
    %v769 = vmul.f32 %v733, %v767
    %v770 = vsub.f32 %v765, %v769
    %v771 = vmul.f32 %v770, 0.01
    %v773 = vrot.slane %v771, 6
    %v775 = vadd.f32 %v590, %v773
    %v776 = vsub.f32 1.0, %v605
    %v778 = vrot.slane %v776, 3
    %v780 = vmul.f32 %v737, %v778
    %v782 = vrot.slane %v605, 3
    %v784 = vmul.f32 %v745, %v782
    %v785 = vsub.f32 %v780, %v784
    %v786 = vmul.f32 %v785, 0.01
    %v788 = vrot.slane %v786, 5
    %v790 = vadd.f32 %v605, %v788
    %v791 = vmul.f32 %v610, 0.5
    %v792 = vld [vmem:[#allocation2 + $0x2] sm:$0x1]
    %v793 = vadd.f32 %v791, %v792
    %vm794 = vcmp.gt.f32.partialorder %v793, 1.0
    %v795 = vsel %vm794, 0.0, %v793
    %v796 = vpack.c.bf16 %v795, %v795
    %797 = vmatprep.subr.bf16.mxu0 0
    %798 = vmatpush1.bf16.msra.mxu0 %v363
    %799 = vmatprep.subr.bf16.mxu0 0
    %800 = vmatpush1.bf16.msra.mxu0 %v364
    %801 = vmatprep.subr.bf16.mxu0 0
    %802 = vmatpush1.bf16.msra.mxu0 %v365
    %803 = vmatprep.subr.bf16.mxu0 0
    %804 = vmatpush1.bf16.msra.mxu0 %v366
    %805 = vmatprep.subr.bf16.mxu0 0
    %806 = vmatpush1.bf16.msra.mxu0 %v367
    %807 = vmatprep.subr.bf16.mxu0 0
    %808 = vmatpush1.bf16.msra.mxu0 %v368
    %809 = vmatprep.subr.bf16.mxu0 0
    %810 = vmatpush1.bf16.msra.mxu0 %v369
    %811 = vmatprep.subr.bf16.mxu0 0
    %812 = vmatpush1.bf16.msra.mxu0 %v370
    %813 = vmatprep.subr.bf16.mxu0 0
    %814 = vmatpush1.bf16.msra.mxu0 0
    %815 = vmatprep.subr.bf16.mxu0 0
    %816 = vmatpush1.bf16.msra.mxu0 0
    %817 = vmatprep.subr.bf16.mxu0 0
    %818 = vmatpush1.bf16.msra.mxu0 0
    %819 = vmatprep.subr.bf16.mxu0 0
    %820 = vmatpush1.bf16.msra.mxu0 0
    %821 = vmatprep.subr.bf16.mxu0 0
    %822 = vmatpush1.bf16.msra.mxu0 0
    %823 = vmatprep.subr.bf16.mxu0 0
    %824 = vmatpush1.bf16.msra.mxu0 0
    %825 = vmatprep.subr.bf16.mxu0 0
    %826 = vmatpush1.bf16.msra.mxu0 0
    %827 = vmatprep.subr.bf16.mxu0 0
    %828 = vmatpush1.bf16.msra.mxu0 0
    %829 = vmatprep.mubr.bf16.mxu0 0
    %830 = vmatmul.mubr.bf16.gmra.mrb[0].mxu0 %v796
    %v831 = vpop.f32.mrb[0].mxu0
    %v832 = vadd.f32 %v223, %v831
    %v833 = vpop.f32.mrb[0].mxu0
    %v834 = vpop.f32.mrb[0].mxu0
    %v835 = vpop.f32.mrb[0].mxu0
    %836 = vdwg.mxu0
    %v837 = vxor.u32 %v832, 2147483648
    %v838 = vmul.f32 %v837, 1.442695
    %v839 = vpow.pop %v838
    %v840 = vadd.f32 %v839, 1.0
    %v841 = vrcp.pop %v840
    %v842 = vmul.f32 1.0, %v841
    %v843 = vpack.c.bf16 %v842, %v842
    %844 = vmatprep.subr.bf16.mxu0 0
    %845 = vmatpush1.bf16.msra.mxu0 %v458
    %846 = vmatprep.subr.bf16.mxu0 0
    %847 = vmatpush1.bf16.msra.mxu0 %v459
    %848 = vmatprep.subr.bf16.mxu0 0
    %849 = vmatpush1.bf16.msra.mxu0 %v460
    %850 = vmatprep.subr.bf16.mxu0 0
    %851 = vmatpush1.bf16.msra.mxu0 %v461
    %852 = vmatprep.subr.bf16.mxu0 0
    %853 = vmatpush1.bf16.msra.mxu0 %v462
    %854 = vmatprep.subr.bf16.mxu0 0
    %855 = vmatpush1.bf16.msra.mxu0 %v463
    %856 = vmatprep.subr.bf16.mxu0 0
    %857 = vmatpush1.bf16.msra.mxu0 %v464
    %858 = vmatprep.subr.bf16.mxu0 0
    %859 = vmatpush1.bf16.msra.mxu0 %v465
    %860 = vmatprep.subr.bf16.mxu0 0
    %861 = vmatpush1.bf16.msra.mxu0 0
    %862 = vmatprep.subr.bf16.mxu0 0
    %863 = vmatpush1.bf16.msra.mxu0 0
    %864 = vmatprep.subr.bf16.mxu0 0
    %865 = vmatpush1.bf16.msra.mxu0 0
    %866 = vmatprep.subr.bf16.mxu0 0
    %867 = vmatpush1.bf16.msra.mxu0 0
    %868 = vmatprep.subr.bf16.mxu0 0
    %869 = vmatpush1.bf16.msra.mxu0 0
    %870 = vmatprep.subr.bf16.mxu0 0
    %871 = vmatpush1.bf16.msra.mxu0 0
    %872 = vmatprep.subr.bf16.mxu0 0
    %873 = vmatpush1.bf16.msra.mxu0 0
    %874 = vmatprep.subr.bf16.mxu0 0
    %875 = vmatpush1.bf16.msra.mxu0 0
    %876 = vmatprep.mubr.bf16.mxu0 0
    %877 = vmatmul.mubr.bf16.gmra.mrb[0].mxu0 %v843
    %v878 = vpop.f32.mrb[0].mxu0
    %v879 = vadd.f32 %v240, %v878
    %v880 = vpop.f32.mrb[0].mxu0
    %v881 = vpop.f32.mrb[0].mxu0
    %v882 = vpop.f32.mrb[0].mxu0
    %883 = vdwg.mxu0
    %v884 = vxor.u32 %v879, 2147483648
    %v885 = vmul.f32 %v884, 1.442695
    %v886 = vpow.pop %v885
    %v887 = vadd.f32 %v886, 1.0
    %v888 = vrcp.pop %v887
    %v889 = vmul.f32 1.0, %v888
    %890 = vst [vmem:[#allocation11 + $0x2] sm:$0x1] %v889
    %v891 = vadd.f32 %v795, 55.0
    %v892 = vmul.f32 %v891, 0.01
    %v893 = vsub.f32 0.0, %v891
    %v894 = vmul.f32 %v893, %v245
    %v895 = vmul.f32 %v894, 1.442695
    %v896 = vpow.pop %v895
    %v897 = vsub.f32 1.0, %v896
    %v898 = vrcp.pop %v897
    %v899 = vmul.f32 %v892, %v898
    %v900 = vadd.f32 %v795, 65.0
    %v901 = vsub.f32 0.0, %v900
    %v902 = vmul.f32 %v901, %v254
    %v903 = vmul.f32 %v902, 1.442695
    %v904 = vpow.pop %v903
    %v905 = vmul.f32 %v904, 0.125
    %v906 = vadd.f32 %v795, 40.0
    %v907 = vmul.f32 %v906, 0.1
    %v908 = vsub.f32 0.0, %v906
    %v909 = vmul.f32 %v908, %v245
    %v910 = vmul.f32 %v909, 1.442695
    %v911 = vpow.pop %v910
    %v912 = vsub.f32 1.0, %v911
    %v913 = vrcp.pop %v912
    %v914 = vmul.f32 %v907, %v913
    %v915 = vmul.f32 %v901, %v268
    %v916 = vmul.f32 %v915, 1.442695
    %v917 = vpow.pop %v916
    %v918 = vmul.f32 %v917, 4.0
    %v919 = vmul.f32 %v901, %v273
    %v920 = vmul.f32 %v919, 1.442695
    %v921 = vpow.pop %v920
    %v922 = vmul.f32 %v921, 0.07
    %v923 = vadd.f32 %v795, 35.0
    %v924 = vsub.f32 0.0, %v923
    %v925 = vmul.f32 %v924, %v245
    %v926 = vmul.f32 %v925, 1.442695
    %v927 = vpow.pop %v926
    %v928 = vadd.f32 %v927, 1.0
    %v929 = vrcp.pop %v928
    %v930 = vmul.f32 1.0, %v929
    %v931 = vsub.f32 1.0, %v760
    %v933 = vrot.slane %v931, 1
    %v935 = vmul.f32 %v899, %v933
    %v937 = vrot.slane %v760, 1
    %v939 = vmul.f32 %v905, %v937
    %v940 = vsub.f32 %v935, %v939
    %v941 = vmul.f32 %v940, 0.01
    %v943 = vrot.slane %v941, 7
    %v945 = vadd.f32 %v760, %v943
    %v946 = vsub.f32 1.0, %v775
    %v948 = vrot.slane %v946, 2
    %v950 = vmul.f32 %v914, %v948
    %v952 = vrot.slane %v775, 2
    %v954 = vmul.f32 %v918, %v952
    %v955 = vsub.f32 %v950, %v954
    %v956 = vmul.f32 %v955, 0.01
    %v958 = vrot.slane %v956, 6
    %v960 = vadd.f32 %v775, %v958
    %v961 = vsub.f32 1.0, %v790
    %v963 = vrot.slane %v961, 3
    %v965 = vmul.f32 %v922, %v963
    %v967 = vrot.slane %v790, 3
    %v969 = vmul.f32 %v930, %v967
    %v970 = vsub.f32 %v965, %v969
    %v971 = vmul.f32 %v970, 0.01
    %v973 = vrot.slane %v971, 5
    %v975 = vadd.f32 %v790, %v973
    %v976 = vmul.f32 %v795, 0.5
    %v977 = vld [vmem:[#allocation2 + $0x3] sm:$0x1]
    %v978 = vadd.f32 %v976, %v977
    %vm979 = vcmp.gt.f32.partialorder %v978, 1.0
    %v980 = vsel %vm979, 0.0, %v978
    %v981 = vpack.c.bf16 %v980, %v980
    %982 = vmatprep.subr.bf16.mxu0 0
    %983 = vmatpush1.bf16.msra.mxu0 %v363
    %984 = vmatprep.subr.bf16.mxu0 0
    %985 = vmatpush1.bf16.msra.mxu0 %v364
    %986 = vmatprep.subr.bf16.mxu0 0
    %987 = vmatpush1.bf16.msra.mxu0 %v365
    %988 = vmatprep.subr.bf16.mxu0 0
    %989 = vmatpush1.bf16.msra.mxu0 %v366
    %990 = vmatprep.subr.bf16.mxu0 0
    %991 = vmatpush1.bf16.msra.mxu0 %v367
    %992 = vmatprep.subr.bf16.mxu0 0
    %993 = vmatpush1.bf16.msra.mxu0 %v368
    %994 = vmatprep.subr.bf16.mxu0 0
    %995 = vmatpush1.bf16.msra.mxu0 %v369
    %996 = vmatprep.subr.bf16.mxu0 0
    %997 = vmatpush1.bf16.msra.mxu0 %v370
    %998 = vmatprep.subr.bf16.mxu0 0
    %999 = vmatpush1.bf16.msra.mxu0 0
    %1000 = vmatprep.subr.bf16.mxu0 0
    %1001 = vmatpush1.bf16.msra.mxu0 0
    %1002 = vmatprep.subr.bf16.mxu0 0
    %1003 = vmatpush1.bf16.msra.mxu0 0
    %1004 = vmatprep.subr.bf16.mxu0 0
    %1005 = vmatpush1.bf16.msra.mxu0 0
    %1006 = vmatprep.subr.bf16.mxu0 0
    %1007 = vmatpush1.bf16.msra.mxu0 0
    %1008 = vmatprep.subr.bf16.mxu0 0
    %1009 = vmatpush1.bf16.msra.mxu0 0
    %1010 = vmatprep.subr.bf16.mxu0 0
    %1011 = vmatpush1.bf16.msra.mxu0 0
    %1012 = vmatprep.subr.bf16.mxu0 0
    %1013 = vmatpush1.bf16.msra.mxu0 0
    %1014 = vmatprep.mubr.bf16.mxu0 0
    %1015 = vmatmul.mubr.bf16.gmra.mrb[0].mxu0 %v981
    %v1016 = vpop.f32.mrb[0].mxu0
    %v1017 = vadd.f32 %v223, %v1016
    %v1018 = vpop.f32.mrb[0].mxu0
    %v1019 = vpop.f32.mrb[0].mxu0
    %v1020 = vpop.f32.mrb[0].mxu0
    %1021 = vdwg.mxu0
    %v1022 = vxor.u32 %v1017, 2147483648
    %v1023 = vmul.f32 %v1022, 1.442695
    %v1024 = vpow.pop %v1023
    %v1025 = vadd.f32 %v1024, 1.0
    %v1026 = vrcp.pop %v1025
    %v1027 = vmul.f32 1.0, %v1026
    %v1028 = vpack.c.bf16 %v1027, %v1027
    %1029 = vmatprep.subr.bf16.mxu0 0
    %1030 = vmatpush1.bf16.msra.mxu0 %v458
    %1031 = vmatprep.subr.bf16.mxu0 0
    %1032 = vmatpush1.bf16.msra.mxu0 %v459
    %1033 = vmatprep.subr.bf16.mxu0 0
    %1034 = vmatpush1.bf16.msra.mxu0 %v460
    %1035 = vmatprep.subr.bf16.mxu0 0
    %1036 = vmatpush1.bf16.msra.mxu0 %v461
    %1037 = vmatprep.subr.bf16.mxu0 0
    %1038 = vmatpush1.bf16.msra.mxu0 %v462
    %1039 = vmatprep.subr.bf16.mxu0 0
    %1040 = vmatpush1.bf16.msra.mxu0 %v463
    %1041 = vmatprep.subr.bf16.mxu0 0
    %1042 = vmatpush1.bf16.msra.mxu0 %v464
    %1043 = vmatprep.subr.bf16.mxu0 0
    %1044 = vmatpush1.bf16.msra.mxu0 %v465
    %1045 = vmatprep.subr.bf16.mxu0 0
    %1046 = vmatpush1.bf16.msra.mxu0 0
    %1047 = vmatprep.subr.bf16.mxu0 0
    %1048 = vmatpush1.bf16.msra.mxu0 0
    %1049 = vmatprep.subr.bf16.mxu0 0
    %1050 = vmatpush1.bf16.msra.mxu0 0
    %1051 = vmatprep.subr.bf16.mxu0 0
    %1052 = vmatpush1.bf16.msra.mxu0 0
    %1053 = vmatprep.subr.bf16.mxu0 0
    %1054 = vmatpush1.bf16.msra.mxu0 0
    %1055 = vmatprep.subr.bf16.mxu0 0
    %1056 = vmatpush1.bf16.msra.mxu0 0
    %1057 = vmatprep.subr.bf16.mxu0 0
    %1058 = vmatpush1.bf16.msra.mxu0 0
    %1059 = vmatprep.subr.bf16.mxu0 0
    %1060 = vmatpush1.bf16.msra.mxu0 0
    %1061 = vmatprep.mubr.bf16.mxu0 0
    %1062 = vmatmul.mubr.bf16.gmra.mrb[0].mxu0 %v1028
    %v1063 = vpop.f32.mrb[0].mxu0
    %v1064 = vadd.f32 %v240, %v1063
    %v1065 = vpop.f32.mrb[0].mxu0
    %v1066 = vpop.f32.mrb[0].mxu0
    %v1067 = vpop.f32.mrb[0].mxu0
    %1068 = vdwg.mxu0
    %v1069 = vxor.u32 %v1064, 2147483648
    %v1070 = vmul.f32 %v1069, 1.442695
    %v1071 = vpow.pop %v1070
    %v1072 = vadd.f32 %v1071, 1.0
    %v1073 = vrcp.pop %v1072
    %v1074 = vmul.f32 1.0, %v1073
    %1075 = vst [vmem:[#allocation11 + $0x3] sm:$0x1] %v1074
    %v1076 = vadd.f32 %v980, 55.0
    %v1077 = vmul.f32 %v1076, 0.01
    %v1078 = vsub.f32 0.0, %v1076
    %v1079 = vmul.f32 %v1078, %v245
    %v1080 = vmul.f32 %v1079, 1.442695
    %v1081 = vpow.pop %v1080
    %v1082 = vsub.f32 1.0, %v1081
    %v1083 = vrcp.pop %v1082
    %v1084 = vmul.f32 %v1077, %v1083
    %v1085 = vadd.f32 %v980, 65.0
    %v1086 = vsub.f32 0.0, %v1085
    %v1087 = vmul.f32 %v1086, %v254
    %v1088 = vmul.f32 %v1087, 1.442695
    %v1089 = vpow.pop %v1088
    %v1090 = vmul.f32 %v1089, 0.125
    %v1091 = vadd.f32 %v980, 40.0
    %v1092 = vmul.f32 %v1091, 0.1
    %v1093 = vsub.f32 0.0, %v1091
    %v1094 = vmul.f32 %v1093, %v245
    %v1095 = vmul.f32 %v1094, 1.442695
    %v1096 = vpow.pop %v1095
    %v1097 = vsub.f32 1.0, %v1096
    %v1098 = vrcp.pop %v1097
    %v1099 = vmul.f32 %v1092, %v1098
    %v1100 = vmul.f32 %v1086, %v268
    %v1101 = vmul.f32 %v1100, 1.442695
    %v1102 = vpow.pop %v1101
    %v1103 = vmul.f32 %v1102, 4.0
    %v1104 = vmul.f32 %v1086, %v273
    %v1105 = vmul.f32 %v1104, 1.442695
    %v1106 = vpow.pop %v1105
    %v1107 = vmul.f32 %v1106, 0.07
    %v1108 = vadd.f32 %v980, 35.0
    %v1109 = vsub.f32 0.0, %v1108
    %v1110 = vmul.f32 %v1109, %v245
    %v1111 = vmul.f32 %v1110, 1.442695
    %v1112 = vpow.pop %v1111
    %v1113 = vadd.f32 %v1112, 1.0
    %v1114 = vrcp.pop %v1113
    %v1115 = vmul.f32 1.0, %v1114
    %v1116 = vsub.f32 1.0, %v945
    %v1118 = vrot.slane %v1116, 1
    %v1120 = vmul.f32 %v1084, %v1118
    %v1122 = vrot.slane %v945, 1
    %v1124 = vmul.f32 %v1090, %v1122
    %v1125 = vsub.f32 %v1120, %v1124
    %v1126 = vmul.f32 %v1125, 0.01
    %v1128 = vrot.slane %v1126, 7
    %v1130 = vadd.f32 %v945, %v1128
    %v1131 = vsub.f32 1.0, %v960
    %v1133 = vrot.slane %v1131, 2
    %v1135 = vmul.f32 %v1099, %v1133
    %v1137 = vrot.slane %v960, 2
    %v1139 = vmul.f32 %v1103, %v1137
    %v1140 = vsub.f32 %v1135, %v1139
    %v1141 = vmul.f32 %v1140, 0.01
    %v1143 = vrot.slane %v1141, 6
    %v1145 = vadd.f32 %v960, %v1143
    %v1146 = vsub.f32 1.0, %v975
    %v1148 = vrot.slane %v1146, 3
    %v1150 = vmul.f32 %v1107, %v1148
    %v1152 = vrot.slane %v975, 3
    %v1154 = vmul.f32 %v1115, %v1152
    %v1155 = vsub.f32 %v1150, %v1154
    %v1156 = vmul.f32 %v1155, 0.01
    %v1158 = vrot.slane %v1156, 5
    %v1160 = vadd.f32 %v975, %v1158
    %v1161 = vmul.f32 %v980, 0.5
    %v1162 = vld [vmem:[#allocation2 + $0x4] sm:$0x1]
    %v1163 = vadd.f32 %v1161, %v1162
    %vm1164 = vcmp.gt.f32.partialorder %v1163, 1.0
    %v1165 = vsel %vm1164, 0.0, %v1163
    %v1166 = vpack.c.bf16 %v1165, %v1165
    %1167 = vmatprep.subr.bf16.mxu0 0
    %1168 = vmatpush1.bf16.msra.mxu0 %v363
    %1169 = vmatprep.subr.bf16.mxu0 0
    %1170 = vmatpush1.bf16.msra.mxu0 %v364
    %1171 = vmatprep.subr.bf16.mxu0 0
    %1172 = vmatpush1.bf16.msra.mxu0 %v365
    %1173 = vmatprep.subr.bf16.mxu0 0
    %1174 = vmatpush1.bf16.msra.mxu0 %v366
    %1175 = vmatprep.subr.bf16.mxu0 0
    %1176 = vmatpush1.bf16.msra.mxu0 %v367
    %1177 = vmatprep.subr.bf16.mxu0 0
    %1178 = vmatpush1.bf16.msra.mxu0 %v368
    %1179 = vmatprep.subr.bf16.mxu0 0
    %1180 = vmatpush1.bf16.msra.mxu0 %v369
    %1181 = vmatprep.subr.bf16.mxu0 0
    %1182 = vmatpush1.bf16.msra.mxu0 %v370
    %1183 = vmatprep.subr.bf16.mxu0 0
    %1184 = vmatpush1.bf16.msra.mxu0 0
    %1185 = vmatprep.subr.bf16.mxu0 0
    %1186 = vmatpush1.bf16.msra.mxu0 0
    %1187 = vmatprep.subr.bf16.mxu0 0
    %1188 = vmatpush1.bf16.msra.mxu0 0
    %1189 = vmatprep.subr.bf16.mxu0 0
    %1190 = vmatpush1.bf16.msra.mxu0 0
    %1191 = vmatprep.subr.bf16.mxu0 0
    %1192 = vmatpush1.bf16.msra.mxu0 0
    %1193 = vmatprep.subr.bf16.mxu0 0
    %1194 = vmatpush1.bf16.msra.mxu0 0
    %1195 = vmatprep.subr.bf16.mxu0 0
    %1196 = vmatpush1.bf16.msra.mxu0 0
    %1197 = vmatprep.subr.bf16.mxu0 0
    %1198 = vmatpush1.bf16.msra.mxu0 0
    %1199 = vmatprep.mubr.bf16.mxu0 0
    %1200 = vmatmul.mubr.bf16.gmra.mrb[0].mxu0 %v1166
    %v1201 = vpop.f32.mrb[0].mxu0
    %v1202 = vadd.f32 %v223, %v1201
    %v1203 = vpop.f32.mrb[0].mxu0
    %v1204 = vpop.f32.mrb[0].mxu0
    %v1205 = vpop.f32.mrb[0].mxu0
    %1206 = vdwg.mxu0
    %v1207 = vxor.u32 %v1202, 2147483648
    %v1208 = vmul.f32 %v1207, 1.442695
    %v1209 = vpow.pop %v1208
    %v1210 = vadd.f32 %v1209, 1.0
    %v1211 = vrcp.pop %v1210
    %v1212 = vmul.f32 1.0, %v1211
    %v1213 = vpack.c.bf16 %v1212, %v1212
    %1214 = vmatprep.subr.bf16.mxu0 0
    %1215 = vmatpush1.bf16.msra.mxu0 %v458
    %1216 = vmatprep.subr.bf16.mxu0 0
    %1217 = vmatpush1.bf16.msra.mxu0 %v459
    %1218 = vmatprep.subr.bf16.mxu0 0
    %1219 = vmatpush1.bf16.msra.mxu0 %v460
    %1220 = vmatprep.subr.bf16.mxu0 0
    %1221 = vmatpush1.bf16.msra.mxu0 %v461
    %1222 = vmatprep.subr.bf16.mxu0 0
    %1223 = vmatpush1.bf16.msra.mxu0 %v462
    %1224 = vmatprep.subr.bf16.mxu0 0
    %1225 = vmatpush1.bf16.msra.mxu0 %v463
    %1226 = vmatprep.subr.bf16.mxu0 0
    %1227 = vmatpush1.bf16.msra.mxu0 %v464
    %1228 = vmatprep.subr.bf16.mxu0 0
    %1229 = vmatpush1.bf16.msra.mxu0 %v465
    %1230 = vmatprep.subr.bf16.mxu0 0
    %1231 = vmatpush1.bf16.msra.mxu0 0
    %1232 = vmatprep.subr.bf16.mxu0 0
    %1233 = vmatpush1.bf16.msra.mxu0 0
    %1234 = vmatprep.subr.bf16.mxu0 0
    %1235 = vmatpush1.bf16.msra.mxu0 0
    %1236 = vmatprep.subr.bf16.mxu0 0
    %1237 = vmatpush1.bf16.msra.mxu0 0
    %1238 = vmatprep.subr.bf16.mxu0 0
    %1239 = vmatpush1.bf16.msra.mxu0 0
    %1240 = vmatprep.subr.bf16.mxu0 0
    %1241 = vmatpush1.bf16.msra.mxu0 0
    %1242 = vmatprep.subr.bf16.mxu0 0
    %1243 = vmatpush1.bf16.msra.mxu0 0
    %1244 = vmatprep.subr.bf16.mxu0 0
    %1245 = vmatpush1.bf16.msra.mxu0 0
    %1246 = vmatprep.mubr.bf16.mxu0 0
    %1247 = vmatmul.mubr.bf16.gmra.mrb[0].mxu0 %v1213
    %v1248 = vpop.f32.mrb[0].mxu0
    %v1249 = vadd.f32 %v240, %v1248
    %v1250 = vpop.f32.mrb[0].mxu0
    %v1251 = vpop.f32.mrb[0].mxu0
    %v1252 = vpop.f32.mrb[0].mxu0
    %1253 = vdwg.mxu0
    %v1254 = vxor.u32 %v1249, 2147483648
    %v1255 = vmul.f32 %v1254, 1.442695
    %v1256 = vpow.pop %v1255
    %v1257 = vadd.f32 %v1256, 1.0
    %v1258 = vrcp.pop %v1257
    %v1259 = vmul.f32 1.0, %v1258
    %1260 = vst [vmem:[#allocation11 + $0x4] sm:$0x1] %v1259
    %v1261 = vadd.f32 %v1165, 55.0
    %v1262 = vmul.f32 %v1261, 0.01
    %v1263 = vsub.f32 0.0, %v1261
    %v1264 = vmul.f32 %v1263, %v245
    %v1265 = vmul.f32 %v1264, 1.442695
    %v1266 = vpow.pop %v1265
    %v1267 = vsub.f32 1.0, %v1266
    %v1268 = vrcp.pop %v1267
    %v1269 = vmul.f32 %v1262, %v1268
    %v1270 = vadd.f32 %v1165, 65.0
    %v1271 = vsub.f32 0.0, %v1270
    %v1272 = vmul.f32 %v1271, %v254
    %v1273 = vmul.f32 %v1272, 1.442695
    %v1274 = vpow.pop %v1273
    %v1275 = vmul.f32 %v1274, 0.125
    %v1276 = vadd.f32 %v1165, 40.0
    %v1277 = vmul.f32 %v1276, 0.1
    %v1278 = vsub.f32 0.0, %v1276
    %v1279 = vmul.f32 %v1278, %v245
    %v1280 = vmul.f32 %v1279, 1.442695
    %v1281 = vpow.pop %v1280
    %v1282 = vsub.f32 1.0, %v1281
    %v1283 = vrcp.pop %v1282
    %v1284 = vmul.f32 %v1277, %v1283
    %v1285 = vmul.f32 %v1271, %v268
    %v1286 = vmul.f32 %v1285, 1.442695
    %v1287 = vpow.pop %v1286
    %v1288 = vmul.f32 %v1287, 4.0
    %v1289 = vmul.f32 %v1271, %v273
    %v1290 = vmul.f32 %v1289, 1.442695
    %v1291 = vpow.pop %v1290
    %v1292 = vmul.f32 %v1291, 0.07
    %v1293 = vadd.f32 %v1165, 35.0
    %v1294 = vsub.f32 0.0, %v1293
    %v1295 = vmul.f32 %v1294, %v245
    %v1296 = vmul.f32 %v1295, 1.442695
    %v1297 = vpow.pop %v1296
    %v1298 = vadd.f32 %v1297, 1.0
    %v1299 = vrcp.pop %v1298
    %v1300 = vmul.f32 1.0, %v1299
    %v1301 = vsub.f32 1.0, %v1130
    %v1303 = vrot.slane %v1301, 1
    %v1305 = vmul.f32 %v1269, %v1303
    %v1307 = vrot.slane %v1130, 1
    %v1309 = vmul.f32 %v1275, %v1307
    %v1310 = vsub.f32 %v1305, %v1309
    %v1311 = vmul.f32 %v1310, 0.01
    %v1313 = vrot.slane %v1311, 7
    %v1315 = vadd.f32 %v1130, %v1313
    %v1316 = vsub.f32 1.0, %v1145
    %v1318 = vrot.slane %v1316, 2
    %v1320 = vmul.f32 %v1284, %v1318
    %v1322 = vrot.slane %v1145, 2
    %v1324 = vmul.f32 %v1288, %v1322
    %v1325 = vsub.f32 %v1320, %v1324
    %v1326 = vmul.f32 %v1325, 0.01
    %v1328 = vrot.slane %v1326, 6
    %v1330 = vadd.f32 %v1145, %v1328
    %v1331 = vsub.f32 1.0, %v1160
    %v1333 = vrot.slane %v1331, 3
    %v1335 = vmul.f32 %v1292, %v1333
    %v1337 = vrot.slane %v1160, 3
    %v1339 = vmul.f32 %v1300, %v1337
    %v1340 = vsub.f32 %v1335, %v1339
    %v1341 = vmul.f32 %v1340, 0.01
    %v1343 = vrot.slane %v1341, 5
    %v1345 = vadd.f32 %v1160, %v1343
    %v1346 = vmul.f32 %v1165, 0.5
    %v1347 = vld [vmem:[#allocation2 + $0x5] sm:$0x1]
    %v1348 = vadd.f32 %v1346, %v1347
    %vm1349 = vcmp.gt.f32.partialorder %v1348, 1.0
    %v1350 = vsel %vm1349, 0.0, %v1348
    %v1351 = vpack.c.bf16 %v1350, %v1350
    %1352 = vmatprep.subr.bf16.mxu0 0
    %1353 = vmatpush1.bf16.msra.mxu0 %v363
    %1354 = vmatprep.subr.bf16.mxu0 0
    %1355 = vmatpush1.bf16.msra.mxu0 %v364
    %1356 = vmatprep.subr.bf16.mxu0 0
    %1357 = vmatpush1.bf16.msra.mxu0 %v365
    %1358 = vmatprep.subr.bf16.mxu0 0
    %1359 = vmatpush1.bf16.msra.mxu0 %v366
    %1360 = vmatprep.subr.bf16.mxu0 0
    %1361 = vmatpush1.bf16.msra.mxu0 %v367
    %1362 = vmatprep.subr.bf16.mxu0 0
    %1363 = vmatpush1.bf16.msra.mxu0 %v368
    %1364 = vmatprep.subr.bf16.mxu0 0
    %1365 = vmatpush1.bf16.msra.mxu0 %v369
    %1366 = vmatprep.subr.bf16.mxu0 0
    %1367 = vmatpush1.bf16.msra.mxu0 %v370
    %1368 = vmatprep.subr.bf16.mxu0 0
    %1369 = vmatpush1.bf16.msra.mxu0 0
    %1370 = vmatprep.subr.bf16.mxu0 0
    %1371 = vmatpush1.bf16.msra.mxu0 0
    %1372 = vmatprep.subr.bf16.mxu0 0
    %1373 = vmatpush1.bf16.msra.mxu0 0
    %1374 = vmatprep.subr.bf16.mxu0 0
    %1375 = vmatpush1.bf16.msra.mxu0 0
    %1376 = vmatprep.subr.bf16.mxu0 0
    %1377 = vmatpush1.bf16.msra.mxu0 0
    %1378 = vmatprep.subr.bf16.mxu0 0
    %1379 = vmatpush1.bf16.msra.mxu0 0
    %1380 = vmatprep.subr.bf16.mxu0 0
    %1381 = vmatpush1.bf16.msra.mxu0 0
    %1382 = vmatprep.subr.bf16.mxu0 0
    %1383 = vmatpush1.bf16.msra.mxu0 0
    %1384 = vmatprep.mubr.bf16.mxu0 0
    %1385 = vmatmul.mubr.bf16.gmra.mrb[0].mxu0 %v1351
    %v1386 = vpop.f32.mrb[0].mxu0
    %v1387 = vadd.f32 %v223, %v1386
    %v1388 = vpop.f32.mrb[0].mxu0
    %v1389 = vpop.f32.mrb[0].mxu0
    %v1390 = vpop.f32.mrb[0].mxu0
    %1391 = vdwg.mxu0
    %v1392 = vxor.u32 %v1387, 2147483648
    %v1393 = vmul.f32 %v1392, 1.442695
    %v1394 = vpow.pop %v1393
    %v1395 = vadd.f32 %v1394, 1.0
    %v1396 = vrcp.pop %v1395
    %v1397 = vmul.f32 1.0, %v1396
    %v1398 = vpack.c.bf16 %v1397, %v1397
    %1399 = vmatprep.subr.bf16.mxu0 0
    %1400 = vmatpush1.bf16.msra.mxu0 %v458
    %1401 = vmatprep.subr.bf16.mxu0 0
    %1402 = vmatpush1.bf16.msra.mxu0 %v459
    %1403 = vmatprep.subr.bf16.mxu0 0
    %1404 = vmatpush1.bf16.msra.mxu0 %v460
    %1405 = vmatprep.subr.bf16.mxu0 0
    %1406 = vmatpush1.bf16.msra.mxu0 %v461
    %1407 = vmatprep.subr.bf16.mxu0 0
    %1408 = vmatpush1.bf16.msra.mxu0 %v462
    %1409 = vmatprep.subr.bf16.mxu0 0
    %1410 = vmatpush1.bf16.msra.mxu0 %v463
    %1411 = vmatprep.subr.bf16.mxu0 0
    %1412 = vmatpush1.bf16.msra.mxu0 %v464
    %1413 = vmatprep.subr.bf16.mxu0 0
    %1414 = vmatpush1.bf16.msra.mxu0 %v465
    %1415 = vmatprep.subr.bf16.mxu0 0
    %1416 = vmatpush1.bf16.msra.mxu0 0
    %1417 = vmatprep.subr.bf16.mxu0 0
    %1418 = vmatpush1.bf16.msra.mxu0 0
    %1419 = vmatprep.subr.bf16.mxu0 0
    %1420 = vmatpush1.bf16.msra.mxu0 0
    %1421 = vmatprep.subr.bf16.mxu0 0
    %1422 = vmatpush1.bf16.msra.mxu0 0
    %1423 = vmatprep.subr.bf16.mxu0 0
    %1424 = vmatpush1.bf16.msra.mxu0 0
    %1425 = vmatprep.subr.bf16.mxu0 0
    %1426 = vmatpush1.bf16.msra.mxu0 0
    %1427 = vmatprep.subr.bf16.mxu0 0
    %1428 = vmatpush1.bf16.msra.mxu0 0
    %1429 = vmatprep.subr.bf16.mxu0 0
    %1430 = vmatpush1.bf16.msra.mxu0 0
    %1431 = vmatprep.mubr.bf16.mxu0 0
    %1432 = vmatmul.mubr.bf16.gmra.mrb[0].mxu0 %v1398
    %v1433 = vpop.f32.mrb[0].mxu0
    %v1434 = vadd.f32 %v240, %v1433
    %v1435 = vpop.f32.mrb[0].mxu0
    %v1436 = vpop.f32.mrb[0].mxu0
    %v1437 = vpop.f32.mrb[0].mxu0
    %1438 = vdwg.mxu0
    %v1439 = vxor.u32 %v1434, 2147483648
    %v1440 = vmul.f32 %v1439, 1.442695
    %v1441 = vpow.pop %v1440
    %v1442 = vadd.f32 %v1441, 1.0
    %v1443 = vrcp.pop %v1442
    %v1444 = vmul.f32 1.0, %v1443
    %1445 = vst [vmem:[#allocation11 + $0x5] sm:$0x1] %v1444
    %v1446 = vadd.f32 %v1350, 55.0
    %v1447 = vmul.f32 %v1446, 0.01
    %v1448 = vsub.f32 0.0, %v1446
    %v1449 = vmul.f32 %v1448, %v245
    %v1450 = vmul.f32 %v1449, 1.442695
    %v1451 = vpow.pop %v1450
    %v1452 = vsub.f32 1.0, %v1451
    %v1453 = vrcp.pop %v1452
    %v1454 = vmul.f32 %v1447, %v1453
    %v1455 = vadd.f32 %v1350, 65.0
    %v1456 = vsub.f32 0.0, %v1455
    %v1457 = vmul.f32 %v1456, %v254
    %v1458 = vmul.f32 %v1457, 1.442695
    %v1459 = vpow.pop %v1458
    %v1460 = vmul.f32 %v1459, 0.125
    %v1461 = vadd.f32 %v1350, 40.0
    %v1462 = vmul.f32 %v1461, 0.1
    %v1463 = vsub.f32 0.0, %v1461
    %v1464 = vmul.f32 %v1463, %v245
    %v1465 = vmul.f32 %v1464, 1.442695
    %v1466 = vpow.pop %v1465
    %v1467 = vsub.f32 1.0, %v1466
    %v1468 = vrcp.pop %v1467
    %v1469 = vmul.f32 %v1462, %v1468
    %v1470 = vmul.f32 %v1456, %v268
    %v1471 = vmul.f32 %v1470, 1.442695
    %v1472 = vpow.pop %v1471
    %v1473 = vmul.f32 %v1472, 4.0
    %v1474 = vmul.f32 %v1456, %v273
    %v1475 = vmul.f32 %v1474, 1.442695
    %v1476 = vpow.pop %v1475
    %v1477 = vmul.f32 %v1476, 0.07
    %v1478 = vadd.f32 %v1350, 35.0
    %v1479 = vsub.f32 0.0, %v1478
    %v1480 = vmul.f32 %v1479, %v245
    %v1481 = vmul.f32 %v1480, 1.442695
    %v1482 = vpow.pop %v1481
    %v1483 = vadd.f32 %v1482, 1.0
    %v1484 = vrcp.pop %v1483
    %v1485 = vmul.f32 1.0, %v1484
    %v1486 = vsub.f32 1.0, %v1315
    %v1488 = vrot.slane %v1486, 1
    %v1490 = vmul.f32 %v1454, %v1488
    %v1492 = vrot.slane %v1315, 1
    %v1494 = vmul.f32 %v1460, %v1492
    %v1495 = vsub.f32 %v1490, %v1494
    %v1496 = vmul.f32 %v1495, 0.01
    %v1498 = vrot.slane %v1496, 7
    %v1500 = vadd.f32 %v1315, %v1498
    %v1501 = vsub.f32 1.0, %v1330
    %v1503 = vrot.slane %v1501, 2
    %v1505 = vmul.f32 %v1469, %v1503
    %v1507 = vrot.slane %v1330, 2
    %v1509 = vmul.f32 %v1473, %v1507
    %v1510 = vsub.f32 %v1505, %v1509
    %v1511 = vmul.f32 %v1510, 0.01
    %v1513 = vrot.slane %v1511, 6
    %v1515 = vadd.f32 %v1330, %v1513
    %v1516 = vsub.f32 1.0, %v1345
    %v1518 = vrot.slane %v1516, 3
    %v1520 = vmul.f32 %v1477, %v1518
    %v1522 = vrot.slane %v1345, 3
    %v1524 = vmul.f32 %v1485, %v1522
    %v1525 = vsub.f32 %v1520, %v1524
    %v1526 = vmul.f32 %v1525, 0.01
    %v1528 = vrot.slane %v1526, 5
    %v1530 = vadd.f32 %v1345, %v1528
    %v1531 = vmul.f32 %v1350, 0.5
    %v1532 = vld [vmem:[#allocation2 + $0x6] sm:$0x1]
    %v1533 = vadd.f32 %v1531, %v1532
    %vm1534 = vcmp.gt.f32.partialorder %v1533, 1.0
    %v1535 = vsel %vm1534, 0.0, %v1533
    %v1536 = vpack.c.bf16 %v1535, %v1535
    %1537 = vmatprep.subr.bf16.mxu0 0
    %1538 = vmatpush1.bf16.msra.mxu0 %v363
    %1539 = vmatprep.subr.bf16.mxu0 0
    %1540 = vmatpush1.bf16.msra.mxu0 %v364
    %1541 = vmatprep.subr.bf16.mxu0 0
    %1542 = vmatpush1.bf16.msra.mxu0 %v365
    %1543 = vmatprep.subr.bf16.mxu0 0
    %1544 = vmatpush1.bf16.msra.mxu0 %v366
    %1545 = vmatprep.subr.bf16.mxu0 0
    %1546 = vmatpush1.bf16.msra.mxu0 %v367
    %1547 = vmatprep.subr.bf16.mxu0 0
    %1548 = vmatpush1.bf16.msra.mxu0 %v368
    %1549 = vmatprep.subr.bf16.mxu0 0
    %1550 = vmatpush1.bf16.msra.mxu0 %v369
    %1551 = vmatprep.subr.bf16.mxu0 0
    %1552 = vmatpush1.bf16.msra.mxu0 %v370
    %1553 = vmatprep.subr.bf16.mxu0 0
    %1554 = vmatpush1.bf16.msra.mxu0 0
    %1555 = vmatprep.subr.bf16.mxu0 0
    %1556 = vmatpush1.bf16.msra.mxu0 0
    %1557 = vmatprep.subr.bf16.mxu0 0
    %1558 = vmatpush1.bf16.msra.mxu0 0
    %1559 = vmatprep.subr.bf16.mxu0 0
    %1560 = vmatpush1.bf16.msra.mxu0 0
    %1561 = vmatprep.subr.bf16.mxu0 0
    %1562 = vmatpush1.bf16.msra.mxu0 0
    %1563 = vmatprep.subr.bf16.mxu0 0
    %1564 = vmatpush1.bf16.msra.mxu0 0
    %1565 = vmatprep.subr.bf16.mxu0 0
    %1566 = vmatpush1.bf16.msra.mxu0 0
    %1567 = vmatprep.subr.bf16.mxu0 0
    %1568 = vmatpush1.bf16.msra.mxu0 0
    %1569 = vmatprep.mubr.bf16.mxu0 0
    %1570 = vmatmul.mubr.bf16.gmra.mrb[0].mxu0 %v1536
    %v1571 = vpop.f32.mrb[0].mxu0
    %v1572 = vadd.f32 %v223, %v1571
    %v1573 = vpop.f32.mrb[0].mxu0
    %v1574 = vpop.f32.mrb[0].mxu0
    %v1575 = vpop.f32.mrb[0].mxu0
    %1576 = vdwg.mxu0
    %v1577 = vxor.u32 %v1572, 2147483648
    %v1578 = vmul.f32 %v1577, 1.442695
    %v1579 = vpow.pop %v1578
    %v1580 = vadd.f32 %v1579, 1.0
    %v1581 = vrcp.pop %v1580
    %v1582 = vmul.f32 1.0, %v1581
    %v1583 = vpack.c.bf16 %v1582, %v1582
    %1584 = vmatprep.subr.bf16.mxu0 0
    %1585 = vmatpush1.bf16.msra.mxu0 %v458
    %1586 = vmatprep.subr.bf16.mxu0 0
    %1587 = vmatpush1.bf16.msra.mxu0 %v459
    %1588 = vmatprep.subr.bf16.mxu0 0
    %1589 = vmatpush1.bf16.msra.mxu0 %v460
    %1590 = vmatprep.subr.bf16.mxu0 0
    %1591 = vmatpush1.bf16.msra.mxu0 %v461
    %1592 = vmatprep.subr.bf16.mxu0 0
    %1593 = vmatpush1.bf16.msra.mxu0 %v462
    %1594 = vmatprep.subr.bf16.mxu0 0
    %1595 = vmatpush1.bf16.msra.mxu0 %v463
    %1596 = vmatprep.subr.bf16.mxu0 0
    %1597 = vmatpush1.bf16.msra.mxu0 %v464
    %1598 = vmatprep.subr.bf16.mxu0 0
    %1599 = vmatpush1.bf16.msra.mxu0 %v465
    %1600 = vmatprep.subr.bf16.mxu0 0
    %1601 = vmatpush1.bf16.msra.mxu0 0
    %1602 = vmatprep.subr.bf16.mxu0 0
    %1603 = vmatpush1.bf16.msra.mxu0 0
    %1604 = vmatprep.subr.bf16.mxu0 0
    %1605 = vmatpush1.bf16.msra.mxu0 0
    %1606 = vmatprep.subr.bf16.mxu0 0
    %1607 = vmatpush1.bf16.msra.mxu0 0
    %1608 = vmatprep.subr.bf16.mxu0 0
    %1609 = vmatpush1.bf16.msra.mxu0 0
    %1610 = vmatprep.subr.bf16.mxu0 0
    %1611 = vmatpush1.bf16.msra.mxu0 0
    %1612 = vmatprep.subr.bf16.mxu0 0
    %1613 = vmatpush1.bf16.msra.mxu0 0
    %1614 = vmatprep.subr.bf16.mxu0 0
    %1615 = vmatpush1.bf16.msra.mxu0 0
    %1616 = vmatprep.mubr.bf16.mxu0 0
    %1617 = vmatmul.mubr.bf16.gmra.mrb[0].mxu0 %v1583
    %v1618 = vpop.f32.mrb[0].mxu0
    %v1619 = vadd.f32 %v240, %v1618
    %v1620 = vpop.f32.mrb[0].mxu0
    %v1621 = vpop.f32.mrb[0].mxu0
    %v1622 = vpop.f32.mrb[0].mxu0
    %1623 = vdwg.mxu0
    %v1624 = vxor.u32 %v1619, 2147483648
    %v1625 = vmul.f32 %v1624, 1.442695
    %v1626 = vpow.pop %v1625
    %v1627 = vadd.f32 %v1626, 1.0
    %v1628 = vrcp.pop %v1627
    %v1629 = vmul.f32 1.0, %v1628
    %1630 = vst [vmem:[#allocation11 + $0x6] sm:$0x1] %v1629
    %v1631 = vadd.f32 %v1535, 55.0
    %v1632 = vmul.f32 %v1631, 0.01
    %v1633 = vsub.f32 0.0, %v1631
    %v1634 = vmul.f32 %v1633, %v245
    %v1635 = vmul.f32 %v1634, 1.442695
    %v1636 = vpow.pop %v1635
    %v1637 = vsub.f32 1.0, %v1636
    %v1638 = vrcp.pop %v1637
    %v1639 = vmul.f32 %v1632, %v1638
    %v1640 = vadd.f32 %v1535, 65.0
    %v1641 = vsub.f32 0.0, %v1640
    %v1642 = vmul.f32 %v1641, %v254
    %v1643 = vmul.f32 %v1642, 1.442695
    %v1644 = vpow.pop %v1643
    %v1645 = vmul.f32 %v1644, 0.125
    %v1646 = vadd.f32 %v1535, 40.0
    %v1647 = vmul.f32 %v1646, 0.1
    %v1648 = vsub.f32 0.0, %v1646
    %v1649 = vmul.f32 %v1648, %v245
    %v1650 = vmul.f32 %v1649, 1.442695
    %v1651 = vpow.pop %v1650
    %v1652 = vsub.f32 1.0, %v1651
    %v1653 = vrcp.pop %v1652
    %v1654 = vmul.f32 %v1647, %v1653
    %v1655 = vmul.f32 %v1641, %v268
    %v1656 = vmul.f32 %v1655, 1.442695
    %v1657 = vpow.pop %v1656
    %v1658 = vmul.f32 %v1657, 4.0
    %v1659 = vmul.f32 %v1641, %v273
    %v1660 = vmul.f32 %v1659, 1.442695
    %v1661 = vpow.pop %v1660
    %v1662 = vmul.f32 %v1661, 0.07
    %v1663 = vadd.f32 %v1535, 35.0
    %v1664 = vsub.f32 0.0, %v1663
    %v1665 = vmul.f32 %v1664, %v245
    %v1666 = vmul.f32 %v1665, 1.442695
    %v1667 = vpow.pop %v1666
    %v1668 = vadd.f32 %v1667, 1.0
    %v1669 = vrcp.pop %v1668
    %v1670 = vmul.f32 1.0, %v1669
    %v1671 = vsub.f32 1.0, %v1500
    %v1673 = vrot.slane %v1671, 1
    %v1675 = vmul.f32 %v1639, %v1673
    %v1677 = vrot.slane %v1500, 1
    %v1679 = vmul.f32 %v1645, %v1677
    %v1680 = vsub.f32 %v1675, %v1679
    %v1681 = vmul.f32 %v1680, 0.01
    %v1683 = vrot.slane %v1681, 7
    %v1685 = vadd.f32 %v1500, %v1683
    %v1686 = vsub.f32 1.0, %v1515
    %v1688 = vrot.slane %v1686, 2
    %v1690 = vmul.f32 %v1654, %v1688
    %v1692 = vrot.slane %v1515, 2
    %v1694 = vmul.f32 %v1658, %v1692
    %v1695 = vsub.f32 %v1690, %v1694
    %v1696 = vmul.f32 %v1695, 0.01
    %v1698 = vrot.slane %v1696, 6
    %v1700 = vadd.f32 %v1515, %v1698
    %v1701 = vsub.f32 1.0, %v1530
    %v1703 = vrot.slane %v1701, 3
    %v1705 = vmul.f32 %v1662, %v1703
    %v1707 = vrot.slane %v1530, 3
    %v1709 = vmul.f32 %v1670, %v1707
    %v1710 = vsub.f32 %v1705, %v1709
    %v1711 = vmul.f32 %v1710, 0.01
    %v1713 = vrot.slane %v1711, 5
    %v1715 = vadd.f32 %v1530, %v1713
    %v1716 = vmul.f32 %v1535, 0.5
    %v1717 = vld [vmem:[#allocation2 + $0x7] sm:$0x1]
    %v1718 = vadd.f32 %v1716, %v1717
    %vm1719 = vcmp.gt.f32.partialorder %v1718, 1.0
    %v1720 = vsel %vm1719, 0.0, %v1718
    %v1721 = vpack.c.bf16 %v1720, %v1720
    %1722 = vmatprep.subr.bf16.mxu0 0
    %1723 = vmatpush1.bf16.msra.mxu0 %v363
    %1724 = vmatprep.subr.bf16.mxu0 0
    %1725 = vmatpush1.bf16.msra.mxu0 %v364
    %1726 = vmatprep.subr.bf16.mxu0 0
    %1727 = vmatpush1.bf16.msra.mxu0 %v365
    %1728 = vmatprep.subr.bf16.mxu0 0
    %1729 = vmatpush1.bf16.msra.mxu0 %v366
    %1730 = vmatprep.subr.bf16.mxu0 0
    %1731 = vmatpush1.bf16.msra.mxu0 %v367
    %1732 = vmatprep.subr.bf16.mxu0 0
    %1733 = vmatpush1.bf16.msra.mxu0 %v368
    %1734 = vmatprep.subr.bf16.mxu0 0
    %1735 = vmatpush1.bf16.msra.mxu0 %v369
    %1736 = vmatprep.subr.bf16.mxu0 0
    %1737 = vmatpush1.bf16.msra.mxu0 %v370
    %1738 = vmatprep.subr.bf16.mxu0 0
    %1739 = vmatpush1.bf16.msra.mxu0 0
    %1740 = vmatprep.subr.bf16.mxu0 0
    %1741 = vmatpush1.bf16.msra.mxu0 0
    %1742 = vmatprep.subr.bf16.mxu0 0
    %1743 = vmatpush1.bf16.msra.mxu0 0
    %1744 = vmatprep.subr.bf16.mxu0 0
    %1745 = vmatpush1.bf16.msra.mxu0 0
    %1746 = vmatprep.subr.bf16.mxu0 0
    %1747 = vmatpush1.bf16.msra.mxu0 0
    %1748 = vmatprep.subr.bf16.mxu0 0
    %1749 = vmatpush1.bf16.msra.mxu0 0
    %1750 = vmatprep.subr.bf16.mxu0 0
    %1751 = vmatpush1.bf16.msra.mxu0 0
    %1752 = vmatprep.subr.bf16.mxu0 0
    %1753 = vmatpush1.bf16.msra.mxu0 0
    %1754 = vmatprep.mubr.bf16.mxu0 0
    %1755 = vmatmul.mubr.bf16.gmra.mrb[0].mxu0 %v1721
    %v1756 = vpop.f32.mrb[0].mxu0
    %v1757 = vadd.f32 %v223, %v1756
    %v1758 = vpop.f32.mrb[0].mxu0
    %v1759 = vpop.f32.mrb[0].mxu0
    %v1760 = vpop.f32.mrb[0].mxu0
    %1761 = vdwg.mxu0
    %v1762 = vxor.u32 %v1757, 2147483648
    %v1763 = vmul.f32 %v1762, 1.442695
    %v1764 = vpow.pop %v1763
    %v1765 = vadd.f32 %v1764, 1.0
    %v1766 = vrcp.pop %v1765
    %v1767 = vmul.f32 1.0, %v1766
    %v1768 = vpack.c.bf16 %v1767, %v1767
    %1769 = vmatprep.subr.bf16.mxu0 0
    %1770 = vmatpush1.bf16.msra.mxu0 %v458
    %1771 = vmatprep.subr.bf16.mxu0 0
    %1772 = vmatpush1.bf16.msra.mxu0 %v459
    %1773 = vmatprep.subr.bf16.mxu0 0
    %1774 = vmatpush1.bf16.msra.mxu0 %v460
    %1775 = vmatprep.subr.bf16.mxu0 0
    %1776 = vmatpush1.bf16.msra.mxu0 %v461
    %1777 = vmatprep.subr.bf16.mxu0 0
    %1778 = vmatpush1.bf16.msra.mxu0 %v462
    %1779 = vmatprep.subr.bf16.mxu0 0
    %1780 = vmatpush1.bf16.msra.mxu0 %v463
    %1781 = vmatprep.subr.bf16.mxu0 0
    %1782 = vmatpush1.bf16.msra.mxu0 %v464
    %1783 = vmatprep.subr.bf16.mxu0 0
    %1784 = vmatpush1.bf16.msra.mxu0 %v465
    %1785 = vmatprep.subr.bf16.mxu0 0
    %1786 = vmatpush1.bf16.msra.mxu0 0
    %1787 = vmatprep.subr.bf16.mxu0 0
    %1788 = vmatpush1.bf16.msra.mxu0 0
    %1789 = vmatprep.subr.bf16.mxu0 0
    %1790 = vmatpush1.bf16.msra.mxu0 0
    %1791 = vmatprep.subr.bf16.mxu0 0
    %1792 = vmatpush1.bf16.msra.mxu0 0
    %1793 = vmatprep.subr.bf16.mxu0 0
    %1794 = vmatpush1.bf16.msra.mxu0 0
    %1795 = vmatprep.subr.bf16.mxu0 0
    %1796 = vmatpush1.bf16.msra.mxu0 0
    %1797 = vmatprep.subr.bf16.mxu0 0
    %1798 = vmatpush1.bf16.msra.mxu0 0
    %1799 = vmatprep.subr.bf16.mxu0 0
    %1800 = vmatpush1.bf16.msra.mxu0 0
    %1801 = vmatprep.mubr.bf16.mxu0 0
    %1802 = vmatmul.mubr.bf16.gmra.mrb[0].mxu0 %v1768
    %v1803 = vpop.f32.mrb[0].mxu0
    %v1804 = vadd.f32 %v240, %v1803
    %v1805 = vpop.f32.mrb[0].mxu0
    %v1806 = vpop.f32.mrb[0].mxu0
    %v1807 = vpop.f32.mrb[0].mxu0
    %1808 = vdwg.mxu0
    %v1809 = vxor.u32 %v1804, 2147483648
    %v1810 = vmul.f32 %v1809, 1.442695
    %v1811 = vpow.pop %v1810
    %v1812 = vadd.f32 %v1811, 1.0
    %v1813 = vrcp.pop %v1812
    %v1814 = vmul.f32 1.0, %v1813
    %1815 = vst [vmem:[#allocation11 + $0x7] sm:$0x1] %v1814
    %vm1816 = vcmask 1040384
    %v1817 = vsel %vm1816, %v1720, %v1685
    %vm1818 = vcmask 1041408
    %v1819 = vsel %vm1818, %v1817, %v1700
    %vm1820 = vcmask 1042432
    %v1821 = vsel %vm1820, %v1819, %v1715
    %vm1822 = vcmask 1043456
    %v1823 = vsel %vm1822, %v1821, 0.0
    %v1824 = vlaneseq
    %v1825 = vand.u32 %v1824, 127
    %vm1826 = vcmp.lt.s32.totalorder %v1825, 100
    %v1827 = vsel %vm1826, %v1823, 0.0
    %1828 = vst [vmem:[#allocation12] sm:$0xff] %v1827
    // Predicated region
    $region50: #{snn_forward_sequence.1} parent=1 // pred_check
      _
    $region51: #{snn_forward_sequence.1} parent=1 // pred_check_branch
      %1830 = sbr.rel (0) target = $region53
    $region52: #{snn_forward_sequence.1} parent=1 // pred_region
      %s1832 = ssub.s32 128, 128
      %1833 = vsyncadd [#allocation5], %s1832
      %s1835 = sshll.u32 [#allocation11], 4
      %s1836 = int_to_ptr.vmem [resolvable:$true] %s1835
      %1838 = dma.vmem_to_hbm [thread:$0]  %s1836, 128, %s8, [#allocation5]
    $region53: #{snn_forward_sequence.1} parent=1 // pred_fallthru
      _
    // Predicated region
    $region54: #{snn_forward_sequence.1} parent=1 // pred_check
      _
    $region55: #{snn_forward_sequence.1} parent=1 // pred_check_branch
      %1840 = sbr.rel (0) target = $region57
    $region56: #{snn_forward_sequence.1} parent=1 // pred_region
      %s1842 = ssub.s32 128, 128
      %1843 = vsyncadd [#allocation13], %s1842
      %s1845 = sshll.u32 [#allocation12], 4
      %s1846 = int_to_ptr.vmem [resolvable:$true] %s1845
      %1848 = dma.vmem_to_hbm [thread:$0]  %s1846, 128, %s9, [#allocation13]
    $region57: #{snn_forward_sequence.1} parent=1 // pred_fallthru
      _
    // Predicated region
    $region58: #{snn_forward_sequence.1} parent=1 // pred_check
      _
    $region59: #{snn_forward_sequence.1} parent=1 // pred_check_branch
      %1850 = sbr.rel (0) target = $region61
    $region60: #{snn_forward_sequence.1} parent=1 // pred_region
      %1851 = dma.done [#allocation5], 128
    $region61: #{snn_forward_sequence.1} parent=1 // pred_fallthru
      _
    // Predicated region
    $region62: #{snn_forward_sequence.1} parent=1 // pred_check
      _
    $region63: #{snn_forward_sequence.1} parent=1 // pred_check_branch
      %1853 = sbr.rel (0) target = $region65
    $region64: #{snn_forward_sequence.1} parent=1 // pred_region
      %1854 = dma.done [#allocation13], 128
    $region65: #{snn_forward_sequence.1} parent=1 // pred_fallthru
      _
    %1855 = vsyncpa [#allocation4], 1
    %1856 = vsyncpa [#allocation7], 1
    %1857 = vsyncpa [#allocation10], 1
    %1858 = vsyncpa [#allocation5], 1
    %1859 = vsyncpa [#allocation13], 1

</llo_original>
